<compile_context>
chip_gen: v7x
topology: tpu7x:2x2x1
jax: 0.10.0
libtpu: 0.0.40
codegen_flags: <defaults>
</compile_context>

<pallas_src>
import functools
import math

import jax
import jax.numpy as jnp
from jax import lax
from jax.experimental import pallas as pl
from jax.experimental.pallas import tpu as pltpu


# ---------------------------------------------------------------------------
# Pallas kernel: fused  out = act(A @ W + bias), M-tiled
# ---------------------------------------------------------------------------
def _mm_bias_act_kernel(a_ref, w_ref, b_ref, o_ref, *, apply_relu):
    acc = jnp.dot(a_ref[...], w_ref[...], preferred_element_type=jnp.float32)
    acc = acc + b_ref[...]                        # bias (1, Np) broadcasts
    if apply_relu:
        acc = jnp.maximum(acc, 0.0)
    o_ref[...] = acc.astype(o_ref.dtype)


def _round_up(x, m):
    return ((x + m - 1) // m) * m


def matmul_bias_act(a, w, b, *, apply_relu, out_dtype=jnp.float32, tm=512):
    """a: [M, K], w: [K, N], b: [N] -> [M, N] via an M-tiled fused Pallas kernel."""
    M, K = a.shape
    K2, N = w.shape
    assert K == K2

    # Lane-dense output (multiple of 128). K is NOT padded (block == full K).
    Np = _round_up(N, 128)
    # M tile: multiple of 16 (safe for bf16 sublane packing), capped for VMEM.
    TM = min(tm, _round_up(M, 16))
    Mp = _round_up(M, TM)

    a_p = a.astype(jnp.bfloat16)
    if Mp != M:
        a_p = jnp.pad(a_p, ((0, Mp - M), (0, 0)))
    w_p = w.astype(jnp.bfloat16)
    b_p = b.astype(jnp.float32)
    if Np != N:
        w_p = jnp.pad(w_p, ((0, 0), (0, Np - N)))
        b_p = jnp.pad(b_p, ((0, Np - N),))
    b_p = b_p.reshape(1, Np)

    out_itemsize = jnp.dtype(out_dtype).itemsize
    cost = pl.CostEstimate(
        flops=2 * M * K * N,
        transcendentals=0,
        bytes_accessed=(Mp * K * 2 + K * Np * 2 + Np * 4 + Mp * Np * out_itemsize),
    )

    out = pl.pallas_call(
        functools.partial(_mm_bias_act_kernel, apply_relu=apply_relu),
        out_shape=jax.ShapeDtypeStruct((Mp, Np), out_dtype),
        grid=(Mp // TM,),
        in_specs=[
            pl.BlockSpec((TM, K), lambda i: (i, 0)),    # A: M-tiled, full (unpadded) K
            pl.BlockSpec((K, Np), lambda i: (0, 0)),    # W: resident across the grid
            pl.BlockSpec((1, Np), lambda i: (0, 0)),    # bias: resident
        ],
        out_specs=pl.BlockSpec((TM, Np), lambda i: (i, 0)),
        compiler_params=pltpu.CompilerParams(
            dimension_semantics=("parallel",)),
        cost_estimate=cost,
    )(a_p, w_p, b_p)
    return out[:M, :N]


# ---------------------------------------------------------------------------
# Glue: NHWC im2col (pure reshuffling, no FLOPs, no activation transposes)
# ---------------------------------------------------------------------------
def im2col_nhwc(x, kh=3, kw=3, stride=2):
    """x: [B, H, W, C] -> patches [B, Ho, Wo, kh*kw*C] (valid, stride-s)."""
    B, H, W, C = x.shape
    Ho = (H - kh) // stride + 1
    Wo = (W - kw) // stride + 1
    cols = []
    for i in range(kh):
        for j in range(kw):
            cols.append(x[:, i:i + stride * Ho:stride, j:j + stride * Wo:stride, :])
    patches = jnp.stack(cols, axis=3)                 # [B, Ho, Wo, kh*kw, C]
    return patches.reshape(B, Ho, Wo, kh * kw * C), Ho, Wo


# ---------------------------------------------------------------------------
# One-time host-side weight re-layout (absorbs all layout permutations)
# ---------------------------------------------------------------------------
def prepare_params(params):
    C = params["in_conv_bias"].shape[0]
    O = params["out_weight"].shape[0]
    F2 = params["out_weight"].shape[1] // C
    # Conv weights: OIHW -> [kh*kw*I, O] matching the NHWC im2col patch order.
    w1 = params["in_conv_weight"].transpose(2, 3, 1, 0).reshape(9 * 1, C)
    w2 = params["out_conv_weight"].transpose(2, 3, 1, 0).reshape(9 * C, C)
    # Linear: PyTorch flattens NCHW as (c, f); we flatten NHWC as (f, c).
    # Permute columns once: W'[f*C + c, o] = out_weight[o, c*F2 + f].
    w3 = params["out_weight"].reshape(O, C, F2).transpose(2, 1, 0).reshape(F2 * C, O)
    return {
        "w1": w1.astype(jnp.bfloat16), "b1": params["in_conv_bias"].astype(jnp.float32),
        "w2": w2.astype(jnp.bfloat16), "b2": params["out_conv_bias"].astype(jnp.float32),
        "w3": w3.astype(jnp.bfloat16), "b3": params["out_bias"].astype(jnp.float32),
    }


# ---------------------------------------------------------------------------
# Conv2dSubsampling forward (NHWC end-to-end)
# ---------------------------------------------------------------------------
def conv2d_subsampling_forward(x, input_mask, kparams):
    """x: [B, T, F] float32, input_mask: [B, T]. Returns ([B, T2, C], mask)."""
    B, T, F = x.shape
    C = kparams["b1"].shape[0]

    # ---- conv1: Cin=1, 3x3, stride 2, valid + ReLU -------------------------
    x_nhwc = x[:, :, :, None].astype(jnp.bfloat16)        # [B, T, F, 1]
    p1, T1, F1 = im2col_nhwc(x_nhwc)                      # [B, T1, F1, 9]
    h1 = matmul_bias_act(p1.reshape(B * T1 * F1, 9), kparams["w1"], kparams["b1"],
                         apply_relu=True, out_dtype=jnp.bfloat16)
    h1 = h1.reshape(B, T1, F1, C)                         # NHWC, no transpose

    # ---- conv2: Cin=C, 3x3, stride 2, valid + ReLU -------------------------
    p2, T2, F2 = im2col_nhwc(h1)                          # [B, T2, F2, 9*C]
    h2 = matmul_bias_act(p2.reshape(B * T2 * F2, 9 * C), kparams["w2"], kparams["b2"],
                         apply_relu=True, out_dtype=jnp.bfloat16)

    # ---- flatten (f, c) order; weight was permuted to match -----------------
    flat = h2.reshape(B * T2, F2 * C)                     # no transpose

    # ---- final Linear --------------------------------------------------------
    out = matmul_bias_act(flat, kparams["w3"], kparams["b3"],
                          apply_relu=False, out_dtype=jnp.float32)
    out = out.reshape(B, T2, C)

    # ---- mask subsampling ----------------------------------------------------
    mask = input_mask[:, :-2:2][:, :-2:2]
    # TODO(synk): dropout (rate 0.0 in the module default / eval path) omitted.
    return out, mask


# ---------------------------------------------------------------------------
# Deterministic parameter init (mirrors the module's __init__ / reset scheme)
# ---------------------------------------------------------------------------
def init_params(key, input_dim, output_dim):
    cnn_feature_size = output_dim * (((input_dim - 1) // 2 - 1) // 2)
    k = jax.random.split(key, 6)
    fan_in1 = 1 * 3 * 3
    fan_in2 = output_dim * 3 * 3
    b1 = 1.0 / math.sqrt(fan_in1)
    b2 = 1.0 / math.sqrt(fan_in2)
    std_ = math.sqrt(2.0 / (output_dim + output_dim))
    return {
        "in_conv_weight": jax.random.uniform(k[0], (output_dim, 1, 3, 3),
                                             jnp.float32, -b1, b1),
        "in_conv_bias": jax.random.uniform(k[1], (output_dim,),
                                           jnp.float32, -b1, b1),
        "out_conv_weight": jax.random.uniform(k[2], (output_dim, output_dim, 3, 3),
                                              jnp.float32, -b2, b2),
        "out_conv_bias": jax.random.uniform(k[3], (output_dim,),
                                            jnp.float32, -b2, b2),
        "out_weight": std_ * jax.random.normal(k[4], (output_dim, cnn_feature_size),
                                               jnp.float32),
        "out_bias": jnp.zeros((output_dim,), jnp.float32),
    }


# ---------------------------------------------------------------------------
# Pure-JAX reference (lax.conv, f32) for a silent sanity check
# ---------------------------------------------------------------------------
def reference_forward(x, input_mask, params):
    dn = lax.conv_dimension_numbers(x[:, None].shape,
                                    params["in_conv_weight"].shape,
                                    ("NCHW", "OIHW", "NCHW"))
    h = lax.conv_general_dilated(x[:, None], params["in_conv_weight"],
                                 (2, 2), "VALID", dimension_numbers=dn)
    h = jax.nn.relu(h + params["in_conv_bias"][None, :, None, None])
    h = lax.conv_general_dilated(h, params["out_conv_weight"],
                                 (2, 2), "VALID", dimension_numbers=dn)
    h = jax.nn.relu(h + params["out_conv_bias"][None, :, None, None])
    b, c, t, f = h.shape
    h = h.transpose(0, 2, 1, 3).reshape(b, t, c * f)
    out = h @ params["out_weight"].T + params["out_bias"]
    mask = input_mask[:, :-2:2][:, :-2:2]
    return out, mask


if __name__ == "__main__":
    B, T, input_dim, output_dim = 4, 64, 40, 64
    key = jax.random.PRNGKey(0)
    kp, kx = jax.random.split(key)

    params = init_params(kp, input_dim, output_dim)
    kparams = prepare_params(params)
    x = jax.random.normal(kx, (B, T, input_dim), jnp.float32)
    input_mask = jnp.ones((B, T), jnp.int32)

    fwd = jax.jit(conv2d_subsampling_forward)
    out, mask = fwd(x, input_mask, kparams)
    out = jax.block_until_ready(out)
    mask = jax.block_until_ready(mask)

    ref_out, ref_mask = reference_forward(x, input_mask, params)
    assert out.shape == ref_out.shape and mask.shape == ref_mask.shape
    # bf16 activations/weights with f32 accumulation vs f32 reference.
    assert jnp.allclose(out, ref_out, atol=5e-2, rtol=5e-2), (
        float(jnp.max(jnp.abs(out - ref_out))))
    assert jnp.array_equal(mask, ref_mask)

    print("KERNEL_OK")
</pallas_src>

<mosaic_0001>
module attributes {stable_mosaic.version = 11 : i64} {
  func.func @_mm_bias_act_kernel(%arg0: i32, %arg1: memref<512x9xbf16, #tpu.memory_space<vmem>>, %arg2: memref<9x128xbf16, #tpu.memory_space<vmem>>, %arg3: memref<1x128xf32, #tpu.memory_space<vmem>>, %arg4: memref<512x128xbf16, #tpu.memory_space<vmem>>) attributes {dimension_semantics = [#tpu.dimension_semantics<parallel>], iteration_bounds = array<i64: 5>, scalar_prefetch = 0 : i64, scratch_operands = 0 : i64, tpu.core_type = #tpu.core_type<tc>, window_params = [{transform_indices = @transform_0, window_bounds = array<i64: 512, 9>}, {pipeline_mode = #tpu.pipeline_mode<synchronous>, transform_indices = @transform_1, window_bounds = array<i64: 9, 128>}, {pipeline_mode = #tpu.pipeline_mode<synchronous>, transform_indices = @transform_2, window_bounds = array<i64: 1, 128>}, {transform_indices = @transform_3, window_bounds = array<i64: 512, 128>}]} {
    %c0 = arith.constant 0 : index
    %c0_0 = arith.constant 0 : index
    %0 = vector.load %arg1[%c0, %c0_0] : memref<512x9xbf16, #tpu.memory_space<vmem>>, vector<512x9xbf16>
    %c0_1 = arith.constant 0 : index
    %c0_2 = arith.constant 0 : index
    %1 = vector.load %arg2[%c0_1, %c0_2] : memref<9x128xbf16, #tpu.memory_space<vmem>>, vector<9x128xbf16>
    %cst = arith.constant dense<0.000000e+00> : vector<512x128xf32>
    %2 = tpu.matmul %0, %1, %cst {dimension_numbers = #tpu.dot_dimension_numbers<[1], [0], [0], [1], [0, 0, 1, 1], [], []>} : vector<512x9xbf16>, vector<9x128xbf16>, vector<512x128xf32> -> vector<512x128xf32>
    %c0_3 = arith.constant 0 : index
    %c0_4 = arith.constant 0 : index
    %3 = vector.load %arg3[%c0_3, %c0_4] : memref<1x128xf32, #tpu.memory_space<vmem>>, vector<1x128xf32>
    %4 = vector.broadcast %3 : vector<1x128xf32> to vector<512x128xf32>
    %5 = arith.addf %2, %4 : vector<512x128xf32>
    %cst_5 = arith.constant 0.000000e+00 : f32
    %6 = vector.broadcast %cst_5 : f32 to vector<512x128xf32>
    %7 = arith.maximumf %5, %6 : vector<512x128xf32>
    %8 = arith.truncf %7 : vector<512x128xf32> to vector<512x128xbf16>
    %c0_6 = arith.constant 0 : index
    %c0_7 = arith.constant 0 : index
    %9 = vector.load %arg4[%c0_6, %c0_7] : memref<512x128xbf16, #tpu.memory_space<vmem>>, vector<512x128xbf16>
    tpu.vector_store %arg4[%c0_6, %c0_7], %8 {strides = array<i32>} : memref<512x128xbf16, #tpu.memory_space<vmem>>, vector<512x128xbf16>,
    return
  }
  func.func @transform_0(%arg0: i32) -> (i32, i32) {
    %c0_i32 = arith.constant 0 : i32
    %c0_i32_0 = arith.constant 0 : i32
    return %arg0, %c0_i32 : i32, i32
  }
  func.func @transform_1(%arg0: i32) -> (i32, i32) {
    %c0_i32 = arith.constant 0 : i32
    %c0_i32_0 = arith.constant 0 : i32
    %c0_i32_1 = arith.constant 0 : i32
    return %c0_i32, %c0_i32_0 : i32, i32
  }
  func.func @transform_2(%arg0: i32) -> (i32, i32) {
    %c0_i32 = arith.constant 0 : i32
    %c0_i32_0 = arith.constant 0 : i32
    %c0_i32_1 = arith.constant 0 : i32
    return %c0_i32, %c0_i32_0 : i32, i32
  }
  func.func @transform_3(%arg0: i32) -> (i32, i32) {
    %c0_i32 = arith.constant 0 : i32
    %c0_i32_0 = arith.constant 0 : i32
    return %arg0, %c0_i32 : i32, i32
  }
}

module attributes {stable_mosaic.version = 11 : i64} {
  func.func @_mm_bias_act_kernel(%arg0: i32, %arg1: memref<512x576xbf16, #tpu.memory_space<vmem>>, %arg2: memref<576x128xbf16, #tpu.memory_space<vmem>>, %arg3: memref<1x128xf32, #tpu.memory_space<vmem>>, %arg4: memref<512x128xbf16, #tpu.memory_space<vmem>>) attributes {dimension_semantics = [#tpu.dimension_semantics<parallel>], iteration_bounds = array<i64: 2>, scalar_prefetch = 0 : i64, scratch_operands = 0 : i64, tpu.core_type = #tpu.core_type<tc>, window_params = [{transform_indices = @transform_0, window_bounds = array<i64: 512, 576>}, {pipeline_mode = #tpu.pipeline_mode<synchronous>, transform_indices = @transform_1, window_bounds = array<i64: 576, 128>}, {pipeline_mode = #tpu.pipeline_mode<synchronous>, transform_indices = @transform_2, window_bounds = array<i64: 1, 128>}, {transform_indices = @transform_3, window_bounds = array<i64: 512, 128>}]} {
    %c0 = arith.constant 0 : index
    %c0_0 = arith.constant 0 : index
    %0 = vector.load %arg1[%c0, %c0_0] : memref<512x576xbf16, #tpu.memory_space<vmem>>, vector<512x576xbf16>
    %c0_1 = arith.constant 0 : index
    %c0_2 = arith.constant 0 : index
    %1 = vector.load %arg2[%c0_1, %c0_2] : memref<576x128xbf16, #tpu.memory_space<vmem>>, vector<576x128xbf16>
    %cst = arith.constant dense<0.000000e+00> : vector<512x128xf32>
    %2 = tpu.matmul %0, %1, %cst {dimension_numbers = #tpu.dot_dimension_numbers<[1], [0], [0], [1], [0, 0, 1, 1], [], []>} : vector<512x576xbf16>, vector<576x128xbf16>, vector<512x128xf32> -> vector<512x128xf32>
    %c0_3 = arith.constant 0 : index
    %c0_4 = arith.constant 0 : index
    %3 = vector.load %arg3[%c0_3, %c0_4] : memref<1x128xf32, #tpu.memory_space<vmem>>, vector<1x128xf32>
    %4 = vector.broadcast %3 : vector<1x128xf32> to vector<512x128xf32>
    %5 = arith.addf %2, %4 : vector<512x128xf32>
    %cst_5 = arith.constant 0.000000e+00 : f32
    %6 = vector.broadcast %cst_5 : f32 to vector<512x128xf32>
    %7 = arith.maximumf %5, %6 : vector<512x128xf32>
    %8 = arith.truncf %7 : vector<512x128xf32> to vector<512x128xbf16>
    %c0_6 = arith.constant 0 : index
    %c0_7 = arith.constant 0 : index
    %9 = vector.load %arg4[%c0_6, %c0_7] : memref<512x128xbf16, #tpu.memory_space<vmem>>, vector<512x128xbf16>
    tpu.vector_store %arg4[%c0_6, %c0_7], %8 {strides = array<i32>} : memref<512x128xbf16, #tpu.memory_space<vmem>>, vector<512x128xbf16>,
    return
  }
  func.func @transform_0(%arg0: i32) -> (i32, i32) {
    %c0_i32 = arith.constant 0 : i32
    %c0_i32_0 = arith.constant 0 : i32
    return %arg0, %c0_i32 : i32, i32
  }
  func.func @transform_1(%arg0: i32) -> (i32, i32) {
    %c0_i32 = arith.constant 0 : i32
    %c0_i32_0 = arith.constant 0 : i32
    %c0_i32_1 = arith.constant 0 : i32
    return %c0_i32, %c0_i32_0 : i32, i32
  }
  func.func @transform_2(%arg0: i32) -> (i32, i32) {
    %c0_i32 = arith.constant 0 : i32
    %c0_i32_0 = arith.constant 0 : i32
    %c0_i32_1 = arith.constant 0 : i32
    return %c0_i32, %c0_i32_0 : i32, i32
  }
  func.func @transform_3(%arg0: i32) -> (i32, i32) {
    %c0_i32 = arith.constant 0 : i32
    %c0_i32_0 = arith.constant 0 : i32
    return %arg0, %c0_i32 : i32, i32
  }
}

module attributes {stable_mosaic.version = 11 : i64} {
  func.func @_mm_bias_act_kernel(%arg0: i32, %arg1: memref<64x576xbf16, #tpu.memory_space<vmem>>, %arg2: memref<576x128xbf16, #tpu.memory_space<vmem>>, %arg3: memref<1x128xf32, #tpu.memory_space<vmem>>, %arg4: memref<64x128xf32, #tpu.memory_space<vmem>>) attributes {dimension_semantics = [#tpu.dimension_semantics<parallel>], iteration_bounds = array<i64: 1>, scalar_prefetch = 0 : i64, scratch_operands = 0 : i64, tpu.core_type = #tpu.core_type<tc>, window_params = [{transform_indices = @transform_0, window_bounds = array<i64: 64, 576>}, {pipeline_mode = #tpu.pipeline_mode<synchronous>, transform_indices = @transform_1, window_bounds = array<i64: 576, 128>}, {pipeline_mode = #tpu.pipeline_mode<synchronous>, transform_indices = @transform_2, window_bounds = array<i64: 1, 128>}, {transform_indices = @transform_3, window_bounds = array<i64: 64, 128>}]} {
    %c0 = arith.constant 0 : index
    %c0_0 = arith.constant 0 : index
    %0 = vector.load %arg1[%c0, %c0_0] : memref<64x576xbf16, #tpu.memory_space<vmem>>, vector<64x576xbf16>
    %c0_1 = arith.constant 0 : index
    %c0_2 = arith.constant 0 : index
    %1 = vector.load %arg2[%c0_1, %c0_2] : memref<576x128xbf16, #tpu.memory_space<vmem>>, vector<576x128xbf16>
    %cst = arith.constant dense<0.000000e+00> : vector<64x128xf32>
    %2 = tpu.matmul %0, %1, %cst {dimension_numbers = #tpu.dot_dimension_numbers<[1], [0], [0], [1], [0, 0, 1, 1], [], []>} : vector<64x576xbf16>, vector<576x128xbf16>, vector<64x128xf32> -> vector<64x128xf32>
    %c0_3 = arith.constant 0 : index
    %c0_4 = arith.constant 0 : index
    %3 = vector.load %arg3[%c0_3, %c0_4] : memref<1x128xf32, #tpu.memory_space<vmem>>, vector<1x128xf32>
    %4 = vector.broadcast %3 : vector<1x128xf32> to vector<64x128xf32>
    %5 = arith.addf %2, %4 : vector<64x128xf32>
    %c0_5 = arith.constant 0 : index
    %c0_6 = arith.constant 0 : index
    %6 = vector.load %arg4[%c0_5, %c0_6] : memref<64x128xf32, #tpu.memory_space<vmem>>, vector<64x128xf32>
    tpu.vector_store %arg4[%c0_5, %c0_6], %5 {strides = array<i32>} : memref<64x128xf32, #tpu.memory_space<vmem>>, vector<64x128xf32>,
    return
  }
  func.func @transform_0(%arg0: i32) -> (i32, i32) {
    %c0_i32 = arith.constant 0 : i32
    %c0_i32_0 = arith.constant 0 : i32
    return %arg0, %c0_i32 : i32, i32
  }
  func.func @transform_1(%arg0: i32) -> (i32, i32) {
    %c0_i32 = arith.constant 0 : i32
    %c0_i32_0 = arith.constant 0 : i32
    %c0_i32_1 = arith.constant 0 : i32
    return %c0_i32, %c0_i32_0 : i32, i32
  }
  func.func @transform_2(%arg0: i32) -> (i32, i32) {
    %c0_i32 = arith.constant 0 : i32
    %c0_i32_0 = arith.constant 0 : i32
    %c0_i32_1 = arith.constant 0 : i32
    return %c0_i32, %c0_i32_0 : i32, i32
  }
  func.func @transform_3(%arg0: i32) -> (i32, i32) {
    %c0_i32 = arith.constant 0 : i32
    %c0_i32_0 = arith.constant 0 : i32
    return %arg0, %c0_i32 : i32, i32
  }
}

</mosaic_0001>

<llo_original>
// kernel: conv2d_subsampling_forward.3
$region0: #{conv2d_subsampling_forward.3}
  #allocation0 [shape = 'u32[]', space=smem, size = 0x4, offset = 0x4, fixed_abs, tag = 'smem constant byte address 0x4 - core index']
  #allocation1 [shape = 'u32[144,128]{1,0:T(1,128)}', space=vmem, size = 0x12000, scoped, tag = 'internal scratch']
  %s0 = inlined_call_operand.vmem [shape: bf16[2560,9], index: 0, kind: input, shape index: {}]
  %s1 = inlined_call_operand.vmem [shape: bf16[9,128], index: 1, kind: input, shape index: {}]
  %s2 = inlined_call_operand.vmem [shape: f32[1,128], index: 2, kind: input, shape index: {}]
  %s3 = inlined_call_operand.vmem [shape: bf16[2560,128], index: 3, kind: output, shape index: {}]
  %s4 = sld [smem:[#allocation0]]
  $region45: #{conv2d_subsampling_forward.3} parent=0
    _
  %s6 = ssub.s32 1, %s4
  %s7 = scalar_select 0, %s6, %s4
  loop: start=0, step=1, limit=7
  $region2: #{conv2d_subsampling_forward.3} parent=0 // loop_pre_header
    _
  $region3: #{conv2d_subsampling_forward.3} parent=0 // loop_header
    %s9 = sphi 0, %s13
    %p10 = scmp.ge.s32.totalorder %s9, 7
    %s19 = sphi 0, %s21
    %s22 = sphi 0, %s19
    %s23 = sphi 0, %s22
    %s39 = sphi 0, %s23
    %s43 = sphi 0, %s43
    %s45 = sphi 0, %s43
    %s46 = sphi 0, %s45
    %s60 = sphi 0, %s46
    %s64 = sphi 0, %s64
    %s66 = sphi 0, %s64
    %s67 = sphi 0, %s66
    %s81 = sphi 0, %s67
    %s87 = sphi 0, %s89
    %s90 = sphi 0, %s87
    %s91 = sphi 0, %s90
    %s107 = sphi 0, %s91
  $region4: #{conv2d_subsampling_forward.3} parent=0 // loop_header_branch
    %12 = sbr.rel (%p10) target = $region8
  $region5: #{conv2d_subsampling_forward.3} parent=0 // loop_body
    %s14 = ssub.s32 %s9, 1
    %s15 = ssub.s32 %s9, 2
    %s16 = sadd.s32 %s9, 1
    %s17 = ssub.s32 %s9, %s16
    %p18 = scmp.eq.s32.totalorder %s17, 0
    %s20 = sadd.s32 %s19, 1
    %s21 = scalar_select %p18, %s19, %s20
    %p24 = pneg %p18
    %p25 = scmp.eq.s32.totalorder %s9, 4
    %p26 = por %p24, %p25
    %p27 = scmp.ne.s32.totalorder %s19, %s22
    %p28 = scmp.eq.s32.totalorder %s9, 0
    %p29 = por %p27, %p28
    %p30 = scmp.ne.s32.totalorder %s19, %s22
    %p31 = scmp.eq.s32.totalorder %s14, 4
    %p32 = por %p30, %p31
    %p33 = scmp.ne.s32.totalorder %s22, %s23
    %p34 = scmp.eq.s32.totalorder %s14, 0
    %p35 = por %p33, %p34
    %p36 = scmp.ne.s32.totalorder %s22, %s23
    %p37 = scmp.eq.s32.totalorder %s15, 4
    %p38 = por %p36, %p37
    %p40 = scmp.ne.s32.totalorder %s23, %s39
    %p41 = scmp.eq.s32.totalorder %s15, 0
    %p42 = por %p40, %p41
    %s44 = sadd.s32 %s43, 1
    %p47 = scmp.eq.s32.totalorder %s9, 4
    %p48 = scmp.ne.s32.totalorder %s43, %s45
    %p49 = scmp.eq.s32.totalorder %s9, 0
    %p50 = por %p48, %p49
    %p51 = scmp.ne.s32.totalorder %s43, %s45
    %p52 = scmp.eq.s32.totalorder %s14, 4
    %p53 = por %p51, %p52
    %p54 = scmp.ne.s32.totalorder %s45, %s46
    %p55 = scmp.eq.s32.totalorder %s14, 0
    %p56 = por %p54, %p55
    %p57 = scmp.ne.s32.totalorder %s45, %s46
    %p58 = scmp.eq.s32.totalorder %s15, 4
    %p59 = por %p57, %p58
    %p61 = scmp.ne.s32.totalorder %s46, %s60
    %p62 = scmp.eq.s32.totalorder %s15, 0
    %p63 = por %p61, %p62
    %s65 = sadd.s32 %s64, 1
    %p68 = scmp.eq.s32.totalorder %s9, 4
    %p69 = scmp.ne.s32.totalorder %s64, %s66
    %p70 = scmp.eq.s32.totalorder %s9, 0
    %p71 = por %p69, %p70
    %p72 = scmp.ne.s32.totalorder %s64, %s66
    %p73 = scmp.eq.s32.totalorder %s14, 4
    %p74 = por %p72, %p73
    %p75 = scmp.ne.s32.totalorder %s66, %s67
    %p76 = scmp.eq.s32.totalorder %s14, 0
    %p77 = por %p75, %p76
    %p78 = scmp.ne.s32.totalorder %s66, %s67
    %p79 = scmp.eq.s32.totalorder %s15, 4
    %p80 = por %p78, %p79
    %p82 = scmp.ne.s32.totalorder %s67, %s81
    %p83 = scmp.eq.s32.totalorder %s15, 0
    %p84 = por %p82, %p83
    %s85 = ssub.s32 %s9, %s16
    %p86 = scmp.eq.s32.totalorder %s85, 0
    %s88 = sadd.s32 %s87, 1
    %s89 = scalar_select %p86, %s87, %s88
    %p92 = pneg %p86
    %p93 = scmp.eq.s32.totalorder %s9, 4
    %p94 = por %p92, %p93
    %p95 = scmp.ne.s32.totalorder %s87, %s90
    %p96 = scmp.eq.s32.totalorder %s9, 0
    %p97 = por %p95, %p96
    %p98 = scmp.ne.s32.totalorder %s87, %s90
    %p99 = scmp.eq.s32.totalorder %s14, 4
    %p100 = por %p98, %p99
    %p101 = scmp.ne.s32.totalorder %s90, %s91
    %p102 = scmp.eq.s32.totalorder %s14, 0
    %p103 = por %p101, %p102
    %p104 = scmp.ne.s32.totalorder %s90, %s91
    %p105 = scmp.eq.s32.totalorder %s15, 4
    %p106 = por %p104, %p105
    %p108 = scmp.ne.s32.totalorder %s91, %s107
    %p109 = scmp.eq.s32.totalorder %s15, 0
    %p110 = por %p108, %p109
    %p111 = scmp.le.s32.totalorder 1, %s9
    %p112 = scmp.lt.s32.totalorder %s9, 6
    %p113 = pnand %p111, %p112
    %p114 = pneg %p113
    // Predicated region
    $region9: #{conv2d_subsampling_forward.3} parent=5 // pred_check
      _
    $region10: #{conv2d_subsampling_forward.3} parent=5 // pred_check_branch
      %116 = sbr.rel (%p113) target = $region12
    $region11: #{conv2d_subsampling_forward.3} parent=5 // pred_region
      %s117 = ssub.s32 %s9, 1
      // Predicated region
      $region13: #{conv2d_subsampling_forward.3} parent=11 // pred_check
        %p118 = pneg %p56
      $region14: #{conv2d_subsampling_forward.3} parent=11 // pred_check_branch
        %120 = sbr.rel (%p118) target = $region16
      $region15: #{conv2d_subsampling_forward.3} parent=11 // pred_region
        _
      $region16: #{conv2d_subsampling_forward.3} parent=11 // pred_fallthru
        _
      // Predicated region
      $region17: #{conv2d_subsampling_forward.3} parent=11 // pred_check
        %p121 = pneg %p77
      $region18: #{conv2d_subsampling_forward.3} parent=11 // pred_check_branch
        %123 = sbr.rel (%p121) target = $region20
      $region19: #{conv2d_subsampling_forward.3} parent=11 // pred_region
        _
      $region20: #{conv2d_subsampling_forward.3} parent=11 // pred_fallthru
        _
    $region12: #{conv2d_subsampling_forward.3} parent=5 // pred_fallthru
      _
    %p124 = scmp.lt.s32.totalorder %s9, 5
    // Predicated region
    $region21: #{conv2d_subsampling_forward.3} parent=5 // pred_check
      %p125 = pneg %p124
    $region22: #{conv2d_subsampling_forward.3} parent=5 // pred_check_branch
      %127 = sbr.rel (%p125) target = $region24
    $region23: #{conv2d_subsampling_forward.3} parent=5 // pred_region
      // Predicated region
      $region25: #{conv2d_subsampling_forward.3} parent=23 // pred_check
        %p128 = pneg %p29
      $region26: #{conv2d_subsampling_forward.3} parent=23 // pred_check_branch
        %130 = sbr.rel (%p128) target = $region28
      $region27: #{conv2d_subsampling_forward.3} parent=23 // pred_region
        %s131 = smul.u32 64, %s9
        %p132 = scmp.lt.s32.totalorder %s131, 319
        %s133 = scalar_select %p132, %s131, 319
        %s134 = smul.addr %s133, 4
        %s135 = scalar_lea.vmem %s0, %s134
        %s136 = smul.u32 64, %s9
      $region28: #{conv2d_subsampling_forward.3} parent=23 // pred_fallthru
        _
    $region24: #{conv2d_subsampling_forward.3} parent=5 // pred_fallthru
      _
    %p137 = scmp.le.s32.totalorder 1, %s9
    %p138 = scmp.lt.s32.totalorder %s9, 6
    %p139 = pnand %p137, %p138
    %p140 = pneg %p139
    // Predicated region
    $region29: #{conv2d_subsampling_forward.3} parent=5 // pred_check
      _
    $region30: #{conv2d_subsampling_forward.3} parent=5 // pred_check_branch
      %142 = sbr.rel (%p139) target = $region32
    $region31: #{conv2d_subsampling_forward.3} parent=5 // pred_region
      %s143 = ssub.s32 %s9, 1
      %s144 = smul.u32 64, %s14
      %p145 = scmp.lt.s32.totalorder %s144, 319
      %s146 = scalar_select %p145, %s144, 319
      %s147 = smul.addr %s146, 4
      %s148 = scalar_lea.vmem %s0, %s147
      %p149 = pneg %p35
      %p150 = pneg %p32
      %p151 = pneg %p56
      %p152 = pneg %p53
      %p153 = pneg %p77
      %p154 = pneg %p74
      %p155 = pneg %p103
      %p156 = pneg %p100
      %s157 = smul.u32 64, %s14
      %p158 = scmp.lt.s32.totalorder %s157, 319
      %s159 = scalar_select %p158, %s157, 319
      %s160 = smul.addr %s159, 4
      %s161 = scalar_lea.vmem %s3, %s160
      %s162 = smul.u32 64, %s14
      %p163 = scmp.lt.s32.totalorder %s162, 319
      %s164 = scalar_select %p163, %s162, 319
      %s165 = smul.addr %s164, 4
      %s166 = scalar_lea.vmem %s0, %s165
      %s167 = smul.u32 64, %s14
      %s168 = smul.u32 64, %s14
      %p169 = scmp.lt.s32.totalorder %s168, 319
      %s170 = scalar_select %p169, %s168, 319
      %s171 = smul.addr %s170, 4
      %s172 = scalar_lea.vmem %s3, %s171
      %s173 = smul.u32 64, %s14
      %v175 = vld [vmem:[%s166] sm:$0xf]
      %v176 = vld [vmem:[%s166 + $0x4] sm:$0xf]
      %v177 = vld [vmem:[%s166 + $0x8] sm:$0xf]
      %v178 = vld [vmem:[%s166 + $0xc] sm:$0xf]
      %v179 = vld [vmem:[%s166 + $0x10] sm:$0xf]
      %v180 = vld [vmem:[%s166 + $0x14] sm:$0xf]
      %v181 = vld [vmem:[%s166 + $0x18] sm:$0xf]
      %v182 = vld [vmem:[%s166 + $0x1c] sm:$0xf]
      %v183 = vld [vmem:[%s166 + $0x20] sm:$0xf]
      %v184 = vld [vmem:[%s166 + $0x24] sm:$0xf]
      %v185 = vld [vmem:[%s166 + $0x28] sm:$0xf]
      %v186 = vld [vmem:[%s166 + $0x2c] sm:$0xf]
      %v187 = vld [vmem:[%s166 + $0x30] sm:$0xf]
      %v188 = vld [vmem:[%s166 + $0x34] sm:$0xf]
      %v189 = vld [vmem:[%s166 + $0x38] sm:$0xf]
      %v190 = vld [vmem:[%s166 + $0x3c] sm:$0xf]
      %v191 = vld [vmem:[%s166 + $0x40] sm:$0xf]
      %v192 = vld [vmem:[%s166 + $0x44] sm:$0xf]
      %v193 = vld [vmem:[%s166 + $0x48] sm:$0xf]
      %v194 = vld [vmem:[%s166 + $0x4c] sm:$0xf]
      %v195 = vld [vmem:[%s166 + $0x50] sm:$0xf]
      %v196 = vld [vmem:[%s166 + $0x54] sm:$0xf]
      %v197 = vld [vmem:[%s166 + $0x58] sm:$0xf]
      %v198 = vld [vmem:[%s166 + $0x5c] sm:$0xf]
      %v199 = vld [vmem:[%s166 + $0x60] sm:$0xf]
      %v200 = vld [vmem:[%s166 + $0x64] sm:$0xf]
      %v201 = vld [vmem:[%s166 + $0x68] sm:$0xf]
      %v202 = vld [vmem:[%s166 + $0x6c] sm:$0xf]
      %v203 = vld [vmem:[%s166 + $0x70] sm:$0xf]
      %v204 = vld [vmem:[%s166 + $0x74] sm:$0xf]
      %v205 = vld [vmem:[%s166 + $0x78] sm:$0xf]
      %v206 = vld [vmem:[%s166 + $0x7c] sm:$0xf]
      %v207 = vld [vmem:[%s166 + $0x80] sm:$0xf]
      %v208 = vld [vmem:[%s166 + $0x84] sm:$0xf]
      %v209 = vld [vmem:[%s166 + $0x88] sm:$0xf]
      %v210 = vld [vmem:[%s166 + $0x8c] sm:$0xf]
      %v211 = vld [vmem:[%s166 + $0x90] sm:$0xf]
      %v212 = vld [vmem:[%s166 + $0x94] sm:$0xf]
      %v213 = vld [vmem:[%s166 + $0x98] sm:$0xf]
      %v214 = vld [vmem:[%s166 + $0x9c] sm:$0xf]
      %v215 = vld [vmem:[%s166 + $0xa0] sm:$0xf]
      %v216 = vld [vmem:[%s166 + $0xa4] sm:$0xf]
      %v217 = vld [vmem:[%s166 + $0xa8] sm:$0xf]
      %v218 = vld [vmem:[%s166 + $0xac] sm:$0xf]
      %v219 = vld [vmem:[%s166 + $0xb0] sm:$0xf]
      %v220 = vld [vmem:[%s166 + $0xb4] sm:$0xf]
      %v221 = vld [vmem:[%s166 + $0xb8] sm:$0xf]
      %v222 = vld [vmem:[%s166 + $0xbc] sm:$0xf]
      %v223 = vld [vmem:[%s166 + $0xc0] sm:$0xf]
      %v224 = vld [vmem:[%s166 + $0xc4] sm:$0xf]
      %v225 = vld [vmem:[%s166 + $0xc8] sm:$0xf]
      %v226 = vld [vmem:[%s166 + $0xcc] sm:$0xf]
      %v227 = vld [vmem:[%s166 + $0xd0] sm:$0xf]
      %v228 = vld [vmem:[%s166 + $0xd4] sm:$0xf]
      %v229 = vld [vmem:[%s166 + $0xd8] sm:$0xf]
      %v230 = vld [vmem:[%s166 + $0xdc] sm:$0xf]
      %v231 = vld [vmem:[%s166 + $0xe0] sm:$0xf]
      %v232 = vld [vmem:[%s166 + $0xe4] sm:$0xf]
      %v233 = vld [vmem:[%s166 + $0xe8] sm:$0xf]
      %v234 = vld [vmem:[%s166 + $0xec] sm:$0xf]
      %v235 = vld [vmem:[%s166 + $0xf0] sm:$0xf]
      %v236 = vld [vmem:[%s166 + $0xf4] sm:$0xf]
      %v237 = vld [vmem:[%s166 + $0xf8] sm:$0xf]
      %v238 = vld [vmem:[%s166 + $0xfc] sm:$0xf]
      %v239 = vld [vmem:[%s1] sm:$0xf]
      %v240 = vld [vmem:[%s1 + $0x4] sm:$0x1]
      %v241 = vld [vmem:[%s2] sm:$0x1]
      %v243 = vlaneseq
      %v244 = vshrl.u32 %v243, 7
      %v245 = vsub.s32 0, %v244
      %v246 = vrot.slane %v241, %v245
      %v312 = vunpack.c.l.b16 %v175
      %v313 = vunpack.c.l.b16 %v176
      %v314 = vunpack.c.l.b16 %v177
      %v315 = vunpack.c.l.b16 %v178
      %v316 = vunpack.c.l.b16 %v179
      %v317 = vunpack.c.l.b16 %v180
      %v318 = vunpack.c.l.b16 %v181
      %v319 = vunpack.c.l.b16 %v182
      %v320 = vunpack.c.l.b16 %v183
      %v321 = vunpack.c.l.b16 %v184
      %v322 = vunpack.c.l.b16 %v185
      %v323 = vunpack.c.l.b16 %v186
      %v324 = vunpack.c.l.b16 %v187
      %v325 = vunpack.c.l.b16 %v188
      %v326 = vunpack.c.l.b16 %v189
      %v327 = vunpack.c.l.b16 %v190
      %v328 = vunpack.c.l.b16 %v191
      %v329 = vunpack.c.l.b16 %v192
      %v330 = vunpack.c.l.b16 %v193
      %v331 = vunpack.c.l.b16 %v194
      %v332 = vunpack.c.l.b16 %v195
      %v333 = vunpack.c.l.b16 %v196
      %v334 = vunpack.c.l.b16 %v197
      %v335 = vunpack.c.l.b16 %v198
      %v336 = vunpack.c.l.b16 %v199
      %v337 = vunpack.c.l.b16 %v200
      %v338 = vunpack.c.l.b16 %v201
      %v339 = vunpack.c.l.b16 %v202
      %v340 = vunpack.c.l.b16 %v203
      %v341 = vunpack.c.l.b16 %v204
      %v342 = vunpack.c.l.b16 %v205
      %v343 = vunpack.c.l.b16 %v206
      %v344 = vunpack.c.l.b16 %v207
      %v345 = vunpack.c.l.b16 %v208
      %v346 = vunpack.c.l.b16 %v209
      %v347 = vunpack.c.l.b16 %v210
      %v348 = vunpack.c.l.b16 %v211
      %v349 = vunpack.c.l.b16 %v212
      %v350 = vunpack.c.l.b16 %v213
      %v351 = vunpack.c.l.b16 %v214
      %v352 = vunpack.c.l.b16 %v215
      %v353 = vunpack.c.l.b16 %v216
      %v354 = vunpack.c.l.b16 %v217
      %v355 = vunpack.c.l.b16 %v218
      %v356 = vunpack.c.l.b16 %v219
      %v357 = vunpack.c.l.b16 %v220
      %v358 = vunpack.c.l.b16 %v221
      %v359 = vunpack.c.l.b16 %v222
      %v360 = vunpack.c.l.b16 %v223
      %v361 = vunpack.c.l.b16 %v224
      %v362 = vunpack.c.l.b16 %v225
      %v363 = vunpack.c.l.b16 %v226
      %v364 = vunpack.c.l.b16 %v227
      %v365 = vunpack.c.l.b16 %v228
      %v366 = vunpack.c.l.b16 %v229
      %v367 = vunpack.c.l.b16 %v230
      %v368 = vunpack.c.l.b16 %v231
      %v369 = vunpack.c.l.b16 %v232
      %v370 = vunpack.c.l.b16 %v233
      %v371 = vunpack.c.l.b16 %v234
      %v372 = vunpack.c.l.b16 %v235
      %v373 = vunpack.c.l.b16 %v236
      %v374 = vunpack.c.l.b16 %v237
      %v375 = vunpack.c.l.b16 %v238
      %v376 = vpack.c.b16 %v313, %v312
      %v377 = vpack.c.b16 %v315, %v314
      %v378 = vpack.c.b16 %v317, %v316
      %v379 = vpack.c.b16 %v319, %v318
      %v380 = vpack.c.b16 %v321, %v320
      %v381 = vpack.c.b16 %v323, %v322
      %v382 = vpack.c.b16 %v325, %v324
      %v383 = vpack.c.b16 %v327, %v326
      %v384 = vpack.c.b16 %v329, %v328
      %v385 = vpack.c.b16 %v331, %v330
      %v386 = vpack.c.b16 %v333, %v332
      %v387 = vpack.c.b16 %v335, %v334
      %v388 = vpack.c.b16 %v337, %v336
      %v389 = vpack.c.b16 %v339, %v338
      %v390 = vpack.c.b16 %v341, %v340
      %v391 = vpack.c.b16 %v343, %v342
      %v392 = vpack.c.b16 %v345, %v344
      %v393 = vpack.c.b16 %v347, %v346
      %v394 = vpack.c.b16 %v349, %v348
      %v395 = vpack.c.b16 %v351, %v350
      %v396 = vpack.c.b16 %v353, %v352
      %v397 = vpack.c.b16 %v355, %v354
      %v398 = vpack.c.b16 %v357, %v356
      %v399 = vpack.c.b16 %v359, %v358
      %v400 = vpack.c.b16 %v361, %v360
      %v401 = vpack.c.b16 %v363, %v362
      %v402 = vpack.c.b16 %v365, %v364
      %v403 = vpack.c.b16 %v367, %v366
      %v404 = vpack.c.b16 %v369, %v368
      %v405 = vpack.c.b16 %v371, %v370
      %v406 = vpack.c.b16 %v373, %v372
      %v407 = vpack.c.b16 %v375, %v374
      %v410 = vunpack.c.l.b16 %v239
      %v411 = vunpack.c.l.b16 %v240
      %v412 = vpack.c.b16 %v411, %v410
      %vm413 = vcmask 72704
      %v415 = vsel %vm413, %v376, 0
      %v418 = vsel %vm413, %v377, 0
      %v421 = vsel %vm413, %v378, 0
      %v424 = vsel %vm413, %v379, 0
      %v427 = vsel %vm413, %v380, 0
      %v430 = vsel %vm413, %v381, 0
      %v433 = vsel %vm413, %v382, 0
      %v436 = vsel %vm413, %v383, 0
      %v439 = vsel %vm413, %v384, 0
      %v442 = vsel %vm413, %v385, 0
      %v445 = vsel %vm413, %v386, 0
      %v448 = vsel %vm413, %v387, 0
      %v451 = vsel %vm413, %v388, 0
      %v454 = vsel %vm413, %v389, 0
      %v457 = vsel %vm413, %v390, 0
      %v460 = vsel %vm413, %v391, 0
      %v463 = vsel %vm413, %v392, 0
      %v466 = vsel %vm413, %v393, 0
      %v469 = vsel %vm413, %v394, 0
      %v472 = vsel %vm413, %v395, 0
      %v475 = vsel %vm413, %v396, 0
      %v478 = vsel %vm413, %v397, 0
      %v481 = vsel %vm413, %v398, 0
      %v484 = vsel %vm413, %v399, 0
      %v487 = vsel %vm413, %v400, 0
      %v490 = vsel %vm413, %v401, 0
      %v493 = vsel %vm413, %v402, 0
      %v496 = vsel %vm413, %v403, 0
      %v499 = vsel %vm413, %v404, 0
      %v502 = vsel %vm413, %v405, 0
      %v505 = vsel %vm413, %v406, 0
      %v508 = vsel %vm413, %v407, 0
      %vm510 = vcmask 1043456
      %vm511 = vcmask 1044480
      %v512 = vsel %vm510, 4294967295, 65535
      %v513 = vsel %vm511, %v512, 0
      %v515 = vand.u32 %v412, %v513
      %517 = vmatprep.subr.bf16.mxu0 0
      %518 = vmatpush1.bf16.msra.mxu0 %v515
      %519 = vmatprep.subr.bf16.mxu0 0
      %520 = vmatpush1.bf16.msra.mxu0 0
      %521 = vmatprep.subr.bf16.mxu0 0
      %522 = vmatpush1.bf16.msra.mxu0 0
      %523 = vmatprep.subr.bf16.mxu0 0
      %524 = vmatpush1.bf16.msra.mxu0 0
      %525 = vmatprep.subr.bf16.mxu0 0
      %526 = vmatpush1.bf16.msra.mxu0 0
      %527 = vmatprep.subr.bf16.mxu0 0
      %528 = vmatpush1.bf16.msra.mxu0 0
      %529 = vmatprep.subr.bf16.mxu0 0
      %530 = vmatpush1.bf16.msra.mxu0 0
      %531 = vmatprep.subr.bf16.mxu0 0
      %532 = vmatpush1.bf16.msra.mxu0 0
      %533 = vmatprep.subr.bf16.mxu0 0
      %534 = vmatpush1.bf16.msra.mxu0 0
      %535 = vmatprep.subr.bf16.mxu0 0
      %536 = vmatpush1.bf16.msra.mxu0 0
      %537 = vmatprep.subr.bf16.mxu0 0
      %538 = vmatpush1.bf16.msra.mxu0 0
      %539 = vmatprep.subr.bf16.mxu0 0
      %540 = vmatpush1.bf16.msra.mxu0 0
      %541 = vmatprep.subr.bf16.mxu0 0
      %542 = vmatpush1.bf16.msra.mxu0 0
      %543 = vmatprep.subr.bf16.mxu0 0
      %544 = vmatpush1.bf16.msra.mxu0 0
      %545 = vmatprep.subr.bf16.mxu0 0
      %546 = vmatpush1.bf16.msra.mxu0 0
      %547 = vmatprep.subr.bf16.mxu0 0
      %548 = vmatpush1.bf16.msra.mxu0 0
      %549 = vmatprep.mubr.bf16.mxu0 0
      %550 = vmatmul.mubr.bf16.gmra.mrb[0].mxu0 %v415
      %v551 = vpop.f32.mrb[0].mxu0
      %v552 = vadd.f32 %v246, %v551
      %v553 = vpop.f32.mrb[0].mxu0
      %v554 = vpop.f32.mrb[0].mxu0
      %v555 = vadd.f32 %v246, %v554
      %v556 = vpop.f32.mrb[0].mxu0
      %557 = vmatprep.mubr.bf16.mxu0 0
      %558 = vmatmul.mubr.bf16.gmra.mrb[0].mxu0 %v418
      %v559 = vpop.f32.mrb[0].mxu0
      %v560 = vadd.f32 %v246, %v559
      %v561 = vpop.f32.mrb[0].mxu0
      %v562 = vpop.f32.mrb[0].mxu0
      %v563 = vadd.f32 %v246, %v562
      %v564 = vpop.f32.mrb[0].mxu0
      %565 = vmatprep.mubr.bf16.mxu0 0
      %566 = vmatmul.mubr.bf16.gmra.mrb[0].mxu0 %v421
      %v567 = vpop.f32.mrb[0].mxu0
      %v568 = vadd.f32 %v246, %v567
      %v569 = vpop.f32.mrb[0].mxu0
      %v570 = vpop.f32.mrb[0].mxu0
      %v571 = vadd.f32 %v246, %v570
      %v572 = vpop.f32.mrb[0].mxu0
      %573 = vmatprep.mubr.bf16.mxu0 0
      %574 = vmatmul.mubr.bf16.gmra.mrb[0].mxu0 %v424
      %v575 = vpop.f32.mrb[0].mxu0
      %v576 = vadd.f32 %v246, %v575
      %v577 = vpop.f32.mrb[0].mxu0
      %v578 = vpop.f32.mrb[0].mxu0
      %v579 = vadd.f32 %v246, %v578
      %v580 = vpop.f32.mrb[0].mxu0
      %581 = vmatprep.mubr.bf16.mxu0 0
      %582 = vmatmul.mubr.bf16.gmra.mrb[0].mxu0 %v427
      %v583 = vpop.f32.mrb[0].mxu0
      %v584 = vadd.f32 %v246, %v583
      %v585 = vpop.f32.mrb[0].mxu0
      %v586 = vpop.f32.mrb[0].mxu0
      %v587 = vadd.f32 %v246, %v586
      %v588 = vpop.f32.mrb[0].mxu0
      %589 = vmatprep.mubr.bf16.mxu0 0
      %590 = vmatmul.mubr.bf16.gmra.mrb[0].mxu0 %v430
      %v591 = vpop.f32.mrb[0].mxu0
      %v592 = vadd.f32 %v246, %v591
      %v593 = vpop.f32.mrb[0].mxu0
      %v594 = vpop.f32.mrb[0].mxu0
      %v595 = vadd.f32 %v246, %v594
      %v596 = vpop.f32.mrb[0].mxu0
      %597 = vmatprep.mubr.bf16.mxu0 0
      %598 = vmatmul.mubr.bf16.gmra.mrb[0].mxu0 %v433
      %v599 = vpop.f32.mrb[0].mxu0
      %v600 = vadd.f32 %v246, %v599
      %v601 = vpop.f32.mrb[0].mxu0
      %v602 = vpop.f32.mrb[0].mxu0
      %v603 = vadd.f32 %v246, %v602
      %v604 = vpop.f32.mrb[0].mxu0
      %605 = vmatprep.mubr.bf16.mxu0 0
      %606 = vmatmul.mubr.bf16.gmra.mrb[0].mxu0 %v436
      %v607 = vpop.f32.mrb[0].mxu0
      %v608 = vadd.f32 %v246, %v607
      %v609 = vpop.f32.mrb[0].mxu0
      %v610 = vpop.f32.mrb[0].mxu0
      %v611 = vadd.f32 %v246, %v610
      %v612 = vpop.f32.mrb[0].mxu0
      %613 = vmatprep.mubr.bf16.mxu0 0
      %614 = vmatmul.mubr.bf16.gmra.mrb[0].mxu0 %v439
      %v615 = vpop.f32.mrb[0].mxu0
      %v616 = vadd.f32 %v246, %v615
      %v617 = vpop.f32.mrb[0].mxu0
      %v618 = vpop.f32.mrb[0].mxu0
      %v619 = vadd.f32 %v246, %v618
      %v620 = vpop.f32.mrb[0].mxu0
      %621 = vmatprep.mubr.bf16.mxu0 0
      %622 = vmatmul.mubr.bf16.gmra.mrb[0].mxu0 %v442
      %v623 = vpop.f32.mrb[0].mxu0
      %v624 = vadd.f32 %v246, %v623
      %v625 = vpop.f32.mrb[0].mxu0
      %v626 = vpop.f32.mrb[0].mxu0
      %v627 = vadd.f32 %v246, %v626
      %v628 = vpop.f32.mrb[0].mxu0
      %629 = vmatprep.mubr.bf16.mxu0 0
      %630 = vmatmul.mubr.bf16.gmra.mrb[0].mxu0 %v445
      %v631 = vpop.f32.mrb[0].mxu0
      %v632 = vadd.f32 %v246, %v631
      %v633 = vpop.f32.mrb[0].mxu0
      %v634 = vpop.f32.mrb[0].mxu0
      %v635 = vadd.f32 %v246, %v634
      %v636 = vpop.f32.mrb[0].mxu0
      %637 = vmatprep.mubr.bf16.mxu0 0
      %638 = vmatmul.mubr.bf16.gmra.mrb[0].mxu0 %v448
      %v639 = vpop.f32.mrb[0].mxu0
      %v640 = vadd.f32 %v246, %v639
      %v641 = vpop.f32.mrb[0].mxu0
      %v642 = vpop.f32.mrb[0].mxu0
      %v643 = vadd.f32 %v246, %v642
      %v644 = vpop.f32.mrb[0].mxu0
      %645 = vmatprep.mubr.bf16.mxu0 0
      %646 = vmatmul.mubr.bf16.gmra.mrb[0].mxu0 %v451
      %v647 = vpop.f32.mrb[0].mxu0
      %v648 = vadd.f32 %v246, %v647
      %v649 = vpop.f32.mrb[0].mxu0
      %v650 = vpop.f32.mrb[0].mxu0
      %v651 = vadd.f32 %v246, %v650
      %v652 = vpop.f32.mrb[0].mxu0
      %653 = vmatprep.mubr.bf16.mxu0 0
      %654 = vmatmul.mubr.bf16.gmra.mrb[0].mxu0 %v454
      %v655 = vpop.f32.mrb[0].mxu0
      %v656 = vadd.f32 %v246, %v655
      %v657 = vpop.f32.mrb[0].mxu0
      %v658 = vpop.f32.mrb[0].mxu0
      %v659 = vadd.f32 %v246, %v658
      %v660 = vpop.f32.mrb[0].mxu0
      %661 = vmatprep.mubr.bf16.mxu0 0
      %662 = vmatmul.mubr.bf16.gmra.mrb[0].mxu0 %v457
      %v663 = vpop.f32.mrb[0].mxu0
      %v664 = vadd.f32 %v246, %v663
      %v665 = vpop.f32.mrb[0].mxu0
      %v666 = vpop.f32.mrb[0].mxu0
      %v667 = vadd.f32 %v246, %v666
      %v668 = vpop.f32.mrb[0].mxu0
      %669 = vmatprep.mubr.bf16.mxu0 0
      %670 = vmatmul.mubr.bf16.gmra.mrb[0].mxu0 %v460
      %v671 = vpop.f32.mrb[0].mxu0
      %v672 = vadd.f32 %v246, %v671
      %v673 = vpop.f32.mrb[0].mxu0
      %v674 = vpop.f32.mrb[0].mxu0
      %v675 = vadd.f32 %v246, %v674
      %v676 = vpop.f32.mrb[0].mxu0
      %677 = vmatprep.mubr.bf16.mxu0 0
      %678 = vmatmul.mubr.bf16.gmra.mrb[0].mxu0 %v463
      %v679 = vpop.f32.mrb[0].mxu0
      %v680 = vadd.f32 %v246, %v679
      %v681 = vpop.f32.mrb[0].mxu0
      %v682 = vpop.f32.mrb[0].mxu0
      %v683 = vadd.f32 %v246, %v682
      %v684 = vpop.f32.mrb[0].mxu0
      %685 = vmatprep.mubr.bf16.mxu0 0
      %686 = vmatmul.mubr.bf16.gmra.mrb[0].mxu0 %v466
      %v687 = vpop.f32.mrb[0].mxu0
      %v688 = vadd.f32 %v246, %v687
      %v689 = vpop.f32.mrb[0].mxu0
      %v690 = vpop.f32.mrb[0].mxu0
      %v691 = vadd.f32 %v246, %v690
      %v692 = vpop.f32.mrb[0].mxu0
      %693 = vmatprep.mubr.bf16.mxu0 0
      %694 = vmatmul.mubr.bf16.gmra.mrb[0].mxu0 %v469
      %v695 = vpop.f32.mrb[0].mxu0
      %v696 = vadd.f32 %v246, %v695
      %v697 = vpop.f32.mrb[0].mxu0
      %v698 = vpop.f32.mrb[0].mxu0
      %v699 = vadd.f32 %v246, %v698
      %v700 = vpop.f32.mrb[0].mxu0
      %701 = vmatprep.mubr.bf16.mxu0 0
      %702 = vmatmul.mubr.bf16.gmra.mrb[0].mxu0 %v472
      %v703 = vpop.f32.mrb[0].mxu0
      %v704 = vadd.f32 %v246, %v703
      %v705 = vpop.f32.mrb[0].mxu0
      %v706 = vpop.f32.mrb[0].mxu0
      %v707 = vadd.f32 %v246, %v706
      %v708 = vpop.f32.mrb[0].mxu0
      %709 = vmatprep.mubr.bf16.mxu0 0
      %710 = vmatmul.mubr.bf16.gmra.mrb[0].mxu0 %v475
      %v711 = vpop.f32.mrb[0].mxu0
      %v712 = vadd.f32 %v246, %v711
      %v713 = vpop.f32.mrb[0].mxu0
      %v714 = vpop.f32.mrb[0].mxu0
      %v715 = vadd.f32 %v246, %v714
      %v716 = vpop.f32.mrb[0].mxu0
      %717 = vmatprep.mubr.bf16.mxu0 0
      %718 = vmatmul.mubr.bf16.gmra.mrb[0].mxu0 %v478
      %v719 = vpop.f32.mrb[0].mxu0
      %v720 = vadd.f32 %v246, %v719
      %v721 = vpop.f32.mrb[0].mxu0
      %v722 = vpop.f32.mrb[0].mxu0
      %v723 = vadd.f32 %v246, %v722
      %v724 = vpop.f32.mrb[0].mxu0
      %725 = vmatprep.mubr.bf16.mxu0 0
      %726 = vmatmul.mubr.bf16.gmra.mrb[0].mxu0 %v481
      %v727 = vpop.f32.mrb[0].mxu0
      %v728 = vadd.f32 %v246, %v727
      %v729 = vpop.f32.mrb[0].mxu0
      %v730 = vpop.f32.mrb[0].mxu0
      %v731 = vadd.f32 %v246, %v730
      %v732 = vpop.f32.mrb[0].mxu0
      %733 = vmatprep.mubr.bf16.mxu0 0
      %734 = vmatmul.mubr.bf16.gmra.mrb[0].mxu0 %v484
      %v735 = vpop.f32.mrb[0].mxu0
      %v736 = vadd.f32 %v246, %v735
      %v737 = vpop.f32.mrb[0].mxu0
      %v738 = vpop.f32.mrb[0].mxu0
      %v739 = vadd.f32 %v246, %v738
      %v740 = vpop.f32.mrb[0].mxu0
      %741 = vmatprep.mubr.bf16.mxu0 0
      %742 = vmatmul.mubr.bf16.gmra.mrb[0].mxu0 %v487
      %v743 = vpop.f32.mrb[0].mxu0
      %v744 = vadd.f32 %v246, %v743
      %v745 = vpop.f32.mrb[0].mxu0
      %v746 = vpop.f32.mrb[0].mxu0
      %v747 = vadd.f32 %v246, %v746
      %v748 = vpop.f32.mrb[0].mxu0
      %749 = vmatprep.mubr.bf16.mxu0 0
      %750 = vmatmul.mubr.bf16.gmra.mrb[0].mxu0 %v490
      %v751 = vpop.f32.mrb[0].mxu0
      %v752 = vadd.f32 %v246, %v751
      %v753 = vpop.f32.mrb[0].mxu0
      %v754 = vpop.f32.mrb[0].mxu0
      %v755 = vadd.f32 %v246, %v754
      %v756 = vpop.f32.mrb[0].mxu0
      %757 = vmatprep.mubr.bf16.mxu0 0
      %758 = vmatmul.mubr.bf16.gmra.mrb[0].mxu0 %v493
      %v759 = vpop.f32.mrb[0].mxu0
      %v760 = vadd.f32 %v246, %v759
      %v761 = vpop.f32.mrb[0].mxu0
      %v762 = vpop.f32.mrb[0].mxu0
      %v763 = vadd.f32 %v246, %v762
      %v764 = vpop.f32.mrb[0].mxu0
      %765 = vmatprep.mubr.bf16.mxu0 0
      %766 = vmatmul.mubr.bf16.gmra.mrb[0].mxu0 %v496
      %v767 = vpop.f32.mrb[0].mxu0
      %v768 = vadd.f32 %v246, %v767
      %v769 = vpop.f32.mrb[0].mxu0
      %v770 = vpop.f32.mrb[0].mxu0
      %v771 = vadd.f32 %v246, %v770
      %v772 = vpop.f32.mrb[0].mxu0
      %773 = vmatprep.mubr.bf16.mxu0 0
      %774 = vmatmul.mubr.bf16.gmra.mrb[0].mxu0 %v499
      %v775 = vpop.f32.mrb[0].mxu0
      %v776 = vadd.f32 %v246, %v775
      %v777 = vpop.f32.mrb[0].mxu0
      %v778 = vpop.f32.mrb[0].mxu0
      %v779 = vadd.f32 %v246, %v778
      %v780 = vpop.f32.mrb[0].mxu0
      %781 = vmatprep.mubr.bf16.mxu0 0
      %782 = vmatmul.mubr.bf16.gmra.mrb[0].mxu0 %v502
      %v783 = vpop.f32.mrb[0].mxu0
      %v784 = vadd.f32 %v246, %v783
      %v785 = vpop.f32.mrb[0].mxu0
      %v786 = vpop.f32.mrb[0].mxu0
      %v787 = vadd.f32 %v246, %v786
      %v788 = vpop.f32.mrb[0].mxu0
      %789 = vmatprep.mubr.bf16.mxu0 0
      %790 = vmatmul.mubr.bf16.gmra.mrb[0].mxu0 %v505
      %v791 = vpop.f32.mrb[0].mxu0
      %v792 = vadd.f32 %v246, %v791
      %v793 = vpop.f32.mrb[0].mxu0
      %v794 = vpop.f32.mrb[0].mxu0
      %v795 = vadd.f32 %v246, %v794
      %v796 = vpop.f32.mrb[0].mxu0
      %797 = vmatprep.mubr.bf16.mxu0 0
      %798 = vmatmul.mubr.bf16.gmra.mrb[0].mxu0 %v508
      %v799 = vpop.f32.mrb[0].mxu0
      %v800 = vadd.f32 %v246, %v799
      %v801 = vpop.f32.mrb[0].mxu0
      %v802 = vpop.f32.mrb[0].mxu0
      %v803 = vadd.f32 %v246, %v802
      %v804 = vpop.f32.mrb[0].mxu0
      %805 = vdwg.mxu0
      %v806 = vmax.f32 %v552, 0.0
      %v807 = vmax.f32 %v555, 0.0
      %v808 = vmax.f32 %v560, 0.0
      %v809 = vmax.f32 %v563, 0.0
      %v810 = vmax.f32 %v568, 0.0
      %v811 = vmax.f32 %v571, 0.0
      %v812 = vmax.f32 %v576, 0.0
      %v813 = vmax.f32 %v579, 0.0
      %v814 = vmax.f32 %v584, 0.0
      %v815 = vmax.f32 %v587, 0.0
      %v816 = vmax.f32 %v592, 0.0
      %v817 = vmax.f32 %v595, 0.0
      %v818 = vmax.f32 %v600, 0.0
      %v819 = vmax.f32 %v603, 0.0
      %v820 = vmax.f32 %v608, 0.0
      %v821 = vmax.f32 %v611, 0.0
      %v822 = vmax.f32 %v616, 0.0
      %v823 = vmax.f32 %v619, 0.0
      %v824 = vmax.f32 %v624, 0.0
      %v825 = vmax.f32 %v627, 0.0
      %v826 = vmax.f32 %v632, 0.0
      %v827 = vmax.f32 %v635, 0.0
      %v828 = vmax.f32 %v640, 0.0
      %v829 = vmax.f32 %v643, 0.0
      %v830 = vmax.f32 %v648, 0.0
      %v831 = vmax.f32 %v651, 0.0
      %v832 = vmax.f32 %v656, 0.0
      %v833 = vmax.f32 %v659, 0.0
      %v834 = vmax.f32 %v664, 0.0
      %v835 = vmax.f32 %v667, 0.0
      %v836 = vmax.f32 %v672, 0.0
      %v837 = vmax.f32 %v675, 0.0
      %v838 = vmax.f32 %v680, 0.0
      %v839 = vmax.f32 %v683, 0.0
      %v840 = vmax.f32 %v688, 0.0
      %v841 = vmax.f32 %v691, 0.0
      %v842 = vmax.f32 %v696, 0.0
      %v843 = vmax.f32 %v699, 0.0
      %v844 = vmax.f32 %v704, 0.0
      %v845 = vmax.f32 %v707, 0.0
      %v846 = vmax.f32 %v712, 0.0
      %v847 = vmax.f32 %v715, 0.0
      %v848 = vmax.f32 %v720, 0.0
      %v849 = vmax.f32 %v723, 0.0
      %v850 = vmax.f32 %v728, 0.0
      %v851 = vmax.f32 %v731, 0.0
      %v852 = vmax.f32 %v736, 0.0
      %v853 = vmax.f32 %v739, 0.0
      %v854 = vmax.f32 %v744, 0.0
      %v855 = vmax.f32 %v747, 0.0
      %v856 = vmax.f32 %v752, 0.0
      %v857 = vmax.f32 %v755, 0.0
      %v858 = vmax.f32 %v760, 0.0
      %v859 = vmax.f32 %v763, 0.0
      %v860 = vmax.f32 %v768, 0.0
      %v861 = vmax.f32 %v771, 0.0
      %v862 = vmax.f32 %v776, 0.0
      %v863 = vmax.f32 %v779, 0.0
      %v864 = vmax.f32 %v784, 0.0
      %v865 = vmax.f32 %v787, 0.0
      %v866 = vmax.f32 %v792, 0.0
      %v867 = vmax.f32 %v795, 0.0
      %v868 = vmax.f32 %v800, 0.0
      %v869 = vmax.f32 %v803, 0.0
      %v870 = vpack.c.bf16 %v807, %v806
      %v871 = vpack.c.bf16 %v809, %v808
      %v872 = vpack.c.bf16 %v811, %v810
      %v873 = vpack.c.bf16 %v813, %v812
      %v874 = vpack.c.bf16 %v815, %v814
      %v875 = vpack.c.bf16 %v817, %v816
      %v876 = vpack.c.bf16 %v819, %v818
      %v877 = vpack.c.bf16 %v821, %v820
      %v878 = vpack.c.bf16 %v823, %v822
      %v879 = vpack.c.bf16 %v825, %v824
      %v880 = vpack.c.bf16 %v827, %v826
      %v881 = vpack.c.bf16 %v829, %v828
      %v882 = vpack.c.bf16 %v831, %v830
      %v883 = vpack.c.bf16 %v833, %v832
      %v884 = vpack.c.bf16 %v835, %v834
      %v885 = vpack.c.bf16 %v837, %v836
      %v886 = vpack.c.bf16 %v839, %v838
      %v887 = vpack.c.bf16 %v841, %v840
      %v888 = vpack.c.bf16 %v843, %v842
      %v889 = vpack.c.bf16 %v845, %v844
      %v890 = vpack.c.bf16 %v847, %v846
      %v891 = vpack.c.bf16 %v849, %v848
      %v892 = vpack.c.bf16 %v851, %v850
      %v893 = vpack.c.bf16 %v853, %v852
      %v894 = vpack.c.bf16 %v855, %v854
      %v895 = vpack.c.bf16 %v857, %v856
      %v896 = vpack.c.bf16 %v859, %v858
      %v897 = vpack.c.bf16 %v861, %v860
      %v898 = vpack.c.bf16 %v863, %v862
      %v899 = vpack.c.bf16 %v865, %v864
      %v900 = vpack.c.bf16 %v867, %v866
      %v901 = vpack.c.bf16 %v869, %v868
      %v934 = vunpack.c.l.b16 %v870
      %v935 = vunpack.c.h.b16 %v870
      %v936 = vunpack.c.l.b16 %v871
      %v937 = vunpack.c.h.b16 %v871
      %v938 = vunpack.c.l.b16 %v872
      %v939 = vunpack.c.h.b16 %v872
      %v940 = vunpack.c.l.b16 %v873
      %v941 = vunpack.c.h.b16 %v873
      %v942 = vunpack.c.l.b16 %v874
      %v943 = vunpack.c.h.b16 %v874
      %v944 = vunpack.c.l.b16 %v875
      %v945 = vunpack.c.h.b16 %v875
      %v946 = vunpack.c.l.b16 %v876
      %v947 = vunpack.c.h.b16 %v876
      %v948 = vunpack.c.l.b16 %v877
      %v949 = vunpack.c.h.b16 %v877
      %v950 = vunpack.c.l.b16 %v878
      %v951 = vunpack.c.h.b16 %v878
      %v952 = vunpack.c.l.b16 %v879
      %v953 = vunpack.c.h.b16 %v879
      %v954 = vunpack.c.l.b16 %v880
      %v955 = vunpack.c.h.b16 %v880
      %v956 = vunpack.c.l.b16 %v881
      %v957 = vunpack.c.h.b16 %v881
      %v958 = vunpack.c.l.b16 %v882
      %v959 = vunpack.c.h.b16 %v882
      %v960 = vunpack.c.l.b16 %v883
      %v961 = vunpack.c.h.b16 %v883
      %v962 = vunpack.c.l.b16 %v884
      %v963 = vunpack.c.h.b16 %v884
      %v964 = vunpack.c.l.b16 %v885
      %v965 = vunpack.c.h.b16 %v885
      %v966 = vunpack.c.l.b16 %v886
      %v967 = vunpack.c.h.b16 %v886
      %v968 = vunpack.c.l.b16 %v887
      %v969 = vunpack.c.h.b16 %v887
      %v970 = vunpack.c.l.b16 %v888
      %v971 = vunpack.c.h.b16 %v888
      %v972 = vunpack.c.l.b16 %v889
      %v973 = vunpack.c.h.b16 %v889
      %v974 = vunpack.c.l.b16 %v890
      %v975 = vunpack.c.h.b16 %v890
      %v976 = vunpack.c.l.b16 %v891
      %v977 = vunpack.c.h.b16 %v891
      %v978 = vunpack.c.l.b16 %v892
      %v979 = vunpack.c.h.b16 %v892
      %v980 = vunpack.c.l.b16 %v893
      %v981 = vunpack.c.h.b16 %v893
      %v982 = vunpack.c.l.b16 %v894
      %v983 = vunpack.c.h.b16 %v894
      %v984 = vunpack.c.l.b16 %v895
      %v985 = vunpack.c.h.b16 %v895
      %v986 = vunpack.c.l.b16 %v896
      %v987 = vunpack.c.h.b16 %v896
      %v988 = vunpack.c.l.b16 %v897
      %v989 = vunpack.c.h.b16 %v897
      %v990 = vunpack.c.l.b16 %v898
      %v991 = vunpack.c.h.b16 %v898
      %v992 = vunpack.c.l.b16 %v899
      %v993 = vunpack.c.h.b16 %v899
      %v994 = vunpack.c.l.b16 %v900
      %v995 = vunpack.c.h.b16 %v900
      %v996 = vunpack.c.l.b16 %v901
      %v997 = vunpack.c.h.b16 %v901
      %v998 = vpack.c.b16 %v934, %v934
      %v999 = vpack.c.b16 %v935, %v935
      %v1000 = vpack.c.b16 %v936, %v936
      %v1001 = vpack.c.b16 %v937, %v937
      %v1002 = vpack.c.b16 %v938, %v938
      %v1003 = vpack.c.b16 %v939, %v939
      %v1004 = vpack.c.b16 %v940, %v940
      %v1005 = vpack.c.b16 %v941, %v941
      %v1006 = vpack.c.b16 %v942, %v942
      %v1007 = vpack.c.b16 %v943, %v943
      %v1008 = vpack.c.b16 %v944, %v944
      %v1009 = vpack.c.b16 %v945, %v945
      %v1010 = vpack.c.b16 %v946, %v946
      %v1011 = vpack.c.b16 %v947, %v947
      %v1012 = vpack.c.b16 %v948, %v948
      %v1013 = vpack.c.b16 %v949, %v949
      %v1014 = vpack.c.b16 %v950, %v950
      %v1015 = vpack.c.b16 %v951, %v951
      %v1016 = vpack.c.b16 %v952, %v952
      %v1017 = vpack.c.b16 %v953, %v953
      %v1018 = vpack.c.b16 %v954, %v954
      %v1019 = vpack.c.b16 %v955, %v955
      %v1020 = vpack.c.b16 %v956, %v956
      %v1021 = vpack.c.b16 %v957, %v957
      %v1022 = vpack.c.b16 %v958, %v958
      %v1023 = vpack.c.b16 %v959, %v959
      %v1024 = vpack.c.b16 %v960, %v960
      %v1025 = vpack.c.b16 %v961, %v961
      %v1026 = vpack.c.b16 %v962, %v962
      %v1027 = vpack.c.b16 %v963, %v963
      %v1028 = vpack.c.b16 %v964, %v964
      %v1029 = vpack.c.b16 %v965, %v965
      %v1030 = vpack.c.b16 %v966, %v966
      %v1031 = vpack.c.b16 %v967, %v967
      %v1032 = vpack.c.b16 %v968, %v968
      %v1033 = vpack.c.b16 %v969, %v969
      %v1034 = vpack.c.b16 %v970, %v970
      %v1035 = vpack.c.b16 %v971, %v971
      %v1036 = vpack.c.b16 %v972, %v972
      %v1037 = vpack.c.b16 %v973, %v973
      %v1038 = vpack.c.b16 %v974, %v974
      %v1039 = vpack.c.b16 %v975, %v975
      %v1040 = vpack.c.b16 %v976, %v976
      %v1041 = vpack.c.b16 %v977, %v977
      %v1042 = vpack.c.b16 %v978, %v978
      %v1043 = vpack.c.b16 %v979, %v979
      %v1044 = vpack.c.b16 %v980, %v980
      %v1045 = vpack.c.b16 %v981, %v981
      %v1046 = vpack.c.b16 %v982, %v982
      %v1047 = vpack.c.b16 %v983, %v983
      %v1048 = vpack.c.b16 %v984, %v984
      %v1049 = vpack.c.b16 %v985, %v985
      %v1050 = vpack.c.b16 %v986, %v986
      %v1051 = vpack.c.b16 %v987, %v987
      %v1052 = vpack.c.b16 %v988, %v988
      %v1053 = vpack.c.b16 %v989, %v989
      %v1054 = vpack.c.b16 %v990, %v990
      %v1055 = vpack.c.b16 %v991, %v991
      %v1056 = vpack.c.b16 %v992, %v992
      %v1057 = vpack.c.b16 %v993, %v993
      %v1058 = vpack.c.b16 %v994, %v994
      %v1059 = vpack.c.b16 %v995, %v995
      %v1060 = vpack.c.b16 %v996, %v996
      %v1061 = vpack.c.b16 %v997, %v997
      %1126 = vst [vmem:[%s172] sm:$0xf] %v998
      %1127 = vst [vmem:[%s172 + $0x4] sm:$0xf] %v999
      %1128 = vst [vmem:[%s172 + $0x8] sm:$0xf] %v1000
      %1129 = vst [vmem:[%s172 + $0xc] sm:$0xf] %v1001
      %1130 = vst [vmem:[%s172 + $0x10] sm:$0xf] %v1002
      %1131 = vst [vmem:[%s172 + $0x14] sm:$0xf] %v1003
      %1132 = vst [vmem:[%s172 + $0x18] sm:$0xf] %v1004
      %1133 = vst [vmem:[%s172 + $0x1c] sm:$0xf] %v1005
      %1134 = vst [vmem:[%s172 + $0x20] sm:$0xf] %v1006
      %1135 = vst [vmem:[%s172 + $0x24] sm:$0xf] %v1007
      %1136 = vst [vmem:[%s172 + $0x28] sm:$0xf] %v1008
      %1137 = vst [vmem:[%s172 + $0x2c] sm:$0xf] %v1009
      %1138 = vst [vmem:[%s172 + $0x30] sm:$0xf] %v1010
      %1139 = vst [vmem:[%s172 + $0x34] sm:$0xf] %v1011
      %1140 = vst [vmem:[%s172 + $0x38] sm:$0xf] %v1012
      %1141 = vst [vmem:[%s172 + $0x3c] sm:$0xf] %v1013
      %1142 = vst [vmem:[%s172 + $0x40] sm:$0xf] %v1014
      %1143 = vst [vmem:[%s172 + $0x44] sm:$0xf] %v1015
      %1144 = vst [vmem:[%s172 + $0x48] sm:$0xf] %v1016
      %1145 = vst [vmem:[%s172 + $0x4c] sm:$0xf] %v1017
      %1146 = vst [vmem:[%s172 + $0x50] sm:$0xf] %v1018
      %1147 = vst [vmem:[%s172 + $0x54] sm:$0xf] %v1019
      %1148 = vst [vmem:[%s172 + $0x58] sm:$0xf] %v1020
      %1149 = vst [vmem:[%s172 + $0x5c] sm:$0xf] %v1021
      %1150 = vst [vmem:[%s172 + $0x60] sm:$0xf] %v1022
      %1151 = vst [vmem:[%s172 + $0x64] sm:$0xf] %v1023
      %1152 = vst [vmem:[%s172 + $0x68] sm:$0xf] %v1024
      %1153 = vst [vmem:[%s172 + $0x6c] sm:$0xf] %v1025
      %1154 = vst [vmem:[%s172 + $0x70] sm:$0xf] %v1026
      %1155 = vst [vmem:[%s172 + $0x74] sm:$0xf] %v1027
      %1156 = vst [vmem:[%s172 + $0x78] sm:$0xf] %v1028
      %1157 = vst [vmem:[%s172 + $0x7c] sm:$0xf] %v1029
      %1158 = vst [vmem:[%s172 + $0x80] sm:$0xf] %v1030
      %1159 = vst [vmem:[%s172 + $0x84] sm:$0xf] %v1031
      %1160 = vst [vmem:[%s172 + $0x88] sm:$0xf] %v1032
      %1161 = vst [vmem:[%s172 + $0x8c] sm:$0xf] %v1033
      %1162 = vst [vmem:[%s172 + $0x90] sm:$0xf] %v1034
      %1163 = vst [vmem:[%s172 + $0x94] sm:$0xf] %v1035
      %1164 = vst [vmem:[%s172 + $0x98] sm:$0xf] %v1036
      %1165 = vst [vmem:[%s172 + $0x9c] sm:$0xf] %v1037
      %1166 = vst [vmem:[%s172 + $0xa0] sm:$0xf] %v1038
      %1167 = vst [vmem:[%s172 + $0xa4] sm:$0xf] %v1039
      %1168 = vst [vmem:[%s172 + $0xa8] sm:$0xf] %v1040
      %1169 = vst [vmem:[%s172 + $0xac] sm:$0xf] %v1041
      %1170 = vst [vmem:[%s172 + $0xb0] sm:$0xf] %v1042
      %1171 = vst [vmem:[%s172 + $0xb4] sm:$0xf] %v1043
      %1172 = vst [vmem:[%s172 + $0xb8] sm:$0xf] %v1044
      %1173 = vst [vmem:[%s172 + $0xbc] sm:$0xf] %v1045
      %1174 = vst [vmem:[%s172 + $0xc0] sm:$0xf] %v1046
      %1175 = vst [vmem:[%s172 + $0xc4] sm:$0xf] %v1047
      %1176 = vst [vmem:[%s172 + $0xc8] sm:$0xf] %v1048
      %1177 = vst [vmem:[%s172 + $0xcc] sm:$0xf] %v1049
      %1178 = vst [vmem:[%s172 + $0xd0] sm:$0xf] %v1050
      %1179 = vst [vmem:[%s172 + $0xd4] sm:$0xf] %v1051
      %1180 = vst [vmem:[%s172 + $0xd8] sm:$0xf] %v1052
      %1181 = vst [vmem:[%s172 + $0xdc] sm:$0xf] %v1053
      %1182 = vst [vmem:[%s172 + $0xe0] sm:$0xf] %v1054
      %1183 = vst [vmem:[%s172 + $0xe4] sm:$0xf] %v1055
      %1184 = vst [vmem:[%s172 + $0xe8] sm:$0xf] %v1056
      %1185 = vst [vmem:[%s172 + $0xec] sm:$0xf] %v1057
      %1186 = vst [vmem:[%s172 + $0xf0] sm:$0xf] %v1058
      %1187 = vst [vmem:[%s172 + $0xf4] sm:$0xf] %v1059
      %1188 = vst [vmem:[%s172 + $0xf8] sm:$0xf] %v1060
      %1189 = vst [vmem:[%s172 + $0xfc] sm:$0xf] %v1061
      %s1190 = smul.u32 64, %s14
      %p1191 = scmp.lt.s32.totalorder %s1190, 319
      %s1192 = scalar_select %p1191, %s1190, 319
      %s1193 = smul.addr %s1192, 4
      %s1194 = scalar_lea.vmem %s3, %s1193
      // Predicated region
      $region33: #{conv2d_subsampling_forward.3} parent=31 // pred_check
        %p1195 = pneg %p100
      $region34: #{conv2d_subsampling_forward.3} parent=31 // pred_check_branch
        %1197 = sbr.rel (%p1195) target = $region36
      $region35: #{conv2d_subsampling_forward.3} parent=31 // pred_region
        %s1198 = smul.u32 64, %s14
      $region36: #{conv2d_subsampling_forward.3} parent=31 // pred_fallthru
        _
    $region32: #{conv2d_subsampling_forward.3} parent=5 // pred_fallthru
      _
    %p1199 = scmp.le.s32.totalorder 2, %s9
    // Predicated region
    $region37: #{conv2d_subsampling_forward.3} parent=5 // pred_check
      %p1200 = pneg %p1199
    $region38: #{conv2d_subsampling_forward.3} parent=5 // pred_check_branch
      %1202 = sbr.rel (%p1200) target = $region40
    $region39: #{conv2d_subsampling_forward.3} parent=5 // pred_region
      %s1203 = ssub.s32 %s9, 2
      // Predicated region
      $region41: #{conv2d_subsampling_forward.3} parent=39 // pred_check
        %p1204 = pneg %p106
      $region42: #{conv2d_subsampling_forward.3} parent=39 // pred_check_branch
        %1206 = sbr.rel (%p1204) target = $region44
      $region43: #{conv2d_subsampling_forward.3} parent=39 // pred_region
        %s1207 = smul.u32 64, %s15
        %p1208 = scmp.lt.s32.totalorder %s1207, 319
        %s1209 = scalar_select %p1208, %s1207, 319
        %s1210 = smul.addr %s1209, 4
        %s1211 = scalar_lea.vmem %s3, %s1210
      $region44: #{conv2d_subsampling_forward.3} parent=39 // pred_fallthru
        _
    $region40: #{conv2d_subsampling_forward.3} parent=5 // pred_fallthru
      _
  $region6: #{conv2d_subsampling_forward.3} parent=0 // loop_footer
    %s13 = sadd.s32 1, %s9
  $region7: #{conv2d_subsampling_forward.3} parent=0 // loop_footer_branch
    %8 = sbr.rel target = $region3
  $region8: #{conv2d_subsampling_forward.3} parent=0 // loop_exit
    _

// kernel: conv2d_subsampling_forward.4
$region0: #{conv2d_subsampling_forward.4}
  #allocation0 [shape = 'u32[]', space=smem, size = 0x4, offset = 0x4, fixed_abs, tag = 'smem constant byte address 0x4 - core index']
  #allocation1 [shape = 'u32[144,128]{1,0:T(1,128)}', space=vmem, size = 0x12000, scoped, tag = 'internal scratch']
  %s0 = inlined_call_operand.vmem [shape: bf16[1024,576], index: 0, kind: input, shape index: {}]
  %s1 = inlined_call_operand.vmem [shape: bf16[576,128], index: 1, kind: input, shape index: {}]
  %s2 = inlined_call_operand.vmem [shape: f32[1,128], index: 2, kind: input, shape index: {}]
  %s3 = inlined_call_operand.vmem [shape: bf16[1024,128], index: 3, kind: output, shape index: {}]
  %s4 = sld [smem:[#allocation0]]
  $region45: #{conv2d_subsampling_forward.4} parent=0
    _
  %s6 = ssub.s32 1, %s4
  %s7 = scalar_select 0, %s6, %s4
  loop: start=0, step=1, limit=4
  $region2: #{conv2d_subsampling_forward.4} parent=0 // loop_pre_header
    _
  $region3: #{conv2d_subsampling_forward.4} parent=0 // loop_header
    %s9 = sphi 0, %s13
    %p10 = scmp.ge.s32.totalorder %s9, 4
    %s19 = sphi 0, %s21
    %s22 = sphi 0, %s19
    %s23 = sphi 0, %s22
    %s39 = sphi 0, %s23
    %s43 = sphi 0, %s43
    %s45 = sphi 0, %s43
    %s46 = sphi 0, %s45
    %s60 = sphi 0, %s46
    %s64 = sphi 0, %s64
    %s66 = sphi 0, %s64
    %s67 = sphi 0, %s66
    %s81 = sphi 0, %s67
    %s87 = sphi 0, %s89
    %s90 = sphi 0, %s87
    %s91 = sphi 0, %s90
    %s107 = sphi 0, %s91
  $region4: #{conv2d_subsampling_forward.4} parent=0 // loop_header_branch
    %12 = sbr.rel (%p10) target = $region8
  $region5: #{conv2d_subsampling_forward.4} parent=0 // loop_body
    %s14 = ssub.s32 %s9, 1
    %s15 = ssub.s32 %s9, 2
    %s16 = sadd.s32 %s9, 1
    %s17 = ssub.s32 %s9, %s16
    %p18 = scmp.eq.s32.totalorder %s17, 0
    %s20 = sadd.s32 %s19, 1
    %s21 = scalar_select %p18, %s19, %s20
    %p24 = pneg %p18
    %p25 = scmp.eq.s32.totalorder %s9, 1
    %p26 = por %p24, %p25
    %p27 = scmp.ne.s32.totalorder %s19, %s22
    %p28 = scmp.eq.s32.totalorder %s9, 0
    %p29 = por %p27, %p28
    %p30 = scmp.ne.s32.totalorder %s19, %s22
    %p31 = scmp.eq.s32.totalorder %s14, 1
    %p32 = por %p30, %p31
    %p33 = scmp.ne.s32.totalorder %s22, %s23
    %p34 = scmp.eq.s32.totalorder %s14, 0
    %p35 = por %p33, %p34
    %p36 = scmp.ne.s32.totalorder %s22, %s23
    %p37 = scmp.eq.s32.totalorder %s15, 1
    %p38 = por %p36, %p37
    %p40 = scmp.ne.s32.totalorder %s23, %s39
    %p41 = scmp.eq.s32.totalorder %s15, 0
    %p42 = por %p40, %p41
    %s44 = sadd.s32 %s43, 1
    %p47 = scmp.eq.s32.totalorder %s9, 1
    %p48 = scmp.ne.s32.totalorder %s43, %s45
    %p49 = scmp.eq.s32.totalorder %s9, 0
    %p50 = por %p48, %p49
    %p51 = scmp.ne.s32.totalorder %s43, %s45
    %p52 = scmp.eq.s32.totalorder %s14, 1
    %p53 = por %p51, %p52
    %p54 = scmp.ne.s32.totalorder %s45, %s46
    %p55 = scmp.eq.s32.totalorder %s14, 0
    %p56 = por %p54, %p55
    %p57 = scmp.ne.s32.totalorder %s45, %s46
    %p58 = scmp.eq.s32.totalorder %s15, 1
    %p59 = por %p57, %p58
    %p61 = scmp.ne.s32.totalorder %s46, %s60
    %p62 = scmp.eq.s32.totalorder %s15, 0
    %p63 = por %p61, %p62
    %s65 = sadd.s32 %s64, 1
    %p68 = scmp.eq.s32.totalorder %s9, 1
    %p69 = scmp.ne.s32.totalorder %s64, %s66
    %p70 = scmp.eq.s32.totalorder %s9, 0
    %p71 = por %p69, %p70
    %p72 = scmp.ne.s32.totalorder %s64, %s66
    %p73 = scmp.eq.s32.totalorder %s14, 1
    %p74 = por %p72, %p73
    %p75 = scmp.ne.s32.totalorder %s66, %s67
    %p76 = scmp.eq.s32.totalorder %s14, 0
    %p77 = por %p75, %p76
    %p78 = scmp.ne.s32.totalorder %s66, %s67
    %p79 = scmp.eq.s32.totalorder %s15, 1
    %p80 = por %p78, %p79
    %p82 = scmp.ne.s32.totalorder %s67, %s81
    %p83 = scmp.eq.s32.totalorder %s15, 0
    %p84 = por %p82, %p83
    %s85 = ssub.s32 %s9, %s16
    %p86 = scmp.eq.s32.totalorder %s85, 0
    %s88 = sadd.s32 %s87, 1
    %s89 = scalar_select %p86, %s87, %s88
    %p92 = pneg %p86
    %p93 = scmp.eq.s32.totalorder %s9, 1
    %p94 = por %p92, %p93
    %p95 = scmp.ne.s32.totalorder %s87, %s90
    %p96 = scmp.eq.s32.totalorder %s9, 0
    %p97 = por %p95, %p96
    %p98 = scmp.ne.s32.totalorder %s87, %s90
    %p99 = scmp.eq.s32.totalorder %s14, 1
    %p100 = por %p98, %p99
    %p101 = scmp.ne.s32.totalorder %s90, %s91
    %p102 = scmp.eq.s32.totalorder %s14, 0
    %p103 = por %p101, %p102
    %p104 = scmp.ne.s32.totalorder %s90, %s91
    %p105 = scmp.eq.s32.totalorder %s15, 1
    %p106 = por %p104, %p105
    %p108 = scmp.ne.s32.totalorder %s91, %s107
    %p109 = scmp.eq.s32.totalorder %s15, 0
    %p110 = por %p108, %p109
    %p111 = scmp.le.s32.totalorder 1, %s9
    %p112 = scmp.lt.s32.totalorder %s9, 3
    %p113 = pnand %p111, %p112
    %p114 = pneg %p113
    // Predicated region
    $region9: #{conv2d_subsampling_forward.4} parent=5 // pred_check
      _
    $region10: #{conv2d_subsampling_forward.4} parent=5 // pred_check_branch
      %116 = sbr.rel (%p113) target = $region12
    $region11: #{conv2d_subsampling_forward.4} parent=5 // pred_region
      %s117 = ssub.s32 %s9, 1
      // Predicated region
      $region13: #{conv2d_subsampling_forward.4} parent=11 // pred_check
        %p118 = pneg %p56
      $region14: #{conv2d_subsampling_forward.4} parent=11 // pred_check_branch
        %120 = sbr.rel (%p118) target = $region16
      $region15: #{conv2d_subsampling_forward.4} parent=11 // pred_region
        _
      $region16: #{conv2d_subsampling_forward.4} parent=11 // pred_fallthru
        _
      // Predicated region
      $region17: #{conv2d_subsampling_forward.4} parent=11 // pred_check
        %p121 = pneg %p77
      $region18: #{conv2d_subsampling_forward.4} parent=11 // pred_check_branch
        %123 = sbr.rel (%p121) target = $region20
      $region19: #{conv2d_subsampling_forward.4} parent=11 // pred_region
        _
      $region20: #{conv2d_subsampling_forward.4} parent=11 // pred_fallthru
        _
    $region12: #{conv2d_subsampling_forward.4} parent=5 // pred_fallthru
      _
    %p124 = scmp.lt.s32.totalorder %s9, 2
    // Predicated region
    $region21: #{conv2d_subsampling_forward.4} parent=5 // pred_check
      %p125 = pneg %p124
    $region22: #{conv2d_subsampling_forward.4} parent=5 // pred_check_branch
      %127 = sbr.rel (%p125) target = $region24
    $region23: #{conv2d_subsampling_forward.4} parent=5 // pred_region
      // Predicated region
      $region25: #{conv2d_subsampling_forward.4} parent=23 // pred_check
        %p128 = pneg %p29
      $region26: #{conv2d_subsampling_forward.4} parent=23 // pred_check_branch
        %130 = sbr.rel (%p128) target = $region28
      $region27: #{conv2d_subsampling_forward.4} parent=23 // pred_region
        %s131 = smul.u32 64, %s9
        %p132 = scmp.lt.s32.totalorder %s131, 127
        %s133 = scalar_select %p132, %s131, 127
        %s134 = smul.addr %s133, 5
        %s135 = smul.addr %s134, 4
        %s136 = scalar_lea.vmem %s0, %s135
        %s137 = smul.u32 64, %s9
      $region28: #{conv2d_subsampling_forward.4} parent=23 // pred_fallthru
        _
    $region24: #{conv2d_subsampling_forward.4} parent=5 // pred_fallthru
      _
    %p138 = scmp.le.s32.totalorder 1, %s9
    %p139 = scmp.lt.s32.totalorder %s9, 3
    %p140 = pnand %p138, %p139
    %p141 = pneg %p140
    // Predicated region
    $region29: #{conv2d_subsampling_forward.4} parent=5 // pred_check
      _
    $region30: #{conv2d_subsampling_forward.4} parent=5 // pred_check_branch
      %143 = sbr.rel (%p140) target = $region32
    $region31: #{conv2d_subsampling_forward.4} parent=5 // pred_region
      %s144 = ssub.s32 %s9, 1
      %s145 = smul.u32 64, %s14
      %p146 = scmp.lt.s32.totalorder %s145, 127
      %s147 = scalar_select %p146, %s145, 127
      %s148 = smul.addr %s147, 5
      %s149 = smul.addr %s148, 4
      %s150 = scalar_lea.vmem %s0, %s149
      %p151 = pneg %p35
      %p152 = pneg %p32
      %p153 = pneg %p56
      %p154 = pneg %p53
      %p155 = pneg %p77
      %p156 = pneg %p74
      %p157 = pneg %p103
      %p158 = pneg %p100
      %s159 = smul.u32 64, %s14
      %p160 = scmp.lt.s32.totalorder %s159, 127
      %s161 = scalar_select %p160, %s159, 127
      %s162 = smul.addr %s161, 4
      %s163 = scalar_lea.vmem %s3, %s162
      %s164 = smul.u32 64, %s14
      %p165 = scmp.lt.s32.totalorder %s164, 127
      %s166 = scalar_select %p165, %s164, 127
      %s167 = smul.addr %s166, 5
      %s168 = smul.addr %s167, 4
      %s169 = scalar_lea.vmem %s0, %s168
      %s170 = smul.u32 64, %s14
      %s171 = smul.u32 64, %s14
      %p172 = scmp.lt.s32.totalorder %s171, 127
      %s173 = scalar_select %p172, %s171, 127
      %s174 = smul.addr %s173, 4
      %s175 = scalar_lea.vmem %s3, %s174
      %s176 = smul.u32 64, %s14
      %v178 = vld [vmem:[%s169] sm:$0xff]
      %v179 = vld [vmem:[%s169 + $0x8] sm:$0xff]
      %v180 = vld [vmem:[%s169 + $0x10] sm:$0xf]
      %v181 = vld [vmem:[%s169 + $0x14] sm:$0xff]
      %v182 = vld [vmem:[%s169 + $0x1c] sm:$0xff]
      %v183 = vld [vmem:[%s169 + $0x24] sm:$0xf]
      %v184 = vld [vmem:[%s169 + $0x28] sm:$0xff]
      %v185 = vld [vmem:[%s169 + $0x30] sm:$0xff]
      %v186 = vld [vmem:[%s169 + $0x38] sm:$0xf]
      %v187 = vld [vmem:[%s169 + $0x3c] sm:$0xff]
      %v188 = vld [vmem:[%s169 + $0x44] sm:$0xff]
      %v189 = vld [vmem:[%s169 + $0x4c] sm:$0xf]
      %v190 = vld [vmem:[%s169 + $0x50] sm:$0xff]
      %v191 = vld [vmem:[%s169 + $0x58] sm:$0xff]
      %v192 = vld [vmem:[%s169 + $0x60] sm:$0xf]
      %v193 = vld [vmem:[%s169 + $0x64] sm:$0xff]
      %v194 = vld [vmem:[%s169 + $0x6c] sm:$0xff]
      %v195 = vld [vmem:[%s169 + $0x74] sm:$0xf]
      %v196 = vld [vmem:[%s169 + $0x78] sm:$0xff]
      %v197 = vld [vmem:[%s169 + $0x80] sm:$0xff]
      %v198 = vld [vmem:[%s169 + $0x88] sm:$0xf]
      %v199 = vld [vmem:[%s169 + $0x8c] sm:$0xff]
      %v200 = vld [vmem:[%s169 + $0x94] sm:$0xff]
      %v201 = vld [vmem:[%s169 + $0x9c] sm:$0xf]
      %v202 = vld [vmem:[%s169 + $0xa0] sm:$0xff]
      %v203 = vld [vmem:[%s169 + $0xa8] sm:$0xff]
      %v204 = vld [vmem:[%s169 + $0xb0] sm:$0xf]
      %v205 = vld [vmem:[%s169 + $0xb4] sm:$0xff]
      %v206 = vld [vmem:[%s169 + $0xbc] sm:$0xff]
      %v207 = vld [vmem:[%s169 + $0xc4] sm:$0xf]
      %v208 = vld [vmem:[%s169 + $0xc8] sm:$0xff]
      %v209 = vld [vmem:[%s169 + $0xd0] sm:$0xff]
      %v210 = vld [vmem:[%s169 + $0xd8] sm:$0xf]
      %v211 = vld [vmem:[%s169 + $0xdc] sm:$0xff]
      %v212 = vld [vmem:[%s169 + $0xe4] sm:$0xff]
      %v213 = vld [vmem:[%s169 + $0xec] sm:$0xf]
      %v214 = vld [vmem:[%s169 + $0xf0] sm:$0xff]
      %v215 = vld [vmem:[%s169 + $0xf8] sm:$0xff]
      %v216 = vld [vmem:[%s169 + $0x100] sm:$0xf]
      %v217 = vld [vmem:[%s169 + $0x104] sm:$0xff]
      %v218 = vld [vmem:[%s169 + $0x10c] sm:$0xff]
      %v219 = vld [vmem:[%s169 + $0x114] sm:$0xf]
      %v220 = vld [vmem:[%s169 + $0x118] sm:$0xff]
      %v221 = vld [vmem:[%s169 + $0x120] sm:$0xff]
      %v222 = vld [vmem:[%s169 + $0x128] sm:$0xf]
      %v223 = vld [vmem:[%s169 + $0x12c] sm:$0xff]
      %v224 = vld [vmem:[%s169 + $0x134] sm:$0xff]
      %v225 = vld [vmem:[%s169 + $0x13c] sm:$0xf]
      %v226 = vld [vmem:[%s169 + $0x140] sm:$0xff]
      %v227 = vld [vmem:[%s169 + $0x148] sm:$0xff]
      %v228 = vld [vmem:[%s169 + $0x150] sm:$0xf]
      %v229 = vld [vmem:[%s169 + $0x154] sm:$0xff]
      %v230 = vld [vmem:[%s169 + $0x15c] sm:$0xff]
      %v231 = vld [vmem:[%s169 + $0x164] sm:$0xf]
      %v232 = vld [vmem:[%s169 + $0x168] sm:$0xff]
      %v233 = vld [vmem:[%s169 + $0x170] sm:$0xff]
      %v234 = vld [vmem:[%s169 + $0x178] sm:$0xf]
      %v235 = vld [vmem:[%s169 + $0x17c] sm:$0xff]
      %v236 = vld [vmem:[%s169 + $0x184] sm:$0xff]
      %v237 = vld [vmem:[%s169 + $0x18c] sm:$0xf]
      %v238 = vld [vmem:[%s169 + $0x190] sm:$0xff]
      %v239 = vld [vmem:[%s169 + $0x198] sm:$0xff]
      %v240 = vld [vmem:[%s169 + $0x1a0] sm:$0xf]
      %v241 = vld [vmem:[%s169 + $0x1a4] sm:$0xff]
      %v242 = vld [vmem:[%s169 + $0x1ac] sm:$0xff]
      %v243 = vld [vmem:[%s169 + $0x1b4] sm:$0xf]
      %v244 = vld [vmem:[%s169 + $0x1b8] sm:$0xff]
      %v245 = vld [vmem:[%s169 + $0x1c0] sm:$0xff]
      %v246 = vld [vmem:[%s169 + $0x1c8] sm:$0xf]
      %v247 = vld [vmem:[%s169 + $0x1cc] sm:$0xff]
      %v248 = vld [vmem:[%s169 + $0x1d4] sm:$0xff]
      %v249 = vld [vmem:[%s169 + $0x1dc] sm:$0xf]
      %v250 = vld [vmem:[%s169 + $0x1e0] sm:$0xff]
      %v251 = vld [vmem:[%s169 + $0x1e8] sm:$0xff]
      %v252 = vld [vmem:[%s169 + $0x1f0] sm:$0xf]
      %v253 = vld [vmem:[%s169 + $0x1f4] sm:$0xff]
      %v254 = vld [vmem:[%s169 + $0x1fc] sm:$0xff]
      %v255 = vld [vmem:[%s169 + $0x204] sm:$0xf]
      %v256 = vld [vmem:[%s169 + $0x208] sm:$0xff]
      %v257 = vld [vmem:[%s169 + $0x210] sm:$0xff]
      %v258 = vld [vmem:[%s169 + $0x218] sm:$0xf]
      %v259 = vld [vmem:[%s169 + $0x21c] sm:$0xff]
      %v260 = vld [vmem:[%s169 + $0x224] sm:$0xff]
      %v261 = vld [vmem:[%s169 + $0x22c] sm:$0xf]
      %v262 = vld [vmem:[%s169 + $0x230] sm:$0xff]
      %v263 = vld [vmem:[%s169 + $0x238] sm:$0xff]
      %v264 = vld [vmem:[%s169 + $0x240] sm:$0xf]
      %v265 = vld [vmem:[%s169 + $0x244] sm:$0xff]
      %v266 = vld [vmem:[%s169 + $0x24c] sm:$0xff]
      %v267 = vld [vmem:[%s169 + $0x254] sm:$0xf]
      %v268 = vld [vmem:[%s169 + $0x258] sm:$0xff]
      %v269 = vld [vmem:[%s169 + $0x260] sm:$0xff]
      %v270 = vld [vmem:[%s169 + $0x268] sm:$0xf]
      %v271 = vld [vmem:[%s169 + $0x26c] sm:$0xff]
      %v272 = vld [vmem:[%s169 + $0x274] sm:$0xff]
      %v273 = vld [vmem:[%s169 + $0x27c] sm:$0xf]
      %v274 = vld [vmem:[%s169 + $0x280] sm:$0xff]
      %v275 = vld [vmem:[%s169 + $0x288] sm:$0xff]
      %v276 = vld [vmem:[%s169 + $0x290] sm:$0xf]
      %v277 = vld [vmem:[%s169 + $0x294] sm:$0xff]
      %v278 = vld [vmem:[%s169 + $0x29c] sm:$0xff]
      %v279 = vld [vmem:[%s169 + $0x2a4] sm:$0xf]
      %v280 = vld [vmem:[%s169 + $0x2a8] sm:$0xff]
      %v281 = vld [vmem:[%s169 + $0x2b0] sm:$0xff]
      %v282 = vld [vmem:[%s169 + $0x2b8] sm:$0xf]
      %v283 = vld [vmem:[%s169 + $0x2bc] sm:$0xff]
      %v284 = vld [vmem:[%s169 + $0x2c4] sm:$0xff]
      %v285 = vld [vmem:[%s169 + $0x2cc] sm:$0xf]
      %v286 = vld [vmem:[%s169 + $0x2d0] sm:$0xff]
      %v287 = vld [vmem:[%s169 + $0x2d8] sm:$0xff]
      %v288 = vld [vmem:[%s169 + $0x2e0] sm:$0xf]
      %v289 = vld [vmem:[%s169 + $0x2e4] sm:$0xff]
      %v290 = vld [vmem:[%s169 + $0x2ec] sm:$0xff]
      %v291 = vld [vmem:[%s169 + $0x2f4] sm:$0xf]
      %v292 = vld [vmem:[%s169 + $0x2f8] sm:$0xff]
      %v293 = vld [vmem:[%s169 + $0x300] sm:$0xff]
      %v294 = vld [vmem:[%s169 + $0x308] sm:$0xf]
      %v295 = vld [vmem:[%s169 + $0x30c] sm:$0xff]
      %v296 = vld [vmem:[%s169 + $0x314] sm:$0xff]
      %v297 = vld [vmem:[%s169 + $0x31c] sm:$0xf]
      %v298 = vld [vmem:[%s169 + $0x320] sm:$0xff]
      %v299 = vld [vmem:[%s169 + $0x328] sm:$0xff]
      %v300 = vld [vmem:[%s169 + $0x330] sm:$0xf]
      %v301 = vld [vmem:[%s169 + $0x334] sm:$0xff]
      %v302 = vld [vmem:[%s169 + $0x33c] sm:$0xff]
      %v303 = vld [vmem:[%s169 + $0x344] sm:$0xf]
      %v304 = vld [vmem:[%s169 + $0x348] sm:$0xff]
      %v305 = vld [vmem:[%s169 + $0x350] sm:$0xff]
      %v306 = vld [vmem:[%s169 + $0x358] sm:$0xf]
      %v307 = vld [vmem:[%s169 + $0x35c] sm:$0xff]
      %v308 = vld [vmem:[%s169 + $0x364] sm:$0xff]
      %v309 = vld [vmem:[%s169 + $0x36c] sm:$0xf]
      %v310 = vld [vmem:[%s169 + $0x370] sm:$0xff]
      %v311 = vld [vmem:[%s169 + $0x378] sm:$0xff]
      %v312 = vld [vmem:[%s169 + $0x380] sm:$0xf]
      %v313 = vld [vmem:[%s169 + $0x384] sm:$0xff]
      %v314 = vld [vmem:[%s169 + $0x38c] sm:$0xff]
      %v315 = vld [vmem:[%s169 + $0x394] sm:$0xf]
      %v316 = vld [vmem:[%s169 + $0x398] sm:$0xff]
      %v317 = vld [vmem:[%s169 + $0x3a0] sm:$0xff]
      %v318 = vld [vmem:[%s169 + $0x3a8] sm:$0xf]
      %v319 = vld [vmem:[%s169 + $0x3ac] sm:$0xff]
      %v320 = vld [vmem:[%s169 + $0x3b4] sm:$0xff]
      %v321 = vld [vmem:[%s169 + $0x3bc] sm:$0xf]
      %v322 = vld [vmem:[%s169 + $0x3c0] sm:$0xff]
      %v323 = vld [vmem:[%s169 + $0x3c8] sm:$0xff]
      %v324 = vld [vmem:[%s169 + $0x3d0] sm:$0xf]
      %v325 = vld [vmem:[%s169 + $0x3d4] sm:$0xff]
      %v326 = vld [vmem:[%s169 + $0x3dc] sm:$0xff]
      %v327 = vld [vmem:[%s169 + $0x3e4] sm:$0xf]
      %v328 = vld [vmem:[%s169 + $0x3e8] sm:$0xff]
      %v329 = vld [vmem:[%s169 + $0x3f0] sm:$0xff]
      %v330 = vld [vmem:[%s169 + $0x3f8] sm:$0xf]
      %v331 = vld [vmem:[%s169 + $0x3fc] sm:$0xff]
      %v332 = vld [vmem:[%s169 + $0x404] sm:$0xff]
      %v333 = vld [vmem:[%s169 + $0x40c] sm:$0xf]
      %v334 = vld [vmem:[%s169 + $0x410] sm:$0xff]
      %v335 = vld [vmem:[%s169 + $0x418] sm:$0xff]
      %v336 = vld [vmem:[%s169 + $0x420] sm:$0xf]
      %v337 = vld [vmem:[%s169 + $0x424] sm:$0xff]
      %v338 = vld [vmem:[%s169 + $0x42c] sm:$0xff]
      %v339 = vld [vmem:[%s169 + $0x434] sm:$0xf]
      %v340 = vld [vmem:[%s169 + $0x438] sm:$0xff]
      %v341 = vld [vmem:[%s169 + $0x440] sm:$0xff]
      %v342 = vld [vmem:[%s169 + $0x448] sm:$0xf]
      %v343 = vld [vmem:[%s169 + $0x44c] sm:$0xff]
      %v344 = vld [vmem:[%s169 + $0x454] sm:$0xff]
      %v345 = vld [vmem:[%s169 + $0x45c] sm:$0xf]
      %v346 = vld [vmem:[%s169 + $0x460] sm:$0xff]
      %v347 = vld [vmem:[%s169 + $0x468] sm:$0xff]
      %v348 = vld [vmem:[%s169 + $0x470] sm:$0xf]
      %v349 = vld [vmem:[%s169 + $0x474] sm:$0xff]
      %v350 = vld [vmem:[%s169 + $0x47c] sm:$0xff]
      %v351 = vld [vmem:[%s169 + $0x484] sm:$0xf]
      %v352 = vld [vmem:[%s169 + $0x488] sm:$0xff]
      %v353 = vld [vmem:[%s169 + $0x490] sm:$0xff]
      %v354 = vld [vmem:[%s169 + $0x498] sm:$0xf]
      %v355 = vld [vmem:[%s169 + $0x49c] sm:$0xff]
      %v356 = vld [vmem:[%s169 + $0x4a4] sm:$0xff]
      %v357 = vld [vmem:[%s169 + $0x4ac] sm:$0xf]
      %v358 = vld [vmem:[%s169 + $0x4b0] sm:$0xff]
      %v359 = vld [vmem:[%s169 + $0x4b8] sm:$0xff]
      %v360 = vld [vmem:[%s169 + $0x4c0] sm:$0xf]
      %v361 = vld [vmem:[%s169 + $0x4c4] sm:$0xff]
      %v362 = vld [vmem:[%s169 + $0x4cc] sm:$0xff]
      %v363 = vld [vmem:[%s169 + $0x4d4] sm:$0xf]
      %v364 = vld [vmem:[%s169 + $0x4d8] sm:$0xff]
      %v365 = vld [vmem:[%s169 + $0x4e0] sm:$0xff]
      %v366 = vld [vmem:[%s169 + $0x4e8] sm:$0xf]
      %v367 = vld [vmem:[%s169 + $0x4ec] sm:$0xff]
      %v368 = vld [vmem:[%s169 + $0x4f4] sm:$0xff]
      %v369 = vld [vmem:[%s169 + $0x4fc] sm:$0xf]
      %v370 = vld [vmem:[%s1] sm:$0xf]
      %v371 = vld [vmem:[%s1 + $0x4] sm:$0xf]
      %v372 = vld [vmem:[%s1 + $0x8] sm:$0xf]
      %v373 = vld [vmem:[%s1 + $0xc] sm:$0xf]
      %v374 = vld [vmem:[%s1 + $0x10] sm:$0xf]
      %v375 = vld [vmem:[%s1 + $0x14] sm:$0xf]
      %v376 = vld [vmem:[%s1 + $0x18] sm:$0xf]
      %v377 = vld [vmem:[%s1 + $0x1c] sm:$0xf]
      %v378 = vld [vmem:[%s1 + $0x20] sm:$0xf]
      %v379 = vld [vmem:[%s1 + $0x24] sm:$0xf]
      %v380 = vld [vmem:[%s1 + $0x28] sm:$0xf]
      %v381 = vld [vmem:[%s1 + $0x2c] sm:$0xf]
      %v382 = vld [vmem:[%s1 + $0x30] sm:$0xf]
      %v383 = vld [vmem:[%s1 + $0x34] sm:$0xf]
      %v384 = vld [vmem:[%s1 + $0x38] sm:$0xf]
      %v385 = vld [vmem:[%s1 + $0x3c] sm:$0xf]
      %v386 = vld [vmem:[%s1 + $0x40] sm:$0xf]
      %v387 = vld [vmem:[%s1 + $0x44] sm:$0xf]
      %v388 = vld [vmem:[%s1 + $0x48] sm:$0xf]
      %v389 = vld [vmem:[%s1 + $0x4c] sm:$0xf]
      %v390 = vld [vmem:[%s1 + $0x50] sm:$0xf]
      %v391 = vld [vmem:[%s1 + $0x54] sm:$0xf]
      %v392 = vld [vmem:[%s1 + $0x58] sm:$0xf]
      %v393 = vld [vmem:[%s1 + $0x5c] sm:$0xf]
      %v394 = vld [vmem:[%s1 + $0x60] sm:$0xf]
      %v395 = vld [vmem:[%s1 + $0x64] sm:$0xf]
      %v396 = vld [vmem:[%s1 + $0x68] sm:$0xf]
      %v397 = vld [vmem:[%s1 + $0x6c] sm:$0xf]
      %v398 = vld [vmem:[%s1 + $0x70] sm:$0xf]
      %v399 = vld [vmem:[%s1 + $0x74] sm:$0xf]
      %v400 = vld [vmem:[%s1 + $0x78] sm:$0xf]
      %v401 = vld [vmem:[%s1 + $0x7c] sm:$0xf]
      %v402 = vld [vmem:[%s1 + $0x80] sm:$0xf]
      %v403 = vld [vmem:[%s1 + $0x84] sm:$0xf]
      %v404 = vld [vmem:[%s1 + $0x88] sm:$0xf]
      %v405 = vld [vmem:[%s1 + $0x8c] sm:$0xf]
      %v406 = vld [vmem:[%s1 + $0x90] sm:$0xf]
      %v407 = vld [vmem:[%s1 + $0x94] sm:$0xf]
      %v408 = vld [vmem:[%s1 + $0x98] sm:$0xf]
      %v409 = vld [vmem:[%s1 + $0x9c] sm:$0xf]
      %v410 = vld [vmem:[%s1 + $0xa0] sm:$0xf]
      %v411 = vld [vmem:[%s1 + $0xa4] sm:$0xf]
      %v412 = vld [vmem:[%s1 + $0xa8] sm:$0xf]
      %v413 = vld [vmem:[%s1 + $0xac] sm:$0xf]
      %v414 = vld [vmem:[%s1 + $0xb0] sm:$0xf]
      %v415 = vld [vmem:[%s1 + $0xb4] sm:$0xf]
      %v416 = vld [vmem:[%s1 + $0xb8] sm:$0xf]
      %v417 = vld [vmem:[%s1 + $0xbc] sm:$0xf]
      %v418 = vld [vmem:[%s1 + $0xc0] sm:$0xf]
      %v419 = vld [vmem:[%s1 + $0xc4] sm:$0xf]
      %v420 = vld [vmem:[%s1 + $0xc8] sm:$0xf]
      %v421 = vld [vmem:[%s1 + $0xcc] sm:$0xf]
      %v422 = vld [vmem:[%s1 + $0xd0] sm:$0xf]
      %v423 = vld [vmem:[%s1 + $0xd4] sm:$0xf]
      %v424 = vld [vmem:[%s1 + $0xd8] sm:$0xf]
      %v425 = vld [vmem:[%s1 + $0xdc] sm:$0xf]
      %v426 = vld [vmem:[%s1 + $0xe0] sm:$0xf]
      %v427 = vld [vmem:[%s1 + $0xe4] sm:$0xf]
      %v428 = vld [vmem:[%s1 + $0xe8] sm:$0xf]
      %v429 = vld [vmem:[%s1 + $0xec] sm:$0xf]
      %v430 = vld [vmem:[%s1 + $0xf0] sm:$0xf]
      %v431 = vld [vmem:[%s1 + $0xf4] sm:$0xf]
      %v432 = vld [vmem:[%s1 + $0xf8] sm:$0xf]
      %v433 = vld [vmem:[%s1 + $0xfc] sm:$0xf]
      %v434 = vld [vmem:[%s1 + $0x100] sm:$0xf]
      %v435 = vld [vmem:[%s1 + $0x104] sm:$0xf]
      %v436 = vld [vmem:[%s1 + $0x108] sm:$0xf]
      %v437 = vld [vmem:[%s1 + $0x10c] sm:$0xf]
      %v438 = vld [vmem:[%s1 + $0x110] sm:$0xf]
      %v439 = vld [vmem:[%s1 + $0x114] sm:$0xf]
      %v440 = vld [vmem:[%s1 + $0x118] sm:$0xf]
      %v441 = vld [vmem:[%s1 + $0x11c] sm:$0xf]
      %v442 = vld [vmem:[%s2] sm:$0x1]
      %v444 = vlaneseq
      %v445 = vshrl.u32 %v444, 7
      %v446 = vsub.s32 0, %v445
      %v447 = vrot.slane %v442, %v446
      %v641 = vunpack.c.l.b16 %v178
      %v642 = vunpack.c.h.b16 %v178
      %v643 = vunpack.c.l.b16 %v179
      %v644 = vunpack.c.h.b16 %v179
      %v645 = vunpack.c.l.b16 %v180
      %v646 = vunpack.c.l.b16 %v181
      %v647 = vunpack.c.h.b16 %v181
      %v648 = vunpack.c.l.b16 %v182
      %v649 = vunpack.c.h.b16 %v182
      %v650 = vunpack.c.l.b16 %v183
      %v651 = vunpack.c.l.b16 %v184
      %v652 = vunpack.c.h.b16 %v184
      %v653 = vunpack.c.l.b16 %v185
      %v654 = vunpack.c.h.b16 %v185
      %v655 = vunpack.c.l.b16 %v186
      %v656 = vunpack.c.l.b16 %v187
      %v657 = vunpack.c.h.b16 %v187
      %v658 = vunpack.c.l.b16 %v188
      %v659 = vunpack.c.h.b16 %v188
      %v660 = vunpack.c.l.b16 %v189
      %v661 = vunpack.c.l.b16 %v190
      %v662 = vunpack.c.h.b16 %v190
      %v663 = vunpack.c.l.b16 %v191
      %v664 = vunpack.c.h.b16 %v191
      %v665 = vunpack.c.l.b16 %v192
      %v666 = vunpack.c.l.b16 %v193
      %v667 = vunpack.c.h.b16 %v193
      %v668 = vunpack.c.l.b16 %v194
      %v669 = vunpack.c.h.b16 %v194
      %v670 = vunpack.c.l.b16 %v195
      %v671 = vunpack.c.l.b16 %v196
      %v672 = vunpack.c.h.b16 %v196
      %v673 = vunpack.c.l.b16 %v197
      %v674 = vunpack.c.h.b16 %v197
      %v675 = vunpack.c.l.b16 %v198
      %v676 = vunpack.c.l.b16 %v199
      %v677 = vunpack.c.h.b16 %v199
      %v678 = vunpack.c.l.b16 %v200
      %v679 = vunpack.c.h.b16 %v200
      %v680 = vunpack.c.l.b16 %v201
      %v681 = vunpack.c.l.b16 %v202
      %v682 = vunpack.c.h.b16 %v202
      %v683 = vunpack.c.l.b16 %v203
      %v684 = vunpack.c.h.b16 %v203
      %v685 = vunpack.c.l.b16 %v204
      %v686 = vunpack.c.l.b16 %v205
      %v687 = vunpack.c.h.b16 %v205
      %v688 = vunpack.c.l.b16 %v206
      %v689 = vunpack.c.h.b16 %v206
      %v690 = vunpack.c.l.b16 %v207
      %v691 = vunpack.c.l.b16 %v208
      %v692 = vunpack.c.h.b16 %v208
      %v693 = vunpack.c.l.b16 %v209
      %v694 = vunpack.c.h.b16 %v209
      %v695 = vunpack.c.l.b16 %v210
      %v696 = vunpack.c.l.b16 %v211
      %v697 = vunpack.c.h.b16 %v211
      %v698 = vunpack.c.l.b16 %v212
      %v699 = vunpack.c.h.b16 %v212
      %v700 = vunpack.c.l.b16 %v213
      %v701 = vunpack.c.l.b16 %v214
      %v702 = vunpack.c.h.b16 %v214
      %v703 = vunpack.c.l.b16 %v215
      %v704 = vunpack.c.h.b16 %v215
      %v705 = vunpack.c.l.b16 %v216
      %v706 = vunpack.c.l.b16 %v217
      %v707 = vunpack.c.h.b16 %v217
      %v708 = vunpack.c.l.b16 %v218
      %v709 = vunpack.c.h.b16 %v218
      %v710 = vunpack.c.l.b16 %v219
      %v711 = vunpack.c.l.b16 %v220
      %v712 = vunpack.c.h.b16 %v220
      %v713 = vunpack.c.l.b16 %v221
      %v714 = vunpack.c.h.b16 %v221
      %v715 = vunpack.c.l.b16 %v222
      %v716 = vunpack.c.l.b16 %v223
      %v717 = vunpack.c.h.b16 %v223
      %v718 = vunpack.c.l.b16 %v224
      %v719 = vunpack.c.h.b16 %v224
      %v720 = vunpack.c.l.b16 %v225
      %v721 = vunpack.c.l.b16 %v226
      %v722 = vunpack.c.h.b16 %v226
      %v723 = vunpack.c.l.b16 %v227
      %v724 = vunpack.c.h.b16 %v227
      %v725 = vunpack.c.l.b16 %v228
      %v726 = vunpack.c.l.b16 %v229
      %v727 = vunpack.c.h.b16 %v229
      %v728 = vunpack.c.l.b16 %v230
      %v729 = vunpack.c.h.b16 %v230
      %v730 = vunpack.c.l.b16 %v231
      %v731 = vunpack.c.l.b16 %v232
      %v732 = vunpack.c.h.b16 %v232
      %v733 = vunpack.c.l.b16 %v233
      %v734 = vunpack.c.h.b16 %v233
      %v735 = vunpack.c.l.b16 %v234
      %v736 = vunpack.c.l.b16 %v235
      %v737 = vunpack.c.h.b16 %v235
      %v738 = vunpack.c.l.b16 %v236
      %v739 = vunpack.c.h.b16 %v236
      %v740 = vunpack.c.l.b16 %v237
      %v741 = vunpack.c.l.b16 %v238
      %v742 = vunpack.c.h.b16 %v238
      %v743 = vunpack.c.l.b16 %v239
      %v744 = vunpack.c.h.b16 %v239
      %v745 = vunpack.c.l.b16 %v240
      %v746 = vunpack.c.l.b16 %v241
      %v747 = vunpack.c.h.b16 %v241
      %v748 = vunpack.c.l.b16 %v242
      %v749 = vunpack.c.h.b16 %v242
      %v750 = vunpack.c.l.b16 %v243
      %v751 = vunpack.c.l.b16 %v244
      %v752 = vunpack.c.h.b16 %v244
      %v753 = vunpack.c.l.b16 %v245
      %v754 = vunpack.c.h.b16 %v245
      %v755 = vunpack.c.l.b16 %v246
      %v756 = vunpack.c.l.b16 %v247
      %v757 = vunpack.c.h.b16 %v247
      %v758 = vunpack.c.l.b16 %v248
      %v759 = vunpack.c.h.b16 %v248
      %v760 = vunpack.c.l.b16 %v249
      %v761 = vunpack.c.l.b16 %v250
      %v762 = vunpack.c.h.b16 %v250
      %v763 = vunpack.c.l.b16 %v251
      %v764 = vunpack.c.h.b16 %v251
      %v765 = vunpack.c.l.b16 %v252
      %v766 = vunpack.c.l.b16 %v253
      %v767 = vunpack.c.h.b16 %v253
      %v768 = vunpack.c.l.b16 %v254
      %v769 = vunpack.c.h.b16 %v254
      %v770 = vunpack.c.l.b16 %v255
      %v771 = vunpack.c.l.b16 %v256
      %v772 = vunpack.c.h.b16 %v256
      %v773 = vunpack.c.l.b16 %v257
      %v774 = vunpack.c.h.b16 %v257
      %v775 = vunpack.c.l.b16 %v258
      %v776 = vunpack.c.l.b16 %v259
      %v777 = vunpack.c.h.b16 %v259
      %v778 = vunpack.c.l.b16 %v260
      %v779 = vunpack.c.h.b16 %v260
      %v780 = vunpack.c.l.b16 %v261
      %v781 = vunpack.c.l.b16 %v262
      %v782 = vunpack.c.h.b16 %v262
      %v783 = vunpack.c.l.b16 %v263
      %v784 = vunpack.c.h.b16 %v263
      %v785 = vunpack.c.l.b16 %v264
      %v786 = vunpack.c.l.b16 %v265
      %v787 = vunpack.c.h.b16 %v265
      %v788 = vunpack.c.l.b16 %v266
      %v789 = vunpack.c.h.b16 %v266
      %v790 = vunpack.c.l.b16 %v267
      %v791 = vunpack.c.l.b16 %v268
      %v792 = vunpack.c.h.b16 %v268
      %v793 = vunpack.c.l.b16 %v269
      %v794 = vunpack.c.h.b16 %v269
      %v795 = vunpack.c.l.b16 %v270
      %v796 = vunpack.c.l.b16 %v271
      %v797 = vunpack.c.h.b16 %v271
      %v798 = vunpack.c.l.b16 %v272
      %v799 = vunpack.c.h.b16 %v272
      %v800 = vunpack.c.l.b16 %v273
      %v801 = vunpack.c.l.b16 %v274
      %v802 = vunpack.c.h.b16 %v274
      %v803 = vunpack.c.l.b16 %v275
      %v804 = vunpack.c.h.b16 %v275
      %v805 = vunpack.c.l.b16 %v276
      %v806 = vunpack.c.l.b16 %v277
      %v807 = vunpack.c.h.b16 %v277
      %v808 = vunpack.c.l.b16 %v278
      %v809 = vunpack.c.h.b16 %v278
      %v810 = vunpack.c.l.b16 %v279
      %v811 = vunpack.c.l.b16 %v280
      %v812 = vunpack.c.h.b16 %v280
      %v813 = vunpack.c.l.b16 %v281
      %v814 = vunpack.c.h.b16 %v281
      %v815 = vunpack.c.l.b16 %v282
      %v816 = vunpack.c.l.b16 %v283
      %v817 = vunpack.c.h.b16 %v283
      %v818 = vunpack.c.l.b16 %v284
      %v819 = vunpack.c.h.b16 %v284
      %v820 = vunpack.c.l.b16 %v285
      %v821 = vunpack.c.l.b16 %v286
      %v822 = vunpack.c.h.b16 %v286
      %v823 = vunpack.c.l.b16 %v287
      %v824 = vunpack.c.h.b16 %v287
      %v825 = vunpack.c.l.b16 %v288
      %v826 = vunpack.c.l.b16 %v289
      %v827 = vunpack.c.h.b16 %v289
      %v828 = vunpack.c.l.b16 %v290
      %v829 = vunpack.c.h.b16 %v290
      %v830 = vunpack.c.l.b16 %v291
      %v831 = vunpack.c.l.b16 %v292
      %v832 = vunpack.c.h.b16 %v292
      %v833 = vunpack.c.l.b16 %v293
      %v834 = vunpack.c.h.b16 %v293
      %v835 = vunpack.c.l.b16 %v294
      %v836 = vunpack.c.l.b16 %v295
      %v837 = vunpack.c.h.b16 %v295
      %v838 = vunpack.c.l.b16 %v296
      %v839 = vunpack.c.h.b16 %v296
      %v840 = vunpack.c.l.b16 %v297
      %v841 = vunpack.c.l.b16 %v298
      %v842 = vunpack.c.h.b16 %v298
      %v843 = vunpack.c.l.b16 %v299
      %v844 = vunpack.c.h.b16 %v299
      %v845 = vunpack.c.l.b16 %v300
      %v846 = vunpack.c.l.b16 %v301
      %v847 = vunpack.c.h.b16 %v301
      %v848 = vunpack.c.l.b16 %v302
      %v849 = vunpack.c.h.b16 %v302
      %v850 = vunpack.c.l.b16 %v303
      %v851 = vunpack.c.l.b16 %v304
      %v852 = vunpack.c.h.b16 %v304
      %v853 = vunpack.c.l.b16 %v305
      %v854 = vunpack.c.h.b16 %v305
      %v855 = vunpack.c.l.b16 %v306
      %v856 = vunpack.c.l.b16 %v307
      %v857 = vunpack.c.h.b16 %v307
      %v858 = vunpack.c.l.b16 %v308
      %v859 = vunpack.c.h.b16 %v308
      %v860 = vunpack.c.l.b16 %v309
      %v861 = vunpack.c.l.b16 %v310
      %v862 = vunpack.c.h.b16 %v310
      %v863 = vunpack.c.l.b16 %v311
      %v864 = vunpack.c.h.b16 %v311
      %v865 = vunpack.c.l.b16 %v312
      %v866 = vunpack.c.l.b16 %v313
      %v867 = vunpack.c.h.b16 %v313
      %v868 = vunpack.c.l.b16 %v314
      %v869 = vunpack.c.h.b16 %v314
      %v870 = vunpack.c.l.b16 %v315
      %v871 = vunpack.c.l.b16 %v316
      %v872 = vunpack.c.h.b16 %v316
      %v873 = vunpack.c.l.b16 %v317
      %v874 = vunpack.c.h.b16 %v317
      %v875 = vunpack.c.l.b16 %v318
      %v876 = vunpack.c.l.b16 %v319
      %v877 = vunpack.c.h.b16 %v319
      %v878 = vunpack.c.l.b16 %v320
      %v879 = vunpack.c.h.b16 %v320
      %v880 = vunpack.c.l.b16 %v321
      %v881 = vunpack.c.l.b16 %v322
      %v882 = vunpack.c.h.b16 %v322
      %v883 = vunpack.c.l.b16 %v323
      %v884 = vunpack.c.h.b16 %v323
      %v885 = vunpack.c.l.b16 %v324
      %v886 = vunpack.c.l.b16 %v325
      %v887 = vunpack.c.h.b16 %v325
      %v888 = vunpack.c.l.b16 %v326
      %v889 = vunpack.c.h.b16 %v326
      %v890 = vunpack.c.l.b16 %v327
      %v891 = vunpack.c.l.b16 %v328
      %v892 = vunpack.c.h.b16 %v328
      %v893 = vunpack.c.l.b16 %v329
      %v894 = vunpack.c.h.b16 %v329
      %v895 = vunpack.c.l.b16 %v330
      %v896 = vunpack.c.l.b16 %v331
      %v897 = vunpack.c.h.b16 %v331
      %v898 = vunpack.c.l.b16 %v332
      %v899 = vunpack.c.h.b16 %v332
      %v900 = vunpack.c.l.b16 %v333
      %v901 = vunpack.c.l.b16 %v334
      %v902 = vunpack.c.h.b16 %v334
      %v903 = vunpack.c.l.b16 %v335
      %v904 = vunpack.c.h.b16 %v335
      %v905 = vunpack.c.l.b16 %v336
      %v906 = vunpack.c.l.b16 %v337
      %v907 = vunpack.c.h.b16 %v337
      %v908 = vunpack.c.l.b16 %v338
      %v909 = vunpack.c.h.b16 %v338
      %v910 = vunpack.c.l.b16 %v339
      %v911 = vunpack.c.l.b16 %v340
      %v912 = vunpack.c.h.b16 %v340
      %v913 = vunpack.c.l.b16 %v341
      %v914 = vunpack.c.h.b16 %v341
      %v915 = vunpack.c.l.b16 %v342
      %v916 = vunpack.c.l.b16 %v343
      %v917 = vunpack.c.h.b16 %v343
      %v918 = vunpack.c.l.b16 %v344
      %v919 = vunpack.c.h.b16 %v344
      %v920 = vunpack.c.l.b16 %v345
      %v921 = vunpack.c.l.b16 %v346
      %v922 = vunpack.c.h.b16 %v346
      %v923 = vunpack.c.l.b16 %v347
      %v924 = vunpack.c.h.b16 %v347
      %v925 = vunpack.c.l.b16 %v348
      %v926 = vunpack.c.l.b16 %v349
      %v927 = vunpack.c.h.b16 %v349
      %v928 = vunpack.c.l.b16 %v350
      %v929 = vunpack.c.h.b16 %v350
      %v930 = vunpack.c.l.b16 %v351
      %v931 = vunpack.c.l.b16 %v352
      %v932 = vunpack.c.h.b16 %v352
      %v933 = vunpack.c.l.b16 %v353
      %v934 = vunpack.c.h.b16 %v353
      %v935 = vunpack.c.l.b16 %v354
      %v936 = vunpack.c.l.b16 %v355
      %v937 = vunpack.c.h.b16 %v355
      %v938 = vunpack.c.l.b16 %v356
      %v939 = vunpack.c.h.b16 %v356
      %v940 = vunpack.c.l.b16 %v357
      %v941 = vunpack.c.l.b16 %v358
      %v942 = vunpack.c.h.b16 %v358
      %v943 = vunpack.c.l.b16 %v359
      %v944 = vunpack.c.h.b16 %v359
      %v945 = vunpack.c.l.b16 %v360
      %v946 = vunpack.c.l.b16 %v361
      %v947 = vunpack.c.h.b16 %v361
      %v948 = vunpack.c.l.b16 %v362
      %v949 = vunpack.c.h.b16 %v362
      %v950 = vunpack.c.l.b16 %v363
      %v951 = vunpack.c.l.b16 %v364
      %v952 = vunpack.c.h.b16 %v364
      %v953 = vunpack.c.l.b16 %v365
      %v954 = vunpack.c.h.b16 %v365
      %v955 = vunpack.c.l.b16 %v366
      %v956 = vunpack.c.l.b16 %v367
      %v957 = vunpack.c.h.b16 %v367
      %v958 = vunpack.c.l.b16 %v368
      %v959 = vunpack.c.h.b16 %v368
      %v960 = vunpack.c.l.b16 %v369
      %v961 = vpack.c.b16 %v646, %v641
      %v962 = vpack.c.b16 %v647, %v642
      %v963 = vpack.c.b16 %v648, %v643
      %v964 = vpack.c.b16 %v649, %v644
      %v965 = vpack.c.b16 %v650, %v645
      %v966 = vpack.c.b16 %v656, %v651
      %v967 = vpack.c.b16 %v657, %v652
      %v968 = vpack.c.b16 %v658, %v653
      %v969 = vpack.c.b16 %v659, %v654
      %v970 = vpack.c.b16 %v660, %v655
      %v971 = vpack.c.b16 %v666, %v661
      %v972 = vpack.c.b16 %v667, %v662
      %v973 = vpack.c.b16 %v668, %v663
      %v974 = vpack.c.b16 %v669, %v664
      %v975 = vpack.c.b16 %v670, %v665
      %v976 = vpack.c.b16 %v676, %v671
      %v977 = vpack.c.b16 %v677, %v672
      %v978 = vpack.c.b16 %v678, %v673
      %v979 = vpack.c.b16 %v679, %v674
      %v980 = vpack.c.b16 %v680, %v675
      %v981 = vpack.c.b16 %v686, %v681
      %v982 = vpack.c.b16 %v687, %v682
      %v983 = vpack.c.b16 %v688, %v683
      %v984 = vpack.c.b16 %v689, %v684
      %v985 = vpack.c.b16 %v690, %v685
      %v986 = vpack.c.b16 %v696, %v691
      %v987 = vpack.c.b16 %v697, %v692
      %v988 = vpack.c.b16 %v698, %v693
      %v989 = vpack.c.b16 %v699, %v694
      %v990 = vpack.c.b16 %v700, %v695
      %v991 = vpack.c.b16 %v706, %v701
      %v992 = vpack.c.b16 %v707, %v702
      %v993 = vpack.c.b16 %v708, %v703
      %v994 = vpack.c.b16 %v709, %v704
      %v995 = vpack.c.b16 %v710, %v705
      %v996 = vpack.c.b16 %v716, %v711
      %v997 = vpack.c.b16 %v717, %v712
      %v998 = vpack.c.b16 %v718, %v713
      %v999 = vpack.c.b16 %v719, %v714
      %v1000 = vpack.c.b16 %v720, %v715
      %v1001 = vpack.c.b16 %v726, %v721
      %v1002 = vpack.c.b16 %v727, %v722
      %v1003 = vpack.c.b16 %v728, %v723
      %v1004 = vpack.c.b16 %v729, %v724
      %v1005 = vpack.c.b16 %v730, %v725
      %v1006 = vpack.c.b16 %v736, %v731
      %v1007 = vpack.c.b16 %v737, %v732
      %v1008 = vpack.c.b16 %v738, %v733
      %v1009 = vpack.c.b16 %v739, %v734
      %v1010 = vpack.c.b16 %v740, %v735
      %v1011 = vpack.c.b16 %v746, %v741
      %v1012 = vpack.c.b16 %v747, %v742
      %v1013 = vpack.c.b16 %v748, %v743
      %v1014 = vpack.c.b16 %v749, %v744
      %v1015 = vpack.c.b16 %v750, %v745
      %v1016 = vpack.c.b16 %v756, %v751
      %v1017 = vpack.c.b16 %v757, %v752
      %v1018 = vpack.c.b16 %v758, %v753
      %v1019 = vpack.c.b16 %v759, %v754
      %v1020 = vpack.c.b16 %v760, %v755
      %v1021 = vpack.c.b16 %v766, %v761
      %v1022 = vpack.c.b16 %v767, %v762
      %v1023 = vpack.c.b16 %v768, %v763
      %v1024 = vpack.c.b16 %v769, %v764
      %v1025 = vpack.c.b16 %v770, %v765
      %v1026 = vpack.c.b16 %v776, %v771
      %v1027 = vpack.c.b16 %v777, %v772
      %v1028 = vpack.c.b16 %v778, %v773
      %v1029 = vpack.c.b16 %v779, %v774
      %v1030 = vpack.c.b16 %v780, %v775
      %v1031 = vpack.c.b16 %v786, %v781
      %v1032 = vpack.c.b16 %v787, %v782
      %v1033 = vpack.c.b16 %v788, %v783
      %v1034 = vpack.c.b16 %v789, %v784
      %v1035 = vpack.c.b16 %v790, %v785
      %v1036 = vpack.c.b16 %v796, %v791
      %v1037 = vpack.c.b16 %v797, %v792
      %v1038 = vpack.c.b16 %v798, %v793
      %v1039 = vpack.c.b16 %v799, %v794
      %v1040 = vpack.c.b16 %v800, %v795
      %v1041 = vpack.c.b16 %v806, %v801
      %v1042 = vpack.c.b16 %v807, %v802
      %v1043 = vpack.c.b16 %v808, %v803
      %v1044 = vpack.c.b16 %v809, %v804
      %v1045 = vpack.c.b16 %v810, %v805
      %v1046 = vpack.c.b16 %v816, %v811
      %v1047 = vpack.c.b16 %v817, %v812
      %v1048 = vpack.c.b16 %v818, %v813
      %v1049 = vpack.c.b16 %v819, %v814
      %v1050 = vpack.c.b16 %v820, %v815
      %v1051 = vpack.c.b16 %v826, %v821
      %v1052 = vpack.c.b16 %v827, %v822
      %v1053 = vpack.c.b16 %v828, %v823
      %v1054 = vpack.c.b16 %v829, %v824
      %v1055 = vpack.c.b16 %v830, %v825
      %v1056 = vpack.c.b16 %v836, %v831
      %v1057 = vpack.c.b16 %v837, %v832
      %v1058 = vpack.c.b16 %v838, %v833
      %v1059 = vpack.c.b16 %v839, %v834
      %v1060 = vpack.c.b16 %v840, %v835
      %v1061 = vpack.c.b16 %v846, %v841
      %v1062 = vpack.c.b16 %v847, %v842
      %v1063 = vpack.c.b16 %v848, %v843
      %v1064 = vpack.c.b16 %v849, %v844
      %v1065 = vpack.c.b16 %v850, %v845
      %v1066 = vpack.c.b16 %v856, %v851
      %v1067 = vpack.c.b16 %v857, %v852
      %v1068 = vpack.c.b16 %v858, %v853
      %v1069 = vpack.c.b16 %v859, %v854
      %v1070 = vpack.c.b16 %v860, %v855
      %v1071 = vpack.c.b16 %v866, %v861
      %v1072 = vpack.c.b16 %v867, %v862
      %v1073 = vpack.c.b16 %v868, %v863
      %v1074 = vpack.c.b16 %v869, %v864
      %v1075 = vpack.c.b16 %v870, %v865
      %v1076 = vpack.c.b16 %v876, %v871
      %v1077 = vpack.c.b16 %v877, %v872
      %v1078 = vpack.c.b16 %v878, %v873
      %v1079 = vpack.c.b16 %v879, %v874
      %v1080 = vpack.c.b16 %v880, %v875
      %v1081 = vpack.c.b16 %v886, %v881
      %v1082 = vpack.c.b16 %v887, %v882
      %v1083 = vpack.c.b16 %v888, %v883
      %v1084 = vpack.c.b16 %v889, %v884
      %v1085 = vpack.c.b16 %v890, %v885
      %v1086 = vpack.c.b16 %v896, %v891
      %v1087 = vpack.c.b16 %v897, %v892
      %v1088 = vpack.c.b16 %v898, %v893
      %v1089 = vpack.c.b16 %v899, %v894
      %v1090 = vpack.c.b16 %v900, %v895
      %v1091 = vpack.c.b16 %v906, %v901
      %v1092 = vpack.c.b16 %v907, %v902
      %v1093 = vpack.c.b16 %v908, %v903
      %v1094 = vpack.c.b16 %v909, %v904
      %v1095 = vpack.c.b16 %v910, %v905
      %v1096 = vpack.c.b16 %v916, %v911
      %v1097 = vpack.c.b16 %v917, %v912
      %v1098 = vpack.c.b16 %v918, %v913
      %v1099 = vpack.c.b16 %v919, %v914
      %v1100 = vpack.c.b16 %v920, %v915
      %v1101 = vpack.c.b16 %v926, %v921
      %v1102 = vpack.c.b16 %v927, %v922
      %v1103 = vpack.c.b16 %v928, %v923
      %v1104 = vpack.c.b16 %v929, %v924
      %v1105 = vpack.c.b16 %v930, %v925
      %v1106 = vpack.c.b16 %v936, %v931
      %v1107 = vpack.c.b16 %v937, %v932
      %v1108 = vpack.c.b16 %v938, %v933
      %v1109 = vpack.c.b16 %v939, %v934
      %v1110 = vpack.c.b16 %v940, %v935
      %v1111 = vpack.c.b16 %v946, %v941
      %v1112 = vpack.c.b16 %v947, %v942
      %v1113 = vpack.c.b16 %v948, %v943
      %v1114 = vpack.c.b16 %v949, %v944
      %v1115 = vpack.c.b16 %v950, %v945
      %v1116 = vpack.c.b16 %v956, %v951
      %v1117 = vpack.c.b16 %v957, %v952
      %v1118 = vpack.c.b16 %v958, %v953
      %v1119 = vpack.c.b16 %v959, %v954
      %v1120 = vpack.c.b16 %v960, %v955
      %v1321 = vunpack.c.l.b16 %v370
      %v1322 = vunpack.c.l.b16 %v371
      %v1323 = vunpack.c.l.b16 %v372
      %v1324 = vunpack.c.l.b16 %v373
      %v1325 = vunpack.c.l.b16 %v374
      %v1326 = vunpack.c.l.b16 %v375
      %v1327 = vunpack.c.l.b16 %v376
      %v1328 = vunpack.c.l.b16 %v377
      %v1329 = vunpack.c.l.b16 %v378
      %v1330 = vunpack.c.l.b16 %v379
      %v1331 = vunpack.c.l.b16 %v380
      %v1332 = vunpack.c.l.b16 %v381
      %v1333 = vunpack.c.l.b16 %v382
      %v1334 = vunpack.c.l.b16 %v383
      %v1335 = vunpack.c.l.b16 %v384
      %v1336 = vunpack.c.l.b16 %v385
      %v1337 = vunpack.c.l.b16 %v386
      %v1338 = vunpack.c.l.b16 %v387
      %v1339 = vunpack.c.l.b16 %v388
      %v1340 = vunpack.c.l.b16 %v389
      %v1341 = vunpack.c.l.b16 %v390
      %v1342 = vunpack.c.l.b16 %v391
      %v1343 = vunpack.c.l.b16 %v392
      %v1344 = vunpack.c.l.b16 %v393
      %v1345 = vunpack.c.l.b16 %v394
      %v1346 = vunpack.c.l.b16 %v395
      %v1347 = vunpack.c.l.b16 %v396
      %v1348 = vunpack.c.l.b16 %v397
      %v1349 = vunpack.c.l.b16 %v398
      %v1350 = vunpack.c.l.b16 %v399
      %v1351 = vunpack.c.l.b16 %v400
      %v1352 = vunpack.c.l.b16 %v401
      %v1353 = vunpack.c.l.b16 %v402
      %v1354 = vunpack.c.l.b16 %v403
      %v1355 = vunpack.c.l.b16 %v404
      %v1356 = vunpack.c.l.b16 %v405
      %v1357 = vunpack.c.l.b16 %v406
      %v1358 = vunpack.c.l.b16 %v407
      %v1359 = vunpack.c.l.b16 %v408
      %v1360 = vunpack.c.l.b16 %v409
      %v1361 = vunpack.c.l.b16 %v410
      %v1362 = vunpack.c.l.b16 %v411
      %v1363 = vunpack.c.l.b16 %v412
      %v1364 = vunpack.c.l.b16 %v413
      %v1365 = vunpack.c.l.b16 %v414
      %v1366 = vunpack.c.l.b16 %v415
      %v1367 = vunpack.c.l.b16 %v416
      %v1368 = vunpack.c.l.b16 %v417
      %v1369 = vunpack.c.l.b16 %v418
      %v1370 = vunpack.c.l.b16 %v419
      %v1371 = vunpack.c.l.b16 %v420
      %v1372 = vunpack.c.l.b16 %v421
      %v1373 = vunpack.c.l.b16 %v422
      %v1374 = vunpack.c.l.b16 %v423
      %v1375 = vunpack.c.l.b16 %v424
      %v1376 = vunpack.c.l.b16 %v425
      %v1377 = vunpack.c.l.b16 %v426
      %v1378 = vunpack.c.l.b16 %v427
      %v1379 = vunpack.c.l.b16 %v428
      %v1380 = vunpack.c.l.b16 %v429
      %v1381 = vunpack.c.l.b16 %v430
      %v1382 = vunpack.c.l.b16 %v431
      %v1383 = vunpack.c.l.b16 %v432
      %v1384 = vunpack.c.l.b16 %v433
      %v1385 = vunpack.c.l.b16 %v434
      %v1386 = vunpack.c.l.b16 %v435
      %v1387 = vunpack.c.l.b16 %v436
      %v1388 = vunpack.c.l.b16 %v437
      %v1389 = vunpack.c.l.b16 %v438
      %v1390 = vunpack.c.l.b16 %v439
      %v1391 = vunpack.c.l.b16 %v440
      %v1392 = vunpack.c.l.b16 %v441
      %v1393 = vpack.c.b16 %v1322, %v1321
      %v1394 = vpack.c.b16 %v1324, %v1323
      %v1395 = vpack.c.b16 %v1326, %v1325
      %v1396 = vpack.c.b16 %v1328, %v1327
      %v1397 = vpack.c.b16 %v1330, %v1329
      %v1398 = vpack.c.b16 %v1332, %v1331
      %v1399 = vpack.c.b16 %v1334, %v1333
      %v1400 = vpack.c.b16 %v1336, %v1335
      %v1401 = vpack.c.b16 %v1338, %v1337
      %v1402 = vpack.c.b16 %v1340, %v1339
      %v1403 = vpack.c.b16 %v1342, %v1341
      %v1404 = vpack.c.b16 %v1344, %v1343
      %v1405 = vpack.c.b16 %v1346, %v1345
      %v1406 = vpack.c.b16 %v1348, %v1347
      %v1407 = vpack.c.b16 %v1350, %v1349
      %v1408 = vpack.c.b16 %v1352, %v1351
      %v1409 = vpack.c.b16 %v1354, %v1353
      %v1410 = vpack.c.b16 %v1356, %v1355
      %v1411 = vpack.c.b16 %v1358, %v1357
      %v1412 = vpack.c.b16 %v1360, %v1359
      %v1413 = vpack.c.b16 %v1362, %v1361
      %v1414 = vpack.c.b16 %v1364, %v1363
      %v1415 = vpack.c.b16 %v1366, %v1365
      %v1416 = vpack.c.b16 %v1368, %v1367
      %v1417 = vpack.c.b16 %v1370, %v1369
      %v1418 = vpack.c.b16 %v1372, %v1371
      %v1419 = vpack.c.b16 %v1374, %v1373
      %v1420 = vpack.c.b16 %v1376, %v1375
      %v1421 = vpack.c.b16 %v1378, %v1377
      %v1422 = vpack.c.b16 %v1380, %v1379
      %v1423 = vpack.c.b16 %v1382, %v1381
      %v1424 = vpack.c.b16 %v1384, %v1383
      %v1425 = vpack.c.b16 %v1386, %v1385
      %v1426 = vpack.c.b16 %v1388, %v1387
      %v1427 = vpack.c.b16 %v1390, %v1389
      %v1428 = vpack.c.b16 %v1392, %v1391
      %vm1465 = vcmask 523264
      %v1467 = vsel %vm1465, %v965, 0
      %v1470 = vsel %vm1465, %v970, 0
      %v1473 = vsel %vm1465, %v975, 0
      %v1476 = vsel %vm1465, %v980, 0
      %v1479 = vsel %vm1465, %v985, 0
      %v1482 = vsel %vm1465, %v990, 0
      %v1485 = vsel %vm1465, %v995, 0
      %v1488 = vsel %vm1465, %v1000, 0
      %v1491 = vsel %vm1465, %v1005, 0
      %v1494 = vsel %vm1465, %v1010, 0
      %v1497 = vsel %vm1465, %v1015, 0
      %v1500 = vsel %vm1465, %v1020, 0
      %v1503 = vsel %vm1465, %v1025, 0
      %v1506 = vsel %vm1465, %v1030, 0
      %v1509 = vsel %vm1465, %v1035, 0
      %v1512 = vsel %vm1465, %v1040, 0
      %v1515 = vsel %vm1465, %v1045, 0
      %v1518 = vsel %vm1465, %v1050, 0
      %v1521 = vsel %vm1465, %v1055, 0
      %v1524 = vsel %vm1465, %v1060, 0
      %v1527 = vsel %vm1465, %v1065, 0
      %v1530 = vsel %vm1465, %v1070, 0
      %v1533 = vsel %vm1465, %v1075, 0
      %v1536 = vsel %vm1465, %v1080, 0
      %v1539 = vsel %vm1465, %v1085, 0
      %v1542 = vsel %vm1465, %v1090, 0
      %v1545 = vsel %vm1465, %v1095, 0
      %v1548 = vsel %vm1465, %v1100, 0
      %v1551 = vsel %vm1465, %v1105, 0
      %v1554 = vsel %vm1465, %v1110, 0
      %v1557 = vsel %vm1465, %v1115, 0
      %v1560 = vsel %vm1465, %v1120, 0
      %1562 = vmatprep.subr.bf16.mxu0 0
      %1563 = vmatpush1.bf16.msra.mxu0 %v1393
      %1564 = vmatprep.subr.bf16.mxu0 0
      %1565 = vmatpush1.bf16.msra.mxu0 %v1394
      %1566 = vmatprep.subr.bf16.mxu0 0
      %1567 = vmatpush1.bf16.msra.mxu0 %v1395
      %1568 = vmatprep.subr.bf16.mxu0 0
      %1569 = vmatpush1.bf16.msra.mxu0 %v1396
      %1570 = vmatprep.subr.bf16.mxu0 0
      %1571 = vmatpush1.bf16.msra.mxu0 %v1397
      %1572 = vmatprep.subr.bf16.mxu0 0
      %1573 = vmatpush1.bf16.msra.mxu0 %v1398
      %1574 = vmatprep.subr.bf16.mxu0 0
      %1575 = vmatpush1.bf16.msra.mxu0 %v1399
      %1576 = vmatprep.subr.bf16.mxu0 0
      %1577 = vmatpush1.bf16.msra.mxu0 %v1400
      %1578 = vmatprep.subr.bf16.mxu0 0
      %1579 = vmatpush1.bf16.msra.mxu0 %v1401
      %1580 = vmatprep.subr.bf16.mxu0 0
      %1581 = vmatpush1.bf16.msra.mxu0 %v1402
      %1582 = vmatprep.subr.bf16.mxu0 0
      %1583 = vmatpush1.bf16.msra.mxu0 %v1403
      %1584 = vmatprep.subr.bf16.mxu0 0
      %1585 = vmatpush1.bf16.msra.mxu0 %v1404
      %1586 = vmatprep.subr.bf16.mxu0 0
      %1587 = vmatpush1.bf16.msra.mxu0 %v1405
      %1588 = vmatprep.subr.bf16.mxu0 0
      %1589 = vmatpush1.bf16.msra.mxu0 %v1406
      %1590 = vmatprep.subr.bf16.mxu0 0
      %1591 = vmatpush1.bf16.msra.mxu0 %v1407
      %1592 = vmatprep.subr.bf16.mxu0 0
      %1593 = vmatpush1.bf16.msra.mxu0 %v1408
      %1594 = vmatprep.mubr.bf16.mxu0 %v962
      %1595 = vmatmul.mubr.bf16.gmra.mrb[0].mxu0 %v961
      %v1596 = vpop.f32.mrb[0].mxu0
      %v1597 = vadd.f32 %v447, %v1596
      %v1598 = vpop.f32.mrb[0].mxu0
      %v1599 = vpop.f32.mrb[0].mxu0
      %v1600 = vadd.f32 %v447, %v1599
      %v1601 = vpop.f32.mrb[0].mxu0
      %1602 = vmatprep.mubr.bf16.mxu0 %v967
      %1603 = vmatmul.mubr.bf16.gmra.mrb[0].mxu0 %v966
      %v1604 = vpop.f32.mrb[0].mxu0
      %v1605 = vadd.f32 %v447, %v1604
      %v1606 = vpop.f32.mrb[0].mxu0
      %v1607 = vpop.f32.mrb[0].mxu0
      %v1608 = vadd.f32 %v447, %v1607
      %v1609 = vpop.f32.mrb[0].mxu0
      %1610 = vmatprep.mubr.bf16.mxu0 %v972
      %1611 = vmatmul.mubr.bf16.gmra.mrb[0].mxu0 %v971
      %v1612 = vpop.f32.mrb[0].mxu0
      %v1613 = vadd.f32 %v447, %v1612
      %v1614 = vpop.f32.mrb[0].mxu0
      %v1615 = vpop.f32.mrb[0].mxu0
      %v1616 = vadd.f32 %v447, %v1615
      %v1617 = vpop.f32.mrb[0].mxu0
      %1618 = vmatprep.mubr.bf16.mxu0 %v977
      %1619 = vmatmul.mubr.bf16.gmra.mrb[0].mxu0 %v976
      %v1620 = vpop.f32.mrb[0].mxu0
      %v1621 = vadd.f32 %v447, %v1620
      %v1622 = vpop.f32.mrb[0].mxu0
      %v1623 = vpop.f32.mrb[0].mxu0
      %v1624 = vadd.f32 %v447, %v1623
      %v1625 = vpop.f32.mrb[0].mxu0
      %1626 = vmatprep.mubr.bf16.mxu0 %v982
      %1627 = vmatmul.mubr.bf16.gmra.mrb[0].mxu0 %v981
      %v1628 = vpop.f32.mrb[0].mxu0
      %v1629 = vadd.f32 %v447, %v1628
      %v1630 = vpop.f32.mrb[0].mxu0
      %v1631 = vpop.f32.mrb[0].mxu0
      %v1632 = vadd.f32 %v447, %v1631
      %v1633 = vpop.f32.mrb[0].mxu0
      %1634 = vmatprep.mubr.bf16.mxu0 %v987
      %1635 = vmatmul.mubr.bf16.gmra.mrb[0].mxu0 %v986
      %v1636 = vpop.f32.mrb[0].mxu0
      %v1637 = vadd.f32 %v447, %v1636
      %v1638 = vpop.f32.mrb[0].mxu0
      %v1639 = vpop.f32.mrb[0].mxu0
      %v1640 = vadd.f32 %v447, %v1639
      %v1641 = vpop.f32.mrb[0].mxu0
      %1642 = vmatprep.mubr.bf16.mxu0 %v992
      %1643 = vmatmul.mubr.bf16.gmra.mrb[0].mxu0 %v991
      %v1644 = vpop.f32.mrb[0].mxu0
      %v1645 = vadd.f32 %v447, %v1644
      %v1646 = vpop.f32.mrb[0].mxu0
      %v1647 = vpop.f32.mrb[0].mxu0
      %v1648 = vadd.f32 %v447, %v1647
      %v1649 = vpop.f32.mrb[0].mxu0
      %1650 = vmatprep.mubr.bf16.mxu0 %v997
      %1651 = vmatmul.mubr.bf16.gmra.mrb[0].mxu0 %v996
      %v1652 = vpop.f32.mrb[0].mxu0
      %v1653 = vadd.f32 %v447, %v1652
      %v1654 = vpop.f32.mrb[0].mxu0
      %v1655 = vpop.f32.mrb[0].mxu0
      %v1656 = vadd.f32 %v447, %v1655
      %v1657 = vpop.f32.mrb[0].mxu0
      %1658 = vmatprep.mubr.bf16.mxu0 %v1002
      %1659 = vmatmul.mubr.bf16.gmra.mrb[0].mxu0 %v1001
      %v1660 = vpop.f32.mrb[0].mxu0
      %v1661 = vadd.f32 %v447, %v1660
      %v1662 = vpop.f32.mrb[0].mxu0
      %v1663 = vpop.f32.mrb[0].mxu0
      %v1664 = vadd.f32 %v447, %v1663
      %v1665 = vpop.f32.mrb[0].mxu0
      %1666 = vmatprep.mubr.bf16.mxu0 %v1007
      %1667 = vmatmul.mubr.bf16.gmra.mrb[0].mxu0 %v1006
      %v1668 = vpop.f32.mrb[0].mxu0
      %v1669 = vadd.f32 %v447, %v1668
      %v1670 = vpop.f32.mrb[0].mxu0
      %v1671 = vpop.f32.mrb[0].mxu0
      %v1672 = vadd.f32 %v447, %v1671
      %v1673 = vpop.f32.mrb[0].mxu0
      %1674 = vmatprep.mubr.bf16.mxu0 %v1012
      %1675 = vmatmul.mubr.bf16.gmra.mrb[0].mxu0 %v1011
      %v1676 = vpop.f32.mrb[0].mxu0
      %v1677 = vadd.f32 %v447, %v1676
      %v1678 = vpop.f32.mrb[0].mxu0
      %v1679 = vpop.f32.mrb[0].mxu0
      %v1680 = vadd.f32 %v447, %v1679
      %v1681 = vpop.f32.mrb[0].mxu0
      %1682 = vmatprep.mubr.bf16.mxu0 %v1017
      %1683 = vmatmul.mubr.bf16.gmra.mrb[0].mxu0 %v1016
      %v1684 = vpop.f32.mrb[0].mxu0
      %v1685 = vadd.f32 %v447, %v1684
      %v1686 = vpop.f32.mrb[0].mxu0
      %v1687 = vpop.f32.mrb[0].mxu0
      %v1688 = vadd.f32 %v447, %v1687
      %v1689 = vpop.f32.mrb[0].mxu0
      %1690 = vmatprep.mubr.bf16.mxu0 %v1022
      %1691 = vmatmul.mubr.bf16.gmra.mrb[0].mxu0 %v1021
      %v1692 = vpop.f32.mrb[0].mxu0
      %v1693 = vadd.f32 %v447, %v1692
      %v1694 = vpop.f32.mrb[0].mxu0
      %v1695 = vpop.f32.mrb[0].mxu0
      %v1696 = vadd.f32 %v447, %v1695
      %v1697 = vpop.f32.mrb[0].mxu0
      %1698 = vmatprep.mubr.bf16.mxu0 %v1027
      %1699 = vmatmul.mubr.bf16.gmra.mrb[0].mxu0 %v1026
      %v1700 = vpop.f32.mrb[0].mxu0
      %v1701 = vadd.f32 %v447, %v1700
      %v1702 = vpop.f32.mrb[0].mxu0
      %v1703 = vpop.f32.mrb[0].mxu0
      %v1704 = vadd.f32 %v447, %v1703
      %v1705 = vpop.f32.mrb[0].mxu0
      %1706 = vmatprep.mubr.bf16.mxu0 %v1032
      %1707 = vmatmul.mubr.bf16.gmra.mrb[0].mxu0 %v1031
      %v1708 = vpop.f32.mrb[0].mxu0
      %v1709 = vadd.f32 %v447, %v1708
      %v1710 = vpop.f32.mrb[0].mxu0
      %v1711 = vpop.f32.mrb[0].mxu0
      %v1712 = vadd.f32 %v447, %v1711
      %v1713 = vpop.f32.mrb[0].mxu0
      %1714 = vmatprep.mubr.bf16.mxu0 %v1037
      %1715 = vmatmul.mubr.bf16.gmra.mrb[0].mxu0 %v1036
      %v1716 = vpop.f32.mrb[0].mxu0
      %v1717 = vadd.f32 %v447, %v1716
      %v1718 = vpop.f32.mrb[0].mxu0
      %v1719 = vpop.f32.mrb[0].mxu0
      %v1720 = vadd.f32 %v447, %v1719
      %v1721 = vpop.f32.mrb[0].mxu0
      %1722 = vmatprep.mubr.bf16.mxu0 %v1042
      %1723 = vmatmul.mubr.bf16.gmra.mrb[0].mxu0 %v1041
      %v1724 = vpop.f32.mrb[0].mxu0
      %v1725 = vadd.f32 %v447, %v1724
      %v1726 = vpop.f32.mrb[0].mxu0
      %v1727 = vpop.f32.mrb[0].mxu0
      %v1728 = vadd.f32 %v447, %v1727
      %v1729 = vpop.f32.mrb[0].mxu0
      %1730 = vmatprep.mubr.bf16.mxu0 %v1047
      %1731 = vmatmul.mubr.bf16.gmra.mrb[0].mxu0 %v1046
      %v1732 = vpop.f32.mrb[0].mxu0
      %v1733 = vadd.f32 %v447, %v1732
      %v1734 = vpop.f32.mrb[0].mxu0
      %v1735 = vpop.f32.mrb[0].mxu0
      %v1736 = vadd.f32 %v447, %v1735
      %v1737 = vpop.f32.mrb[0].mxu0
      %1738 = vmatprep.mubr.bf16.mxu0 %v1052
      %1739 = vmatmul.mubr.bf16.gmra.mrb[0].mxu0 %v1051
      %v1740 = vpop.f32.mrb[0].mxu0
      %v1741 = vadd.f32 %v447, %v1740
      %v1742 = vpop.f32.mrb[0].mxu0
      %v1743 = vpop.f32.mrb[0].mxu0
      %v1744 = vadd.f32 %v447, %v1743
      %v1745 = vpop.f32.mrb[0].mxu0
      %1746 = vmatprep.mubr.bf16.mxu0 %v1057
      %1747 = vmatmul.mubr.bf16.gmra.mrb[0].mxu0 %v1056
      %v1748 = vpop.f32.mrb[0].mxu0
      %v1749 = vadd.f32 %v447, %v1748
      %v1750 = vpop.f32.mrb[0].mxu0
      %v1751 = vpop.f32.mrb[0].mxu0
      %v1752 = vadd.f32 %v447, %v1751
      %v1753 = vpop.f32.mrb[0].mxu0
      %1754 = vmatprep.mubr.bf16.mxu0 %v1062
      %1755 = vmatmul.mubr.bf16.gmra.mrb[0].mxu0 %v1061
      %v1756 = vpop.f32.mrb[0].mxu0
      %v1757 = vadd.f32 %v447, %v1756
      %v1758 = vpop.f32.mrb[0].mxu0
      %v1759 = vpop.f32.mrb[0].mxu0
      %v1760 = vadd.f32 %v447, %v1759
      %v1761 = vpop.f32.mrb[0].mxu0
      %1762 = vmatprep.mubr.bf16.mxu0 %v1067
      %1763 = vmatmul.mubr.bf16.gmra.mrb[0].mxu0 %v1066
      %v1764 = vpop.f32.mrb[0].mxu0
      %v1765 = vadd.f32 %v447, %v1764
      %v1766 = vpop.f32.mrb[0].mxu0
      %v1767 = vpop.f32.mrb[0].mxu0
      %v1768 = vadd.f32 %v447, %v1767
      %v1769 = vpop.f32.mrb[0].mxu0
      %1770 = vmatprep.mubr.bf16.mxu0 %v1072
      %1771 = vmatmul.mubr.bf16.gmra.mrb[0].mxu0 %v1071
      %v1772 = vpop.f32.mrb[0].mxu0
      %v1773 = vadd.f32 %v447, %v1772
      %v1774 = vpop.f32.mrb[0].mxu0
      %v1775 = vpop.f32.mrb[0].mxu0
      %v1776 = vadd.f32 %v447, %v1775
      %v1777 = vpop.f32.mrb[0].mxu0
      %1778 = vmatprep.mubr.bf16.mxu0 %v1077
      %1779 = vmatmul.mubr.bf16.gmra.mrb[0].mxu0 %v1076
      %v1780 = vpop.f32.mrb[0].mxu0
      %v1781 = vadd.f32 %v447, %v1780
      %v1782 = vpop.f32.mrb[0].mxu0
      %v1783 = vpop.f32.mrb[0].mxu0
      %v1784 = vadd.f32 %v447, %v1783
      %v1785 = vpop.f32.mrb[0].mxu0
      %1786 = vmatprep.mubr.bf16.mxu0 %v1082
      %1787 = vmatmul.mubr.bf16.gmra.mrb[0].mxu0 %v1081
      %v1788 = vpop.f32.mrb[0].mxu0
      %v1789 = vadd.f32 %v447, %v1788
      %v1790 = vpop.f32.mrb[0].mxu0
      %v1791 = vpop.f32.mrb[0].mxu0
      %v1792 = vadd.f32 %v447, %v1791
      %v1793 = vpop.f32.mrb[0].mxu0
      %1794 = vmatprep.mubr.bf16.mxu0 %v1087
      %1795 = vmatmul.mubr.bf16.gmra.mrb[0].mxu0 %v1086
      %v1796 = vpop.f32.mrb[0].mxu0
      %v1797 = vadd.f32 %v447, %v1796
      %v1798 = vpop.f32.mrb[0].mxu0
      %v1799 = vpop.f32.mrb[0].mxu0
      %v1800 = vadd.f32 %v447, %v1799
      %v1801 = vpop.f32.mrb[0].mxu0
      %1802 = vmatprep.mubr.bf16.mxu0 %v1092
      %1803 = vmatmul.mubr.bf16.gmra.mrb[0].mxu0 %v1091
      %v1804 = vpop.f32.mrb[0].mxu0
      %v1805 = vadd.f32 %v447, %v1804
      %v1806 = vpop.f32.mrb[0].mxu0
      %v1807 = vpop.f32.mrb[0].mxu0
      %v1808 = vadd.f32 %v447, %v1807
      %v1809 = vpop.f32.mrb[0].mxu0
      %1810 = vmatprep.mubr.bf16.mxu0 %v1097
      %1811 = vmatmul.mubr.bf16.gmra.mrb[0].mxu0 %v1096
      %v1812 = vpop.f32.mrb[0].mxu0
      %v1813 = vadd.f32 %v447, %v1812
      %v1814 = vpop.f32.mrb[0].mxu0
      %v1815 = vpop.f32.mrb[0].mxu0
      %v1816 = vadd.f32 %v447, %v1815
      %v1817 = vpop.f32.mrb[0].mxu0
      %1818 = vmatprep.mubr.bf16.mxu0 %v1102
      %1819 = vmatmul.mubr.bf16.gmra.mrb[0].mxu0 %v1101
      %v1820 = vpop.f32.mrb[0].mxu0
      %v1821 = vadd.f32 %v447, %v1820
      %v1822 = vpop.f32.mrb[0].mxu0
      %v1823 = vpop.f32.mrb[0].mxu0
      %v1824 = vadd.f32 %v447, %v1823
      %v1825 = vpop.f32.mrb[0].mxu0
      %1826 = vmatprep.mubr.bf16.mxu0 %v1107
      %1827 = vmatmul.mubr.bf16.gmra.mrb[0].mxu0 %v1106
      %v1828 = vpop.f32.mrb[0].mxu0
      %v1829 = vadd.f32 %v447, %v1828
      %v1830 = vpop.f32.mrb[0].mxu0
      %v1831 = vpop.f32.mrb[0].mxu0
      %v1832 = vadd.f32 %v447, %v1831
      %v1833 = vpop.f32.mrb[0].mxu0
      %1834 = vmatprep.mubr.bf16.mxu0 %v1112
      %1835 = vmatmul.mubr.bf16.gmra.mrb[0].mxu0 %v1111
      %v1836 = vpop.f32.mrb[0].mxu0
      %v1837 = vadd.f32 %v447, %v1836
      %v1838 = vpop.f32.mrb[0].mxu0
      %v1839 = vpop.f32.mrb[0].mxu0
      %v1840 = vadd.f32 %v447, %v1839
      %v1841 = vpop.f32.mrb[0].mxu0
      %1842 = vmatprep.mubr.bf16.mxu0 %v1117
      %1843 = vmatmul.mubr.bf16.gmra.mrb[0].mxu0 %v1116
      %v1844 = vpop.f32.mrb[0].mxu0
      %v1845 = vadd.f32 %v447, %v1844
      %v1846 = vpop.f32.mrb[0].mxu0
      %v1847 = vpop.f32.mrb[0].mxu0
      %v1848 = vadd.f32 %v447, %v1847
      %v1849 = vpop.f32.mrb[0].mxu0
      %1850 = vdwg.mxu0
      %1851 = vmatprep.subr.bf16.mxu0 0
      %1852 = vmatpush1.bf16.msra.mxu0 %v1409
      %1853 = vmatprep.subr.bf16.mxu0 0
      %1854 = vmatpush1.bf16.msra.mxu0 %v1410
      %1855 = vmatprep.subr.bf16.mxu0 0
      %1856 = vmatpush1.bf16.msra.mxu0 %v1411
      %1857 = vmatprep.subr.bf16.mxu0 0
      %1858 = vmatpush1.bf16.msra.mxu0 %v1412
      %1859 = vmatprep.subr.bf16.mxu0 0
      %1860 = vmatpush1.bf16.msra.mxu0 %v1413
      %1861 = vmatprep.subr.bf16.mxu0 0
      %1862 = vmatpush1.bf16.msra.mxu0 %v1414
      %1863 = vmatprep.subr.bf16.mxu0 0
      %1864 = vmatpush1.bf16.msra.mxu0 %v1415
      %1865 = vmatprep.subr.bf16.mxu0 0
      %1866 = vmatpush1.bf16.msra.mxu0 %v1416
      %1867 = vmatprep.subr.bf16.mxu0 0
      %1868 = vmatpush1.bf16.msra.mxu0 %v1417
      %1869 = vmatprep.subr.bf16.mxu0 0
      %1870 = vmatpush1.bf16.msra.mxu0 %v1418
      %1871 = vmatprep.subr.bf16.mxu0 0
      %1872 = vmatpush1.bf16.msra.mxu0 %v1419
      %1873 = vmatprep.subr.bf16.mxu0 0
      %1874 = vmatpush1.bf16.msra.mxu0 %v1420
      %1875 = vmatprep.subr.bf16.mxu0 0
      %1876 = vmatpush1.bf16.msra.mxu0 %v1421
      %1877 = vmatprep.subr.bf16.mxu0 0
      %1878 = vmatpush1.bf16.msra.mxu0 %v1422
      %1879 = vmatprep.subr.bf16.mxu0 0
      %1880 = vmatpush1.bf16.msra.mxu0 %v1423
      %1881 = vmatprep.subr.bf16.mxu0 0
      %1882 = vmatpush1.bf16.msra.mxu0 %v1424
      %1883 = vmatprep.mubr.bf16.mxu0 %v964
      %1884 = vmatmul.mubr.bf16.gmra.mrb[0].mxu0 %v963
      %v1885 = vpop.f32.mrb[0].mxu0
      %v1886 = vadd.f32 %v1597, %v1885
      %v1887 = vpop.f32.mrb[0].mxu0
      %v1888 = vpop.f32.mrb[0].mxu0
      %v1889 = vadd.f32 %v1600, %v1888
      %v1890 = vpop.f32.mrb[0].mxu0
      %1891 = vmatprep.mubr.bf16.mxu0 %v969
      %1892 = vmatmul.mubr.bf16.gmra.mrb[0].mxu0 %v968
      %v1893 = vpop.f32.mrb[0].mxu0
      %v1894 = vadd.f32 %v1605, %v1893
      %v1895 = vpop.f32.mrb[0].mxu0
      %v1896 = vpop.f32.mrb[0].mxu0
      %v1897 = vadd.f32 %v1608, %v1896
      %v1898 = vpop.f32.mrb[0].mxu0
      %1899 = vmatprep.mubr.bf16.mxu0 %v974
      %1900 = vmatmul.mubr.bf16.gmra.mrb[0].mxu0 %v973
      %v1901 = vpop.f32.mrb[0].mxu0
      %v1902 = vadd.f32 %v1613, %v1901
      %v1903 = vpop.f32.mrb[0].mxu0
      %v1904 = vpop.f32.mrb[0].mxu0
      %v1905 = vadd.f32 %v1616, %v1904
      %v1906 = vpop.f32.mrb[0].mxu0
      %1907 = vmatprep.mubr.bf16.mxu0 %v979
      %1908 = vmatmul.mubr.bf16.gmra.mrb[0].mxu0 %v978
      %v1909 = vpop.f32.mrb[0].mxu0
      %v1910 = vadd.f32 %v1621, %v1909
      %v1911 = vpop.f32.mrb[0].mxu0
      %v1912 = vpop.f32.mrb[0].mxu0
      %v1913 = vadd.f32 %v1624, %v1912
      %v1914 = vpop.f32.mrb[0].mxu0
      %1915 = vmatprep.mubr.bf16.mxu0 %v984
      %1916 = vmatmul.mubr.bf16.gmra.mrb[0].mxu0 %v983
      %v1917 = vpop.f32.mrb[0].mxu0
      %v1918 = vadd.f32 %v1629, %v1917
      %v1919 = vpop.f32.mrb[0].mxu0
      %v1920 = vpop.f32.mrb[0].mxu0
      %v1921 = vadd.f32 %v1632, %v1920
      %v1922 = vpop.f32.mrb[0].mxu0
      %1923 = vmatprep.mubr.bf16.mxu0 %v989
      %1924 = vmatmul.mubr.bf16.gmra.mrb[0].mxu0 %v988
      %v1925 = vpop.f32.mrb[0].mxu0
      %v1926 = vadd.f32 %v1637, %v1925
      %v1927 = vpop.f32.mrb[0].mxu0
      %v1928 = vpop.f32.mrb[0].mxu0
      %v1929 = vadd.f32 %v1640, %v1928
      %v1930 = vpop.f32.mrb[0].mxu0
      %1931 = vmatprep.mubr.bf16.mxu0 %v994
      %1932 = vmatmul.mubr.bf16.gmra.mrb[0].mxu0 %v993
      %v1933 = vpop.f32.mrb[0].mxu0
      %v1934 = vadd.f32 %v1645, %v1933
      %v1935 = vpop.f32.mrb[0].mxu0
      %v1936 = vpop.f32.mrb[0].mxu0
      %v1937 = vadd.f32 %v1648, %v1936
      %v1938 = vpop.f32.mrb[0].mxu0
      %1939 = vmatprep.mubr.bf16.mxu0 %v999
      %1940 = vmatmul.mubr.bf16.gmra.mrb[0].mxu0 %v998
      %v1941 = vpop.f32.mrb[0].mxu0
      %v1942 = vadd.f32 %v1653, %v1941
      %v1943 = vpop.f32.mrb[0].mxu0
      %v1944 = vpop.f32.mrb[0].mxu0
      %v1945 = vadd.f32 %v1656, %v1944
      %v1946 = vpop.f32.mrb[0].mxu0
      %1947 = vmatprep.mubr.bf16.mxu0 %v1004
      %1948 = vmatmul.mubr.bf16.gmra.mrb[0].mxu0 %v1003
      %v1949 = vpop.f32.mrb[0].mxu0
      %v1950 = vadd.f32 %v1661, %v1949
      %v1951 = vpop.f32.mrb[0].mxu0
      %v1952 = vpop.f32.mrb[0].mxu0
      %v1953 = vadd.f32 %v1664, %v1952
      %v1954 = vpop.f32.mrb[0].mxu0
      %1955 = vmatprep.mubr.bf16.mxu0 %v1009
      %1956 = vmatmul.mubr.bf16.gmra.mrb[0].mxu0 %v1008
      %v1957 = vpop.f32.mrb[0].mxu0
      %v1958 = vadd.f32 %v1669, %v1957
      %v1959 = vpop.f32.mrb[0].mxu0
      %v1960 = vpop.f32.mrb[0].mxu0
      %v1961 = vadd.f32 %v1672, %v1960
      %v1962 = vpop.f32.mrb[0].mxu0
      %1963 = vmatprep.mubr.bf16.mxu0 %v1014
      %1964 = vmatmul.mubr.bf16.gmra.mrb[0].mxu0 %v1013
      %v1965 = vpop.f32.mrb[0].mxu0
      %v1966 = vadd.f32 %v1677, %v1965
      %v1967 = vpop.f32.mrb[0].mxu0
      %v1968 = vpop.f32.mrb[0].mxu0
      %v1969 = vadd.f32 %v1680, %v1968
      %v1970 = vpop.f32.mrb[0].mxu0
      %1971 = vmatprep.mubr.bf16.mxu0 %v1019
      %1972 = vmatmul.mubr.bf16.gmra.mrb[0].mxu0 %v1018
      %v1973 = vpop.f32.mrb[0].mxu0
      %v1974 = vadd.f32 %v1685, %v1973
      %v1975 = vpop.f32.mrb[0].mxu0
      %v1976 = vpop.f32.mrb[0].mxu0
      %v1977 = vadd.f32 %v1688, %v1976
      %v1978 = vpop.f32.mrb[0].mxu0
      %1979 = vmatprep.mubr.bf16.mxu0 %v1024
      %1980 = vmatmul.mubr.bf16.gmra.mrb[0].mxu0 %v1023
      %v1981 = vpop.f32.mrb[0].mxu0
      %v1982 = vadd.f32 %v1693, %v1981
      %v1983 = vpop.f32.mrb[0].mxu0
      %v1984 = vpop.f32.mrb[0].mxu0
      %v1985 = vadd.f32 %v1696, %v1984
      %v1986 = vpop.f32.mrb[0].mxu0
      %1987 = vmatprep.mubr.bf16.mxu0 %v1029
      %1988 = vmatmul.mubr.bf16.gmra.mrb[0].mxu0 %v1028
      %v1989 = vpop.f32.mrb[0].mxu0
      %v1990 = vadd.f32 %v1701, %v1989
      %v1991 = vpop.f32.mrb[0].mxu0
      %v1992 = vpop.f32.mrb[0].mxu0
      %v1993 = vadd.f32 %v1704, %v1992
      %v1994 = vpop.f32.mrb[0].mxu0
      %1995 = vmatprep.mubr.bf16.mxu0 %v1034
      %1996 = vmatmul.mubr.bf16.gmra.mrb[0].mxu0 %v1033
      %v1997 = vpop.f32.mrb[0].mxu0
      %v1998 = vadd.f32 %v1709, %v1997
      %v1999 = vpop.f32.mrb[0].mxu0
      %v2000 = vpop.f32.mrb[0].mxu0
      %v2001 = vadd.f32 %v1712, %v2000
      %v2002 = vpop.f32.mrb[0].mxu0
      %2003 = vmatprep.mubr.bf16.mxu0 %v1039
      %2004 = vmatmul.mubr.bf16.gmra.mrb[0].mxu0 %v1038
      %v2005 = vpop.f32.mrb[0].mxu0
      %v2006 = vadd.f32 %v1717, %v2005
      %v2007 = vpop.f32.mrb[0].mxu0
      %v2008 = vpop.f32.mrb[0].mxu0
      %v2009 = vadd.f32 %v1720, %v2008
      %v2010 = vpop.f32.mrb[0].mxu0
      %2011 = vmatprep.mubr.bf16.mxu0 %v1044
      %2012 = vmatmul.mubr.bf16.gmra.mrb[0].mxu0 %v1043
      %v2013 = vpop.f32.mrb[0].mxu0
      %v2014 = vadd.f32 %v1725, %v2013
      %v2015 = vpop.f32.mrb[0].mxu0
      %v2016 = vpop.f32.mrb[0].mxu0
      %v2017 = vadd.f32 %v1728, %v2016
      %v2018 = vpop.f32.mrb[0].mxu0
      %2019 = vmatprep.mubr.bf16.mxu0 %v1049
      %2020 = vmatmul.mubr.bf16.gmra.mrb[0].mxu0 %v1048
      %v2021 = vpop.f32.mrb[0].mxu0
      %v2022 = vadd.f32 %v1733, %v2021
      %v2023 = vpop.f32.mrb[0].mxu0
      %v2024 = vpop.f32.mrb[0].mxu0
      %v2025 = vadd.f32 %v1736, %v2024
      %v2026 = vpop.f32.mrb[0].mxu0
      %2027 = vmatprep.mubr.bf16.mxu0 %v1054
      %2028 = vmatmul.mubr.bf16.gmra.mrb[0].mxu0 %v1053
      %v2029 = vpop.f32.mrb[0].mxu0
      %v2030 = vadd.f32 %v1741, %v2029
      %v2031 = vpop.f32.mrb[0].mxu0
      %v2032 = vpop.f32.mrb[0].mxu0
      %v2033 = vadd.f32 %v1744, %v2032
      %v2034 = vpop.f32.mrb[0].mxu0
      %2035 = vmatprep.mubr.bf16.mxu0 %v1059
      %2036 = vmatmul.mubr.bf16.gmra.mrb[0].mxu0 %v1058
      %v2037 = vpop.f32.mrb[0].mxu0
      %v2038 = vadd.f32 %v1749, %v2037
      %v2039 = vpop.f32.mrb[0].mxu0
      %v2040 = vpop.f32.mrb[0].mxu0
      %v2041 = vadd.f32 %v1752, %v2040
      %v2042 = vpop.f32.mrb[0].mxu0
      %2043 = vmatprep.mubr.bf16.mxu0 %v1064
      %2044 = vmatmul.mubr.bf16.gmra.mrb[0].mxu0 %v1063
      %v2045 = vpop.f32.mrb[0].mxu0
      %v2046 = vadd.f32 %v1757, %v2045
      %v2047 = vpop.f32.mrb[0].mxu0
      %v2048 = vpop.f32.mrb[0].mxu0
      %v2049 = vadd.f32 %v1760, %v2048
      %v2050 = vpop.f32.mrb[0].mxu0
      %2051 = vmatprep.mubr.bf16.mxu0 %v1069
      %2052 = vmatmul.mubr.bf16.gmra.mrb[0].mxu0 %v1068
      %v2053 = vpop.f32.mrb[0].mxu0
      %v2054 = vadd.f32 %v1765, %v2053
      %v2055 = vpop.f32.mrb[0].mxu0
      %v2056 = vpop.f32.mrb[0].mxu0
      %v2057 = vadd.f32 %v1768, %v2056
      %v2058 = vpop.f32.mrb[0].mxu0
      %2059 = vmatprep.mubr.bf16.mxu0 %v1074
      %2060 = vmatmul.mubr.bf16.gmra.mrb[0].mxu0 %v1073
      %v2061 = vpop.f32.mrb[0].mxu0
      %v2062 = vadd.f32 %v1773, %v2061
      %v2063 = vpop.f32.mrb[0].mxu0
      %v2064 = vpop.f32.mrb[0].mxu0
      %v2065 = vadd.f32 %v1776, %v2064
      %v2066 = vpop.f32.mrb[0].mxu0
      %2067 = vmatprep.mubr.bf16.mxu0 %v1079
      %2068 = vmatmul.mubr.bf16.gmra.mrb[0].mxu0 %v1078
      %v2069 = vpop.f32.mrb[0].mxu0
      %v2070 = vadd.f32 %v1781, %v2069
      %v2071 = vpop.f32.mrb[0].mxu0
      %v2072 = vpop.f32.mrb[0].mxu0
      %v2073 = vadd.f32 %v1784, %v2072
      %v2074 = vpop.f32.mrb[0].mxu0
      %2075 = vmatprep.mubr.bf16.mxu0 %v1084
      %2076 = vmatmul.mubr.bf16.gmra.mrb[0].mxu0 %v1083
      %v2077 = vpop.f32.mrb[0].mxu0
      %v2078 = vadd.f32 %v1789, %v2077
      %v2079 = vpop.f32.mrb[0].mxu0
      %v2080 = vpop.f32.mrb[0].mxu0
      %v2081 = vadd.f32 %v1792, %v2080
      %v2082 = vpop.f32.mrb[0].mxu0
      %2083 = vmatprep.mubr.bf16.mxu0 %v1089
      %2084 = vmatmul.mubr.bf16.gmra.mrb[0].mxu0 %v1088
      %v2085 = vpop.f32.mrb[0].mxu0
      %v2086 = vadd.f32 %v1797, %v2085
      %v2087 = vpop.f32.mrb[0].mxu0
      %v2088 = vpop.f32.mrb[0].mxu0
      %v2089 = vadd.f32 %v1800, %v2088
      %v2090 = vpop.f32.mrb[0].mxu0
      %2091 = vmatprep.mubr.bf16.mxu0 %v1094
      %2092 = vmatmul.mubr.bf16.gmra.mrb[0].mxu0 %v1093
      %v2093 = vpop.f32.mrb[0].mxu0
      %v2094 = vadd.f32 %v1805, %v2093
      %v2095 = vpop.f32.mrb[0].mxu0
      %v2096 = vpop.f32.mrb[0].mxu0
      %v2097 = vadd.f32 %v1808, %v2096
      %v2098 = vpop.f32.mrb[0].mxu0
      %2099 = vmatprep.mubr.bf16.mxu0 %v1099
      %2100 = vmatmul.mubr.bf16.gmra.mrb[0].mxu0 %v1098
      %v2101 = vpop.f32.mrb[0].mxu0
      %v2102 = vadd.f32 %v1813, %v2101
      %v2103 = vpop.f32.mrb[0].mxu0
      %v2104 = vpop.f32.mrb[0].mxu0
      %v2105 = vadd.f32 %v1816, %v2104
      %v2106 = vpop.f32.mrb[0].mxu0
      %2107 = vmatprep.mubr.bf16.mxu0 %v1104
      %2108 = vmatmul.mubr.bf16.gmra.mrb[0].mxu0 %v1103
      %v2109 = vpop.f32.mrb[0].mxu0
      %v2110 = vadd.f32 %v1821, %v2109
      %v2111 = vpop.f32.mrb[0].mxu0
      %v2112 = vpop.f32.mrb[0].mxu0
      %v2113 = vadd.f32 %v1824, %v2112
      %v2114 = vpop.f32.mrb[0].mxu0
      %2115 = vmatprep.mubr.bf16.mxu0 %v1109
      %2116 = vmatmul.mubr.bf16.gmra.mrb[0].mxu0 %v1108
      %v2117 = vpop.f32.mrb[0].mxu0
      %v2118 = vadd.f32 %v1829, %v2117
      %v2119 = vpop.f32.mrb[0].mxu0
      %v2120 = vpop.f32.mrb[0].mxu0
      %v2121 = vadd.f32 %v1832, %v2120
      %v2122 = vpop.f32.mrb[0].mxu0
      %2123 = vmatprep.mubr.bf16.mxu0 %v1114
      %2124 = vmatmul.mubr.bf16.gmra.mrb[0].mxu0 %v1113
      %v2125 = vpop.f32.mrb[0].mxu0
      %v2126 = vadd.f32 %v1837, %v2125
      %v2127 = vpop.f32.mrb[0].mxu0
      %v2128 = vpop.f32.mrb[0].mxu0
      %v2129 = vadd.f32 %v1840, %v2128
      %v2130 = vpop.f32.mrb[0].mxu0
      %2131 = vmatprep.mubr.bf16.mxu0 %v1119
      %2132 = vmatmul.mubr.bf16.gmra.mrb[0].mxu0 %v1118
      %v2133 = vpop.f32.mrb[0].mxu0
      %v2134 = vadd.f32 %v1845, %v2133
      %v2135 = vpop.f32.mrb[0].mxu0
      %v2136 = vpop.f32.mrb[0].mxu0
      %v2137 = vadd.f32 %v1848, %v2136
      %v2138 = vpop.f32.mrb[0].mxu0
      %2139 = vdwg.mxu0
      %2140 = vmatprep.subr.bf16.mxu0 0
      %2141 = vmatpush1.bf16.msra.mxu0 %v1425
      %2142 = vmatprep.subr.bf16.mxu0 0
      %2143 = vmatpush1.bf16.msra.mxu0 %v1426
      %2144 = vmatprep.subr.bf16.mxu0 0
      %2145 = vmatpush1.bf16.msra.mxu0 %v1427
      %2146 = vmatprep.subr.bf16.mxu0 0
      %2147 = vmatpush1.bf16.msra.mxu0 %v1428
      %2148 = vmatprep.subr.bf16.mxu0 0
      %2149 = vmatpush1.bf16.msra.mxu0 0
      %2150 = vmatprep.subr.bf16.mxu0 0
      %2151 = vmatpush1.bf16.msra.mxu0 0
      %2152 = vmatprep.subr.bf16.mxu0 0
      %2153 = vmatpush1.bf16.msra.mxu0 0
      %2154 = vmatprep.subr.bf16.mxu0 0
      %2155 = vmatpush1.bf16.msra.mxu0 0
      %2156 = vmatprep.subr.bf16.mxu0 0
      %2157 = vmatpush1.bf16.msra.mxu0 0
      %2158 = vmatprep.subr.bf16.mxu0 0
      %2159 = vmatpush1.bf16.msra.mxu0 0
      %2160 = vmatprep.subr.bf16.mxu0 0
      %2161 = vmatpush1.bf16.msra.mxu0 0
      %2162 = vmatprep.subr.bf16.mxu0 0
      %2163 = vmatpush1.bf16.msra.mxu0 0
      %2164 = vmatprep.subr.bf16.mxu0 0
      %2165 = vmatpush1.bf16.msra.mxu0 0
      %2166 = vmatprep.subr.bf16.mxu0 0
      %2167 = vmatpush1.bf16.msra.mxu0 0
      %2168 = vmatprep.subr.bf16.mxu0 0
      %2169 = vmatpush1.bf16.msra.mxu0 0
      %2170 = vmatprep.subr.bf16.mxu0 0
      %2171 = vmatpush1.bf16.msra.mxu0 0
      %2172 = vmatprep.mubr.bf16.mxu0 0
      %2173 = vmatmul.mubr.bf16.gmra.mrb[0].mxu0 %v1467
      %v2174 = vpop.f32.mrb[0].mxu0
      %v2175 = vadd.f32 %v1886, %v2174
      %v2176 = vpop.f32.mrb[0].mxu0
      %v2177 = vpop.f32.mrb[0].mxu0
      %v2178 = vadd.f32 %v1889, %v2177
      %v2179 = vpop.f32.mrb[0].mxu0
      %2180 = vmatprep.mubr.bf16.mxu0 0
      %2181 = vmatmul.mubr.bf16.gmra.mrb[0].mxu0 %v1470
      %v2182 = vpop.f32.mrb[0].mxu0
      %v2183 = vadd.f32 %v1894, %v2182
      %v2184 = vpop.f32.mrb[0].mxu0
      %v2185 = vpop.f32.mrb[0].mxu0
      %v2186 = vadd.f32 %v1897, %v2185
      %v2187 = vpop.f32.mrb[0].mxu0
      %2188 = vmatprep.mubr.bf16.mxu0 0
      %2189 = vmatmul.mubr.bf16.gmra.mrb[0].mxu0 %v1473
      %v2190 = vpop.f32.mrb[0].mxu0
      %v2191 = vadd.f32 %v1902, %v2190
      %v2192 = vpop.f32.mrb[0].mxu0
      %v2193 = vpop.f32.mrb[0].mxu0
      %v2194 = vadd.f32 %v1905, %v2193
      %v2195 = vpop.f32.mrb[0].mxu0
      %2196 = vmatprep.mubr.bf16.mxu0 0
      %2197 = vmatmul.mubr.bf16.gmra.mrb[0].mxu0 %v1476
      %v2198 = vpop.f32.mrb[0].mxu0
      %v2199 = vadd.f32 %v1910, %v2198
      %v2200 = vpop.f32.mrb[0].mxu0
      %v2201 = vpop.f32.mrb[0].mxu0
      %v2202 = vadd.f32 %v1913, %v2201
      %v2203 = vpop.f32.mrb[0].mxu0
      %2204 = vmatprep.mubr.bf16.mxu0 0
      %2205 = vmatmul.mubr.bf16.gmra.mrb[0].mxu0 %v1479
      %v2206 = vpop.f32.mrb[0].mxu0
      %v2207 = vadd.f32 %v1918, %v2206
      %v2208 = vpop.f32.mrb[0].mxu0
      %v2209 = vpop.f32.mrb[0].mxu0
      %v2210 = vadd.f32 %v1921, %v2209
      %v2211 = vpop.f32.mrb[0].mxu0
      %2212 = vmatprep.mubr.bf16.mxu0 0
      %2213 = vmatmul.mubr.bf16.gmra.mrb[0].mxu0 %v1482
      %v2214 = vpop.f32.mrb[0].mxu0
      %v2215 = vadd.f32 %v1926, %v2214
      %v2216 = vpop.f32.mrb[0].mxu0
      %v2217 = vpop.f32.mrb[0].mxu0
      %v2218 = vadd.f32 %v1929, %v2217
      %v2219 = vpop.f32.mrb[0].mxu0
      %2220 = vmatprep.mubr.bf16.mxu0 0
      %2221 = vmatmul.mubr.bf16.gmra.mrb[0].mxu0 %v1485
      %v2222 = vpop.f32.mrb[0].mxu0
      %v2223 = vadd.f32 %v1934, %v2222
      %v2224 = vpop.f32.mrb[0].mxu0
      %v2225 = vpop.f32.mrb[0].mxu0
      %v2226 = vadd.f32 %v1937, %v2225
      %v2227 = vpop.f32.mrb[0].mxu0
      %2228 = vmatprep.mubr.bf16.mxu0 0
      %2229 = vmatmul.mubr.bf16.gmra.mrb[0].mxu0 %v1488
      %v2230 = vpop.f32.mrb[0].mxu0
      %v2231 = vadd.f32 %v1942, %v2230
      %v2232 = vpop.f32.mrb[0].mxu0
      %v2233 = vpop.f32.mrb[0].mxu0
      %v2234 = vadd.f32 %v1945, %v2233
      %v2235 = vpop.f32.mrb[0].mxu0
      %2236 = vmatprep.mubr.bf16.mxu0 0
      %2237 = vmatmul.mubr.bf16.gmra.mrb[0].mxu0 %v1491
      %v2238 = vpop.f32.mrb[0].mxu0
      %v2239 = vadd.f32 %v1950, %v2238
      %v2240 = vpop.f32.mrb[0].mxu0
      %v2241 = vpop.f32.mrb[0].mxu0
      %v2242 = vadd.f32 %v1953, %v2241
      %v2243 = vpop.f32.mrb[0].mxu0
      %2244 = vmatprep.mubr.bf16.mxu0 0
      %2245 = vmatmul.mubr.bf16.gmra.mrb[0].mxu0 %v1494
      %v2246 = vpop.f32.mrb[0].mxu0
      %v2247 = vadd.f32 %v1958, %v2246
      %v2248 = vpop.f32.mrb[0].mxu0
      %v2249 = vpop.f32.mrb[0].mxu0
      %v2250 = vadd.f32 %v1961, %v2249
      %v2251 = vpop.f32.mrb[0].mxu0
      %2252 = vmatprep.mubr.bf16.mxu0 0
      %2253 = vmatmul.mubr.bf16.gmra.mrb[0].mxu0 %v1497
      %v2254 = vpop.f32.mrb[0].mxu0
      %v2255 = vadd.f32 %v1966, %v2254
      %v2256 = vpop.f32.mrb[0].mxu0
      %v2257 = vpop.f32.mrb[0].mxu0
      %v2258 = vadd.f32 %v1969, %v2257
      %v2259 = vpop.f32.mrb[0].mxu0
      %2260 = vmatprep.mubr.bf16.mxu0 0
      %2261 = vmatmul.mubr.bf16.gmra.mrb[0].mxu0 %v1500
      %v2262 = vpop.f32.mrb[0].mxu0
      %v2263 = vadd.f32 %v1974, %v2262
      %v2264 = vpop.f32.mrb[0].mxu0
      %v2265 = vpop.f32.mrb[0].mxu0
      %v2266 = vadd.f32 %v1977, %v2265
      %v2267 = vpop.f32.mrb[0].mxu0
      %2268 = vmatprep.mubr.bf16.mxu0 0
      %2269 = vmatmul.mubr.bf16.gmra.mrb[0].mxu0 %v1503
      %v2270 = vpop.f32.mrb[0].mxu0
      %v2271 = vadd.f32 %v1982, %v2270
      %v2272 = vpop.f32.mrb[0].mxu0
      %v2273 = vpop.f32.mrb[0].mxu0
      %v2274 = vadd.f32 %v1985, %v2273
      %v2275 = vpop.f32.mrb[0].mxu0
      %2276 = vmatprep.mubr.bf16.mxu0 0
      %2277 = vmatmul.mubr.bf16.gmra.mrb[0].mxu0 %v1506
      %v2278 = vpop.f32.mrb[0].mxu0
      %v2279 = vadd.f32 %v1990, %v2278
      %v2280 = vpop.f32.mrb[0].mxu0
      %v2281 = vpop.f32.mrb[0].mxu0
      %v2282 = vadd.f32 %v1993, %v2281
      %v2283 = vpop.f32.mrb[0].mxu0
      %2284 = vmatprep.mubr.bf16.mxu0 0
      %2285 = vmatmul.mubr.bf16.gmra.mrb[0].mxu0 %v1509
      %v2286 = vpop.f32.mrb[0].mxu0
      %v2287 = vadd.f32 %v1998, %v2286
      %v2288 = vpop.f32.mrb[0].mxu0
      %v2289 = vpop.f32.mrb[0].mxu0
      %v2290 = vadd.f32 %v2001, %v2289
      %v2291 = vpop.f32.mrb[0].mxu0
      %2292 = vmatprep.mubr.bf16.mxu0 0
      %2293 = vmatmul.mubr.bf16.gmra.mrb[0].mxu0 %v1512
      %v2294 = vpop.f32.mrb[0].mxu0
      %v2295 = vadd.f32 %v2006, %v2294
      %v2296 = vpop.f32.mrb[0].mxu0
      %v2297 = vpop.f32.mrb[0].mxu0
      %v2298 = vadd.f32 %v2009, %v2297
      %v2299 = vpop.f32.mrb[0].mxu0
      %2300 = vmatprep.mubr.bf16.mxu0 0
      %2301 = vmatmul.mubr.bf16.gmra.mrb[0].mxu0 %v1515
      %v2302 = vpop.f32.mrb[0].mxu0
      %v2303 = vadd.f32 %v2014, %v2302
      %v2304 = vpop.f32.mrb[0].mxu0
      %v2305 = vpop.f32.mrb[0].mxu0
      %v2306 = vadd.f32 %v2017, %v2305
      %v2307 = vpop.f32.mrb[0].mxu0
      %2308 = vmatprep.mubr.bf16.mxu0 0
      %2309 = vmatmul.mubr.bf16.gmra.mrb[0].mxu0 %v1518
      %v2310 = vpop.f32.mrb[0].mxu0
      %v2311 = vadd.f32 %v2022, %v2310
      %v2312 = vpop.f32.mrb[0].mxu0
      %v2313 = vpop.f32.mrb[0].mxu0
      %v2314 = vadd.f32 %v2025, %v2313
      %v2315 = vpop.f32.mrb[0].mxu0
      %2316 = vmatprep.mubr.bf16.mxu0 0
      %2317 = vmatmul.mubr.bf16.gmra.mrb[0].mxu0 %v1521
      %v2318 = vpop.f32.mrb[0].mxu0
      %v2319 = vadd.f32 %v2030, %v2318
      %v2320 = vpop.f32.mrb[0].mxu0
      %v2321 = vpop.f32.mrb[0].mxu0
      %v2322 = vadd.f32 %v2033, %v2321
      %v2323 = vpop.f32.mrb[0].mxu0
      %2324 = vmatprep.mubr.bf16.mxu0 0
      %2325 = vmatmul.mubr.bf16.gmra.mrb[0].mxu0 %v1524
      %v2326 = vpop.f32.mrb[0].mxu0
      %v2327 = vadd.f32 %v2038, %v2326
      %v2328 = vpop.f32.mrb[0].mxu0
      %v2329 = vpop.f32.mrb[0].mxu0
      %v2330 = vadd.f32 %v2041, %v2329
      %v2331 = vpop.f32.mrb[0].mxu0
      %2332 = vmatprep.mubr.bf16.mxu0 0
      %2333 = vmatmul.mubr.bf16.gmra.mrb[0].mxu0 %v1527
      %v2334 = vpop.f32.mrb[0].mxu0
      %v2335 = vadd.f32 %v2046, %v2334
      %v2336 = vpop.f32.mrb[0].mxu0
      %v2337 = vpop.f32.mrb[0].mxu0
      %v2338 = vadd.f32 %v2049, %v2337
      %v2339 = vpop.f32.mrb[0].mxu0
      %2340 = vmatprep.mubr.bf16.mxu0 0
      %2341 = vmatmul.mubr.bf16.gmra.mrb[0].mxu0 %v1530
      %v2342 = vpop.f32.mrb[0].mxu0
      %v2343 = vadd.f32 %v2054, %v2342
      %v2344 = vpop.f32.mrb[0].mxu0
      %v2345 = vpop.f32.mrb[0].mxu0
      %v2346 = vadd.f32 %v2057, %v2345
      %v2347 = vpop.f32.mrb[0].mxu0
      %2348 = vmatprep.mubr.bf16.mxu0 0
      %2349 = vmatmul.mubr.bf16.gmra.mrb[0].mxu0 %v1533
      %v2350 = vpop.f32.mrb[0].mxu0
      %v2351 = vadd.f32 %v2062, %v2350
      %v2352 = vpop.f32.mrb[0].mxu0
      %v2353 = vpop.f32.mrb[0].mxu0
      %v2354 = vadd.f32 %v2065, %v2353
      %v2355 = vpop.f32.mrb[0].mxu0
      %2356 = vmatprep.mubr.bf16.mxu0 0
      %2357 = vmatmul.mubr.bf16.gmra.mrb[0].mxu0 %v1536
      %v2358 = vpop.f32.mrb[0].mxu0
      %v2359 = vadd.f32 %v2070, %v2358
      %v2360 = vpop.f32.mrb[0].mxu0
      %v2361 = vpop.f32.mrb[0].mxu0
      %v2362 = vadd.f32 %v2073, %v2361
      %v2363 = vpop.f32.mrb[0].mxu0
      %2364 = vmatprep.mubr.bf16.mxu0 0
      %2365 = vmatmul.mubr.bf16.gmra.mrb[0].mxu0 %v1539
      %v2366 = vpop.f32.mrb[0].mxu0
      %v2367 = vadd.f32 %v2078, %v2366
      %v2368 = vpop.f32.mrb[0].mxu0
      %v2369 = vpop.f32.mrb[0].mxu0
      %v2370 = vadd.f32 %v2081, %v2369
      %v2371 = vpop.f32.mrb[0].mxu0
      %2372 = vmatprep.mubr.bf16.mxu0 0
      %2373 = vmatmul.mubr.bf16.gmra.mrb[0].mxu0 %v1542
      %v2374 = vpop.f32.mrb[0].mxu0
      %v2375 = vadd.f32 %v2086, %v2374
      %v2376 = vpop.f32.mrb[0].mxu0
      %v2377 = vpop.f32.mrb[0].mxu0
      %v2378 = vadd.f32 %v2089, %v2377
      %v2379 = vpop.f32.mrb[0].mxu0
      %2380 = vmatprep.mubr.bf16.mxu0 0
      %2381 = vmatmul.mubr.bf16.gmra.mrb[0].mxu0 %v1545
      %v2382 = vpop.f32.mrb[0].mxu0
      %v2383 = vadd.f32 %v2094, %v2382
      %v2384 = vpop.f32.mrb[0].mxu0
      %v2385 = vpop.f32.mrb[0].mxu0
      %v2386 = vadd.f32 %v2097, %v2385
      %v2387 = vpop.f32.mrb[0].mxu0
      %2388 = vmatprep.mubr.bf16.mxu0 0
      %2389 = vmatmul.mubr.bf16.gmra.mrb[0].mxu0 %v1548
      %v2390 = vpop.f32.mrb[0].mxu0
      %v2391 = vadd.f32 %v2102, %v2390
      %v2392 = vpop.f32.mrb[0].mxu0
      %v2393 = vpop.f32.mrb[0].mxu0
      %v2394 = vadd.f32 %v2105, %v2393
      %v2395 = vpop.f32.mrb[0].mxu0
      %2396 = vmatprep.mubr.bf16.mxu0 0
      %2397 = vmatmul.mubr.bf16.gmra.mrb[0].mxu0 %v1551
      %v2398 = vpop.f32.mrb[0].mxu0
      %v2399 = vadd.f32 %v2110, %v2398
      %v2400 = vpop.f32.mrb[0].mxu0
      %v2401 = vpop.f32.mrb[0].mxu0
      %v2402 = vadd.f32 %v2113, %v2401
      %v2403 = vpop.f32.mrb[0].mxu0
      %2404 = vmatprep.mubr.bf16.mxu0 0
      %2405 = vmatmul.mubr.bf16.gmra.mrb[0].mxu0 %v1554
      %v2406 = vpop.f32.mrb[0].mxu0
      %v2407 = vadd.f32 %v2118, %v2406
      %v2408 = vpop.f32.mrb[0].mxu0
      %v2409 = vpop.f32.mrb[0].mxu0
      %v2410 = vadd.f32 %v2121, %v2409
      %v2411 = vpop.f32.mrb[0].mxu0
      %2412 = vmatprep.mubr.bf16.mxu0 0
      %2413 = vmatmul.mubr.bf16.gmra.mrb[0].mxu0 %v1557
      %v2414 = vpop.f32.mrb[0].mxu0
      %v2415 = vadd.f32 %v2126, %v2414
      %v2416 = vpop.f32.mrb[0].mxu0
      %v2417 = vpop.f32.mrb[0].mxu0
      %v2418 = vadd.f32 %v2129, %v2417
      %v2419 = vpop.f32.mrb[0].mxu0
      %2420 = vmatprep.mubr.bf16.mxu0 0
      %2421 = vmatmul.mubr.bf16.gmra.mrb[0].mxu0 %v1560
      %v2422 = vpop.f32.mrb[0].mxu0
      %v2423 = vadd.f32 %v2134, %v2422
      %v2424 = vpop.f32.mrb[0].mxu0
      %v2425 = vpop.f32.mrb[0].mxu0
      %v2426 = vadd.f32 %v2137, %v2425
      %v2427 = vpop.f32.mrb[0].mxu0
      %2428 = vdwg.mxu0
      %v2429 = vmax.f32 %v2175, 0.0
      %v2430 = vmax.f32 %v2178, 0.0
      %v2431 = vmax.f32 %v2183, 0.0
      %v2432 = vmax.f32 %v2186, 0.0
      %v2433 = vmax.f32 %v2191, 0.0
      %v2434 = vmax.f32 %v2194, 0.0
      %v2435 = vmax.f32 %v2199, 0.0
      %v2436 = vmax.f32 %v2202, 0.0
      %v2437 = vmax.f32 %v2207, 0.0
      %v2438 = vmax.f32 %v2210, 0.0
      %v2439 = vmax.f32 %v2215, 0.0
      %v2440 = vmax.f32 %v2218, 0.0
      %v2441 = vmax.f32 %v2223, 0.0
      %v2442 = vmax.f32 %v2226, 0.0
      %v2443 = vmax.f32 %v2231, 0.0
      %v2444 = vmax.f32 %v2234, 0.0
      %v2445 = vmax.f32 %v2239, 0.0
      %v2446 = vmax.f32 %v2242, 0.0
      %v2447 = vmax.f32 %v2247, 0.0
      %v2448 = vmax.f32 %v2250, 0.0
      %v2449 = vmax.f32 %v2255, 0.0
      %v2450 = vmax.f32 %v2258, 0.0
      %v2451 = vmax.f32 %v2263, 0.0
      %v2452 = vmax.f32 %v2266, 0.0
      %v2453 = vmax.f32 %v2271, 0.0
      %v2454 = vmax.f32 %v2274, 0.0
      %v2455 = vmax.f32 %v2279, 0.0
      %v2456 = vmax.f32 %v2282, 0.0
      %v2457 = vmax.f32 %v2287, 0.0
      %v2458 = vmax.f32 %v2290, 0.0
      %v2459 = vmax.f32 %v2295, 0.0
      %v2460 = vmax.f32 %v2298, 0.0
      %v2461 = vmax.f32 %v2303, 0.0
      %v2462 = vmax.f32 %v2306, 0.0
      %v2463 = vmax.f32 %v2311, 0.0
      %v2464 = vmax.f32 %v2314, 0.0
      %v2465 = vmax.f32 %v2319, 0.0
      %v2466 = vmax.f32 %v2322, 0.0
      %v2467 = vmax.f32 %v2327, 0.0
      %v2468 = vmax.f32 %v2330, 0.0
      %v2469 = vmax.f32 %v2335, 0.0
      %v2470 = vmax.f32 %v2338, 0.0
      %v2471 = vmax.f32 %v2343, 0.0
      %v2472 = vmax.f32 %v2346, 0.0
      %v2473 = vmax.f32 %v2351, 0.0
      %v2474 = vmax.f32 %v2354, 0.0
      %v2475 = vmax.f32 %v2359, 0.0
      %v2476 = vmax.f32 %v2362, 0.0
      %v2477 = vmax.f32 %v2367, 0.0
      %v2478 = vmax.f32 %v2370, 0.0
      %v2479 = vmax.f32 %v2375, 0.0
      %v2480 = vmax.f32 %v2378, 0.0
      %v2481 = vmax.f32 %v2383, 0.0
      %v2482 = vmax.f32 %v2386, 0.0
      %v2483 = vmax.f32 %v2391, 0.0
      %v2484 = vmax.f32 %v2394, 0.0
      %v2485 = vmax.f32 %v2399, 0.0
      %v2486 = vmax.f32 %v2402, 0.0
      %v2487 = vmax.f32 %v2407, 0.0
      %v2488 = vmax.f32 %v2410, 0.0
      %v2489 = vmax.f32 %v2415, 0.0
      %v2490 = vmax.f32 %v2418, 0.0
      %v2491 = vmax.f32 %v2423, 0.0
      %v2492 = vmax.f32 %v2426, 0.0
      %v2493 = vpack.c.bf16 %v2430, %v2429
      %v2494 = vpack.c.bf16 %v2432, %v2431
      %v2495 = vpack.c.bf16 %v2434, %v2433
      %v2496 = vpack.c.bf16 %v2436, %v2435
      %v2497 = vpack.c.bf16 %v2438, %v2437
      %v2498 = vpack.c.bf16 %v2440, %v2439
      %v2499 = vpack.c.bf16 %v2442, %v2441
      %v2500 = vpack.c.bf16 %v2444, %v2443
      %v2501 = vpack.c.bf16 %v2446, %v2445
      %v2502 = vpack.c.bf16 %v2448, %v2447
      %v2503 = vpack.c.bf16 %v2450, %v2449
      %v2504 = vpack.c.bf16 %v2452, %v2451
      %v2505 = vpack.c.bf16 %v2454, %v2453
      %v2506 = vpack.c.bf16 %v2456, %v2455
      %v2507 = vpack.c.bf16 %v2458, %v2457
      %v2508 = vpack.c.bf16 %v2460, %v2459
      %v2509 = vpack.c.bf16 %v2462, %v2461
      %v2510 = vpack.c.bf16 %v2464, %v2463
      %v2511 = vpack.c.bf16 %v2466, %v2465
      %v2512 = vpack.c.bf16 %v2468, %v2467
      %v2513 = vpack.c.bf16 %v2470, %v2469
      %v2514 = vpack.c.bf16 %v2472, %v2471
      %v2515 = vpack.c.bf16 %v2474, %v2473
      %v2516 = vpack.c.bf16 %v2476, %v2475
      %v2517 = vpack.c.bf16 %v2478, %v2477
      %v2518 = vpack.c.bf16 %v2480, %v2479
      %v2519 = vpack.c.bf16 %v2482, %v2481
      %v2520 = vpack.c.bf16 %v2484, %v2483
      %v2521 = vpack.c.bf16 %v2486, %v2485
      %v2522 = vpack.c.bf16 %v2488, %v2487
      %v2523 = vpack.c.bf16 %v2490, %v2489
      %v2524 = vpack.c.bf16 %v2492, %v2491
      %v2557 = vunpack.c.l.b16 %v2493
      %v2558 = vunpack.c.h.b16 %v2493
      %v2559 = vunpack.c.l.b16 %v2494
      %v2560 = vunpack.c.h.b16 %v2494
      %v2561 = vunpack.c.l.b16 %v2495
      %v2562 = vunpack.c.h.b16 %v2495
      %v2563 = vunpack.c.l.b16 %v2496
      %v2564 = vunpack.c.h.b16 %v2496
      %v2565 = vunpack.c.l.b16 %v2497
      %v2566 = vunpack.c.h.b16 %v2497
      %v2567 = vunpack.c.l.b16 %v2498
      %v2568 = vunpack.c.h.b16 %v2498
      %v2569 = vunpack.c.l.b16 %v2499
      %v2570 = vunpack.c.h.b16 %v2499
      %v2571 = vunpack.c.l.b16 %v2500
      %v2572 = vunpack.c.h.b16 %v2500
      %v2573 = vunpack.c.l.b16 %v2501
      %v2574 = vunpack.c.h.b16 %v2501
      %v2575 = vunpack.c.l.b16 %v2502
      %v2576 = vunpack.c.h.b16 %v2502
      %v2577 = vunpack.c.l.b16 %v2503
      %v2578 = vunpack.c.h.b16 %v2503
      %v2579 = vunpack.c.l.b16 %v2504
      %v2580 = vunpack.c.h.b16 %v2504
      %v2581 = vunpack.c.l.b16 %v2505
      %v2582 = vunpack.c.h.b16 %v2505
      %v2583 = vunpack.c.l.b16 %v2506
      %v2584 = vunpack.c.h.b16 %v2506
      %v2585 = vunpack.c.l.b16 %v2507
      %v2586 = vunpack.c.h.b16 %v2507
      %v2587 = vunpack.c.l.b16 %v2508
      %v2588 = vunpack.c.h.b16 %v2508
      %v2589 = vunpack.c.l.b16 %v2509
      %v2590 = vunpack.c.h.b16 %v2509
      %v2591 = vunpack.c.l.b16 %v2510
      %v2592 = vunpack.c.h.b16 %v2510
      %v2593 = vunpack.c.l.b16 %v2511
      %v2594 = vunpack.c.h.b16 %v2511
      %v2595 = vunpack.c.l.b16 %v2512
      %v2596 = vunpack.c.h.b16 %v2512
      %v2597 = vunpack.c.l.b16 %v2513
      %v2598 = vunpack.c.h.b16 %v2513
      %v2599 = vunpack.c.l.b16 %v2514
      %v2600 = vunpack.c.h.b16 %v2514
      %v2601 = vunpack.c.l.b16 %v2515
      %v2602 = vunpack.c.h.b16 %v2515
      %v2603 = vunpack.c.l.b16 %v2516
      %v2604 = vunpack.c.h.b16 %v2516
      %v2605 = vunpack.c.l.b16 %v2517
      %v2606 = vunpack.c.h.b16 %v2517
      %v2607 = vunpack.c.l.b16 %v2518
      %v2608 = vunpack.c.h.b16 %v2518
      %v2609 = vunpack.c.l.b16 %v2519
      %v2610 = vunpack.c.h.b16 %v2519
      %v2611 = vunpack.c.l.b16 %v2520
      %v2612 = vunpack.c.h.b16 %v2520
      %v2613 = vunpack.c.l.b16 %v2521
      %v2614 = vunpack.c.h.b16 %v2521
      %v2615 = vunpack.c.l.b16 %v2522
      %v2616 = vunpack.c.h.b16 %v2522
      %v2617 = vunpack.c.l.b16 %v2523
      %v2618 = vunpack.c.h.b16 %v2523
      %v2619 = vunpack.c.l.b16 %v2524
      %v2620 = vunpack.c.h.b16 %v2524
      %v2621 = vpack.c.b16 %v2557, %v2557
      %v2622 = vpack.c.b16 %v2558, %v2558
      %v2623 = vpack.c.b16 %v2559, %v2559
      %v2624 = vpack.c.b16 %v2560, %v2560
      %v2625 = vpack.c.b16 %v2561, %v2561
      %v2626 = vpack.c.b16 %v2562, %v2562
      %v2627 = vpack.c.b16 %v2563, %v2563
      %v2628 = vpack.c.b16 %v2564, %v2564
      %v2629 = vpack.c.b16 %v2565, %v2565
      %v2630 = vpack.c.b16 %v2566, %v2566
      %v2631 = vpack.c.b16 %v2567, %v2567
      %v2632 = vpack.c.b16 %v2568, %v2568
      %v2633 = vpack.c.b16 %v2569, %v2569
      %v2634 = vpack.c.b16 %v2570, %v2570
      %v2635 = vpack.c.b16 %v2571, %v2571
      %v2636 = vpack.c.b16 %v2572, %v2572
      %v2637 = vpack.c.b16 %v2573, %v2573
      %v2638 = vpack.c.b16 %v2574, %v2574
      %v2639 = vpack.c.b16 %v2575, %v2575
      %v2640 = vpack.c.b16 %v2576, %v2576
      %v2641 = vpack.c.b16 %v2577, %v2577
      %v2642 = vpack.c.b16 %v2578, %v2578
      %v2643 = vpack.c.b16 %v2579, %v2579
      %v2644 = vpack.c.b16 %v2580, %v2580
      %v2645 = vpack.c.b16 %v2581, %v2581
      %v2646 = vpack.c.b16 %v2582, %v2582
      %v2647 = vpack.c.b16 %v2583, %v2583
      %v2648 = vpack.c.b16 %v2584, %v2584
      %v2649 = vpack.c.b16 %v2585, %v2585
      %v2650 = vpack.c.b16 %v2586, %v2586
      %v2651 = vpack.c.b16 %v2587, %v2587
      %v2652 = vpack.c.b16 %v2588, %v2588
      %v2653 = vpack.c.b16 %v2589, %v2589
      %v2654 = vpack.c.b16 %v2590, %v2590
      %v2655 = vpack.c.b16 %v2591, %v2591
      %v2656 = vpack.c.b16 %v2592, %v2592
      %v2657 = vpack.c.b16 %v2593, %v2593
      %v2658 = vpack.c.b16 %v2594, %v2594
      %v2659 = vpack.c.b16 %v2595, %v2595
      %v2660 = vpack.c.b16 %v2596, %v2596
      %v2661 = vpack.c.b16 %v2597, %v2597
      %v2662 = vpack.c.b16 %v2598, %v2598
      %v2663 = vpack.c.b16 %v2599, %v2599
      %v2664 = vpack.c.b16 %v2600, %v2600
      %v2665 = vpack.c.b16 %v2601, %v2601
      %v2666 = vpack.c.b16 %v2602, %v2602
      %v2667 = vpack.c.b16 %v2603, %v2603
      %v2668 = vpack.c.b16 %v2604, %v2604
      %v2669 = vpack.c.b16 %v2605, %v2605
      %v2670 = vpack.c.b16 %v2606, %v2606
      %v2671 = vpack.c.b16 %v2607, %v2607
      %v2672 = vpack.c.b16 %v2608, %v2608
      %v2673 = vpack.c.b16 %v2609, %v2609
      %v2674 = vpack.c.b16 %v2610, %v2610
      %v2675 = vpack.c.b16 %v2611, %v2611
      %v2676 = vpack.c.b16 %v2612, %v2612
      %v2677 = vpack.c.b16 %v2613, %v2613
      %v2678 = vpack.c.b16 %v2614, %v2614
      %v2679 = vpack.c.b16 %v2615, %v2615
      %v2680 = vpack.c.b16 %v2616, %v2616
      %v2681 = vpack.c.b16 %v2617, %v2617
      %v2682 = vpack.c.b16 %v2618, %v2618
      %v2683 = vpack.c.b16 %v2619, %v2619
      %v2684 = vpack.c.b16 %v2620, %v2620
      %2749 = vst [vmem:[%s175] sm:$0xf] %v2621
      %2750 = vst [vmem:[%s175 + $0x4] sm:$0xf] %v2622
      %2751 = vst [vmem:[%s175 + $0x8] sm:$0xf] %v2623
      %2752 = vst [vmem:[%s175 + $0xc] sm:$0xf] %v2624
      %2753 = vst [vmem:[%s175 + $0x10] sm:$0xf] %v2625
      %2754 = vst [vmem:[%s175 + $0x14] sm:$0xf] %v2626
      %2755 = vst [vmem:[%s175 + $0x18] sm:$0xf] %v2627
      %2756 = vst [vmem:[%s175 + $0x1c] sm:$0xf] %v2628
      %2757 = vst [vmem:[%s175 + $0x20] sm:$0xf] %v2629
      %2758 = vst [vmem:[%s175 + $0x24] sm:$0xf] %v2630
      %2759 = vst [vmem:[%s175 + $0x28] sm:$0xf] %v2631
      %2760 = vst [vmem:[%s175 + $0x2c] sm:$0xf] %v2632
      %2761 = vst [vmem:[%s175 + $0x30] sm:$0xf] %v2633
      %2762 = vst [vmem:[%s175 + $0x34] sm:$0xf] %v2634
      %2763 = vst [vmem:[%s175 + $0x38] sm:$0xf] %v2635
      %2764 = vst [vmem:[%s175 + $0x3c] sm:$0xf] %v2636
      %2765 = vst [vmem:[%s175 + $0x40] sm:$0xf] %v2637
      %2766 = vst [vmem:[%s175 + $0x44] sm:$0xf] %v2638
      %2767 = vst [vmem:[%s175 + $0x48] sm:$0xf] %v2639
      %2768 = vst [vmem:[%s175 + $0x4c] sm:$0xf] %v2640
      %2769 = vst [vmem:[%s175 + $0x50] sm:$0xf] %v2641
      %2770 = vst [vmem:[%s175 + $0x54] sm:$0xf] %v2642
      %2771 = vst [vmem:[%s175 + $0x58] sm:$0xf] %v2643
      %2772 = vst [vmem:[%s175 + $0x5c] sm:$0xf] %v2644
      %2773 = vst [vmem:[%s175 + $0x60] sm:$0xf] %v2645
      %2774 = vst [vmem:[%s175 + $0x64] sm:$0xf] %v2646
      %2775 = vst [vmem:[%s175 + $0x68] sm:$0xf] %v2647
      %2776 = vst [vmem:[%s175 + $0x6c] sm:$0xf] %v2648
      %2777 = vst [vmem:[%s175 + $0x70] sm:$0xf] %v2649
      %2778 = vst [vmem:[%s175 + $0x74] sm:$0xf] %v2650
      %2779 = vst [vmem:[%s175 + $0x78] sm:$0xf] %v2651
      %2780 = vst [vmem:[%s175 + $0x7c] sm:$0xf] %v2652
      %2781 = vst [vmem:[%s175 + $0x80] sm:$0xf] %v2653
      %2782 = vst [vmem:[%s175 + $0x84] sm:$0xf] %v2654
      %2783 = vst [vmem:[%s175 + $0x88] sm:$0xf] %v2655
      %2784 = vst [vmem:[%s175 + $0x8c] sm:$0xf] %v2656
      %2785 = vst [vmem:[%s175 + $0x90] sm:$0xf] %v2657
      %2786 = vst [vmem:[%s175 + $0x94] sm:$0xf] %v2658
      %2787 = vst [vmem:[%s175 + $0x98] sm:$0xf] %v2659
      %2788 = vst [vmem:[%s175 + $0x9c] sm:$0xf] %v2660
      %2789 = vst [vmem:[%s175 + $0xa0] sm:$0xf] %v2661
      %2790 = vst [vmem:[%s175 + $0xa4] sm:$0xf] %v2662
      %2791 = vst [vmem:[%s175 + $0xa8] sm:$0xf] %v2663
      %2792 = vst [vmem:[%s175 + $0xac] sm:$0xf] %v2664
      %2793 = vst [vmem:[%s175 + $0xb0] sm:$0xf] %v2665
      %2794 = vst [vmem:[%s175 + $0xb4] sm:$0xf] %v2666
      %2795 = vst [vmem:[%s175 + $0xb8] sm:$0xf] %v2667
      %2796 = vst [vmem:[%s175 + $0xbc] sm:$0xf] %v2668
      %2797 = vst [vmem:[%s175 + $0xc0] sm:$0xf] %v2669
      %2798 = vst [vmem:[%s175 + $0xc4] sm:$0xf] %v2670
      %2799 = vst [vmem:[%s175 + $0xc8] sm:$0xf] %v2671
      %2800 = vst [vmem:[%s175 + $0xcc] sm:$0xf] %v2672
      %2801 = vst [vmem:[%s175 + $0xd0] sm:$0xf] %v2673
      %2802 = vst [vmem:[%s175 + $0xd4] sm:$0xf] %v2674
      %2803 = vst [vmem:[%s175 + $0xd8] sm:$0xf] %v2675
      %2804 = vst [vmem:[%s175 + $0xdc] sm:$0xf] %v2676
      %2805 = vst [vmem:[%s175 + $0xe0] sm:$0xf] %v2677
      %2806 = vst [vmem:[%s175 + $0xe4] sm:$0xf] %v2678
      %2807 = vst [vmem:[%s175 + $0xe8] sm:$0xf] %v2679
      %2808 = vst [vmem:[%s175 + $0xec] sm:$0xf] %v2680
      %2809 = vst [vmem:[%s175 + $0xf0] sm:$0xf] %v2681
      %2810 = vst [vmem:[%s175 + $0xf4] sm:$0xf] %v2682
      %2811 = vst [vmem:[%s175 + $0xf8] sm:$0xf] %v2683
      %2812 = vst [vmem:[%s175 + $0xfc] sm:$0xf] %v2684
      %s2813 = smul.u32 64, %s14
      %p2814 = scmp.lt.s32.totalorder %s2813, 127
      %s2815 = scalar_select %p2814, %s2813, 127
      %s2816 = smul.addr %s2815, 4
      %s2817 = scalar_lea.vmem %s3, %s2816
      // Predicated region
      $region33: #{conv2d_subsampling_forward.4} parent=31 // pred_check
        %p2818 = pneg %p100
      $region34: #{conv2d_subsampling_forward.4} parent=31 // pred_check_branch
        %2820 = sbr.rel (%p2818) target = $region36
      $region35: #{conv2d_subsampling_forward.4} parent=31 // pred_region
        %s2821 = smul.u32 64, %s14
      $region36: #{conv2d_subsampling_forward.4} parent=31 // pred_fallthru
        _
    $region32: #{conv2d_subsampling_forward.4} parent=5 // pred_fallthru
      _
    %p2822 = scmp.le.s32.totalorder 2, %s9
    // Predicated region
    $region37: #{conv2d_subsampling_forward.4} parent=5 // pred_check
      %p2823 = pneg %p2822
    $region38: #{conv2d_subsampling_forward.4} parent=5 // pred_check_branch
      %2825 = sbr.rel (%p2823) target = $region40
    $region39: #{conv2d_subsampling_forward.4} parent=5 // pred_region
      %s2826 = ssub.s32 %s9, 2
      // Predicated region
      $region41: #{conv2d_subsampling_forward.4} parent=39 // pred_check
        %p2827 = pneg %p106
      $region42: #{conv2d_subsampling_forward.4} parent=39 // pred_check_branch
        %2829 = sbr.rel (%p2827) target = $region44
      $region43: #{conv2d_subsampling_forward.4} parent=39 // pred_region
        %s2830 = smul.u32 64, %s15
        %p2831 = scmp.lt.s32.totalorder %s2830, 127
        %s2832 = scalar_select %p2831, %s2830, 127
        %s2833 = smul.addr %s2832, 4
        %s2834 = scalar_lea.vmem %s3, %s2833
      $region44: #{conv2d_subsampling_forward.4} parent=39 // pred_fallthru
        _
    $region40: #{conv2d_subsampling_forward.4} parent=5 // pred_fallthru
      _
  $region6: #{conv2d_subsampling_forward.4} parent=0 // loop_footer
    %s13 = sadd.s32 1, %s9
  $region7: #{conv2d_subsampling_forward.4} parent=0 // loop_footer_branch
    %8 = sbr.rel target = $region3
  $region8: #{conv2d_subsampling_forward.4} parent=0 // loop_exit
    _

// kernel: conv2d_subsampling_forward.5
$region0: #{conv2d_subsampling_forward.5}
  #allocation0 [shape = 'u32[]', space=smem, size = 0x4, offset = 0x4, fixed_abs, tag = 'smem constant byte address 0x4 - core index']
  #allocation1 [shape = 'u32[144,128]{1,0:T(1,128)}', space=vmem, size = 0x12000, scoped, tag = 'internal scratch']
  %s0 = inlined_call_operand.vmem [shape: bf16[64,576], index: 0, kind: input, shape index: {}]
  %s1 = inlined_call_operand.vmem [shape: bf16[576,128], index: 1, kind: input, shape index: {}]
  %s2 = inlined_call_operand.vmem [shape: f32[1,128], index: 2, kind: input, shape index: {}]
  %s3 = inlined_call_operand.vmem [shape: f32[64,128], index: 3, kind: output, shape index: {}]
  %s4 = sld [smem:[#allocation0]]
  $region22: #{conv2d_subsampling_forward.5} parent=0
    _
  %s6 = ssub.s32 1, %s4
  %s7 = scalar_select 0, %s6, %s4
  // Predicated region
  $region2: #{conv2d_subsampling_forward.5} parent=0 // pred_check
    _
  $region3: #{conv2d_subsampling_forward.5} parent=0 // pred_check_branch
    %9 = sbr.rel (0) target = $region5
  $region4: #{conv2d_subsampling_forward.5} parent=0 // pred_region
    _
  $region5: #{conv2d_subsampling_forward.5} parent=0 // pred_fallthru
    _
  // Predicated region
  $region6: #{conv2d_subsampling_forward.5} parent=0 // pred_check
    _
  $region7: #{conv2d_subsampling_forward.5} parent=0 // pred_check_branch
    %11 = sbr.rel (0) target = $region9
  $region8: #{conv2d_subsampling_forward.5} parent=0 // pred_region
    _
  $region9: #{conv2d_subsampling_forward.5} parent=0 // pred_fallthru
    _
  // Predicated region
  $region10: #{conv2d_subsampling_forward.5} parent=0 // pred_check
    _
  $region11: #{conv2d_subsampling_forward.5} parent=0 // pred_check_branch
    %13 = sbr.rel (0) target = $region13
  $region12: #{conv2d_subsampling_forward.5} parent=0 // pred_region
    _
  $region13: #{conv2d_subsampling_forward.5} parent=0 // pred_fallthru
    _
  %v15 = vld [vmem:[%s0] sm:$0xff]
  %v16 = vld [vmem:[%s0 + $0x8] sm:$0xff]
  %v17 = vld [vmem:[%s0 + $0x10] sm:$0xf]
  %v18 = vld [vmem:[%s0 + $0x14] sm:$0xff]
  %v19 = vld [vmem:[%s0 + $0x1c] sm:$0xff]
  %v20 = vld [vmem:[%s0 + $0x24] sm:$0xf]
  %v21 = vld [vmem:[%s0 + $0x28] sm:$0xff]
  %v22 = vld [vmem:[%s0 + $0x30] sm:$0xff]
  %v23 = vld [vmem:[%s0 + $0x38] sm:$0xf]
  %v24 = vld [vmem:[%s0 + $0x3c] sm:$0xff]
  %v25 = vld [vmem:[%s0 + $0x44] sm:$0xff]
  %v26 = vld [vmem:[%s0 + $0x4c] sm:$0xf]
  %v27 = vld [vmem:[%s0 + $0x50] sm:$0xff]
  %v28 = vld [vmem:[%s0 + $0x58] sm:$0xff]
  %v29 = vld [vmem:[%s0 + $0x60] sm:$0xf]
  %v30 = vld [vmem:[%s0 + $0x64] sm:$0xff]
  %v31 = vld [vmem:[%s0 + $0x6c] sm:$0xff]
  %v32 = vld [vmem:[%s0 + $0x74] sm:$0xf]
  %v33 = vld [vmem:[%s0 + $0x78] sm:$0xff]
  %v34 = vld [vmem:[%s0 + $0x80] sm:$0xff]
  %v35 = vld [vmem:[%s0 + $0x88] sm:$0xf]
  %v36 = vld [vmem:[%s0 + $0x8c] sm:$0xff]
  %v37 = vld [vmem:[%s0 + $0x94] sm:$0xff]
  %v38 = vld [vmem:[%s0 + $0x9c] sm:$0xf]
  %v39 = vld [vmem:[%s1] sm:$0xf]
  %v40 = vld [vmem:[%s1 + $0x4] sm:$0xf]
  %v41 = vld [vmem:[%s1 + $0x8] sm:$0xf]
  %v42 = vld [vmem:[%s1 + $0xc] sm:$0xf]
  %v43 = vld [vmem:[%s1 + $0x10] sm:$0xf]
  %v44 = vld [vmem:[%s1 + $0x14] sm:$0xf]
  %v45 = vld [vmem:[%s1 + $0x18] sm:$0xf]
  %v46 = vld [vmem:[%s1 + $0x1c] sm:$0xf]
  %v47 = vld [vmem:[%s1 + $0x20] sm:$0xf]
  %v48 = vld [vmem:[%s1 + $0x24] sm:$0xf]
  %v49 = vld [vmem:[%s1 + $0x28] sm:$0xf]
  %v50 = vld [vmem:[%s1 + $0x2c] sm:$0xf]
  %v51 = vld [vmem:[%s1 + $0x30] sm:$0xf]
  %v52 = vld [vmem:[%s1 + $0x34] sm:$0xf]
  %v53 = vld [vmem:[%s1 + $0x38] sm:$0xf]
  %v54 = vld [vmem:[%s1 + $0x3c] sm:$0xf]
  %v55 = vld [vmem:[%s1 + $0x40] sm:$0xf]
  %v56 = vld [vmem:[%s1 + $0x44] sm:$0xf]
  %v57 = vld [vmem:[%s1 + $0x48] sm:$0xf]
  %v58 = vld [vmem:[%s1 + $0x4c] sm:$0xf]
  %v59 = vld [vmem:[%s1 + $0x50] sm:$0xf]
  %v60 = vld [vmem:[%s1 + $0x54] sm:$0xf]
  %v61 = vld [vmem:[%s1 + $0x58] sm:$0xf]
  %v62 = vld [vmem:[%s1 + $0x5c] sm:$0xf]
  %v63 = vld [vmem:[%s1 + $0x60] sm:$0xf]
  %v64 = vld [vmem:[%s1 + $0x64] sm:$0xf]
  %v65 = vld [vmem:[%s1 + $0x68] sm:$0xf]
  %v66 = vld [vmem:[%s1 + $0x6c] sm:$0xf]
  %v67 = vld [vmem:[%s1 + $0x70] sm:$0xf]
  %v68 = vld [vmem:[%s1 + $0x74] sm:$0xf]
  %v69 = vld [vmem:[%s1 + $0x78] sm:$0xf]
  %v70 = vld [vmem:[%s1 + $0x7c] sm:$0xf]
  %v71 = vld [vmem:[%s1 + $0x80] sm:$0xf]
  %v72 = vld [vmem:[%s1 + $0x84] sm:$0xf]
  %v73 = vld [vmem:[%s1 + $0x88] sm:$0xf]
  %v74 = vld [vmem:[%s1 + $0x8c] sm:$0xf]
  %v75 = vld [vmem:[%s1 + $0x90] sm:$0xf]
  %v76 = vld [vmem:[%s1 + $0x94] sm:$0xf]
  %v77 = vld [vmem:[%s1 + $0x98] sm:$0xf]
  %v78 = vld [vmem:[%s1 + $0x9c] sm:$0xf]
  %v79 = vld [vmem:[%s1 + $0xa0] sm:$0xf]
  %v80 = vld [vmem:[%s1 + $0xa4] sm:$0xf]
  %v81 = vld [vmem:[%s1 + $0xa8] sm:$0xf]
  %v82 = vld [vmem:[%s1 + $0xac] sm:$0xf]
  %v83 = vld [vmem:[%s1 + $0xb0] sm:$0xf]
  %v84 = vld [vmem:[%s1 + $0xb4] sm:$0xf]
  %v85 = vld [vmem:[%s1 + $0xb8] sm:$0xf]
  %v86 = vld [vmem:[%s1 + $0xbc] sm:$0xf]
  %v87 = vld [vmem:[%s1 + $0xc0] sm:$0xf]
  %v88 = vld [vmem:[%s1 + $0xc4] sm:$0xf]
  %v89 = vld [vmem:[%s1 + $0xc8] sm:$0xf]
  %v90 = vld [vmem:[%s1 + $0xcc] sm:$0xf]
  %v91 = vld [vmem:[%s1 + $0xd0] sm:$0xf]
  %v92 = vld [vmem:[%s1 + $0xd4] sm:$0xf]
  %v93 = vld [vmem:[%s1 + $0xd8] sm:$0xf]
  %v94 = vld [vmem:[%s1 + $0xdc] sm:$0xf]
  %v95 = vld [vmem:[%s1 + $0xe0] sm:$0xf]
  %v96 = vld [vmem:[%s1 + $0xe4] sm:$0xf]
  %v97 = vld [vmem:[%s1 + $0xe8] sm:$0xf]
  %v98 = vld [vmem:[%s1 + $0xec] sm:$0xf]
  %v99 = vld [vmem:[%s1 + $0xf0] sm:$0xf]
  %v100 = vld [vmem:[%s1 + $0xf4] sm:$0xf]
  %v101 = vld [vmem:[%s1 + $0xf8] sm:$0xf]
  %v102 = vld [vmem:[%s1 + $0xfc] sm:$0xf]
  %v103 = vld [vmem:[%s1 + $0x100] sm:$0xf]
  %v104 = vld [vmem:[%s1 + $0x104] sm:$0xf]
  %v105 = vld [vmem:[%s1 + $0x108] sm:$0xf]
  %v106 = vld [vmem:[%s1 + $0x10c] sm:$0xf]
  %v107 = vld [vmem:[%s1 + $0x110] sm:$0xf]
  %v108 = vld [vmem:[%s1 + $0x114] sm:$0xf]
  %v109 = vld [vmem:[%s1 + $0x118] sm:$0xf]
  %v110 = vld [vmem:[%s1 + $0x11c] sm:$0xf]
  %v111 = vld [vmem:[%s2] sm:$0x1]
  %v113 = vlaneseq
  %v114 = vshrl.u32 %v113, 7
  %v115 = vsub.s32 0, %v114
  %v116 = vrot.slane %v111, %v115
  %v142 = vunpack.c.l.b16 %v15
  %v143 = vunpack.c.h.b16 %v15
  %v144 = vunpack.c.l.b16 %v16
  %v145 = vunpack.c.h.b16 %v16
  %v146 = vunpack.c.l.b16 %v17
  %v147 = vunpack.c.l.b16 %v18
  %v148 = vunpack.c.h.b16 %v18
  %v149 = vunpack.c.l.b16 %v19
  %v150 = vunpack.c.h.b16 %v19
  %v151 = vunpack.c.l.b16 %v20
  %v152 = vunpack.c.l.b16 %v21
  %v153 = vunpack.c.h.b16 %v21
  %v154 = vunpack.c.l.b16 %v22
  %v155 = vunpack.c.h.b16 %v22
  %v156 = vunpack.c.l.b16 %v23
  %v157 = vunpack.c.l.b16 %v24
  %v158 = vunpack.c.h.b16 %v24
  %v159 = vunpack.c.l.b16 %v25
  %v160 = vunpack.c.h.b16 %v25
  %v161 = vunpack.c.l.b16 %v26
  %v162 = vunpack.c.l.b16 %v27
  %v163 = vunpack.c.h.b16 %v27
  %v164 = vunpack.c.l.b16 %v28
  %v165 = vunpack.c.h.b16 %v28
  %v166 = vunpack.c.l.b16 %v29
  %v167 = vunpack.c.l.b16 %v30
  %v168 = vunpack.c.h.b16 %v30
  %v169 = vunpack.c.l.b16 %v31
  %v170 = vunpack.c.h.b16 %v31
  %v171 = vunpack.c.l.b16 %v32
  %v172 = vunpack.c.l.b16 %v33
  %v173 = vunpack.c.h.b16 %v33
  %v174 = vunpack.c.l.b16 %v34
  %v175 = vunpack.c.h.b16 %v34
  %v176 = vunpack.c.l.b16 %v35
  %v177 = vunpack.c.l.b16 %v36
  %v178 = vunpack.c.h.b16 %v36
  %v179 = vunpack.c.l.b16 %v37
  %v180 = vunpack.c.h.b16 %v37
  %v181 = vunpack.c.l.b16 %v38
  %v182 = vpack.c.b16 %v147, %v142
  %v183 = vpack.c.b16 %v148, %v143
  %v184 = vpack.c.b16 %v149, %v144
  %v185 = vpack.c.b16 %v150, %v145
  %v186 = vpack.c.b16 %v151, %v146
  %v187 = vpack.c.b16 %v157, %v152
  %v188 = vpack.c.b16 %v158, %v153
  %v189 = vpack.c.b16 %v159, %v154
  %v190 = vpack.c.b16 %v160, %v155
  %v191 = vpack.c.b16 %v161, %v156
  %v192 = vpack.c.b16 %v167, %v162
  %v193 = vpack.c.b16 %v168, %v163
  %v194 = vpack.c.b16 %v169, %v164
  %v195 = vpack.c.b16 %v170, %v165
  %v196 = vpack.c.b16 %v171, %v166
  %v197 = vpack.c.b16 %v177, %v172
  %v198 = vpack.c.b16 %v178, %v173
  %v199 = vpack.c.b16 %v179, %v174
  %v200 = vpack.c.b16 %v180, %v175
  %v201 = vpack.c.b16 %v181, %v176
  %v290 = vunpack.c.l.b16 %v39
  %v291 = vunpack.c.l.b16 %v40
  %v292 = vunpack.c.l.b16 %v41
  %v293 = vunpack.c.l.b16 %v42
  %v294 = vunpack.c.l.b16 %v43
  %v295 = vunpack.c.l.b16 %v44
  %v296 = vunpack.c.l.b16 %v45
  %v297 = vunpack.c.l.b16 %v46
  %v298 = vunpack.c.l.b16 %v47
  %v299 = vunpack.c.l.b16 %v48
  %v300 = vunpack.c.l.b16 %v49
  %v301 = vunpack.c.l.b16 %v50
  %v302 = vunpack.c.l.b16 %v51
  %v303 = vunpack.c.l.b16 %v52
  %v304 = vunpack.c.l.b16 %v53
  %v305 = vunpack.c.l.b16 %v54
  %v306 = vunpack.c.l.b16 %v55
  %v307 = vunpack.c.l.b16 %v56
  %v308 = vunpack.c.l.b16 %v57
  %v309 = vunpack.c.l.b16 %v58
  %v310 = vunpack.c.l.b16 %v59
  %v311 = vunpack.c.l.b16 %v60
  %v312 = vunpack.c.l.b16 %v61
  %v313 = vunpack.c.l.b16 %v62
  %v314 = vunpack.c.l.b16 %v63
  %v315 = vunpack.c.l.b16 %v64
  %v316 = vunpack.c.l.b16 %v65
  %v317 = vunpack.c.l.b16 %v66
  %v318 = vunpack.c.l.b16 %v67
  %v319 = vunpack.c.l.b16 %v68
  %v320 = vunpack.c.l.b16 %v69
  %v321 = vunpack.c.l.b16 %v70
  %v322 = vunpack.c.l.b16 %v71
  %v323 = vunpack.c.l.b16 %v72
  %v324 = vunpack.c.l.b16 %v73
  %v325 = vunpack.c.l.b16 %v74
  %v326 = vunpack.c.l.b16 %v75
  %v327 = vunpack.c.l.b16 %v76
  %v328 = vunpack.c.l.b16 %v77
  %v329 = vunpack.c.l.b16 %v78
  %v330 = vunpack.c.l.b16 %v79
  %v331 = vunpack.c.l.b16 %v80
  %v332 = vunpack.c.l.b16 %v81
  %v333 = vunpack.c.l.b16 %v82
  %v334 = vunpack.c.l.b16 %v83
  %v335 = vunpack.c.l.b16 %v84
  %v336 = vunpack.c.l.b16 %v85
  %v337 = vunpack.c.l.b16 %v86
  %v338 = vunpack.c.l.b16 %v87
  %v339 = vunpack.c.l.b16 %v88
  %v340 = vunpack.c.l.b16 %v89
  %v341 = vunpack.c.l.b16 %v90
  %v342 = vunpack.c.l.b16 %v91
  %v343 = vunpack.c.l.b16 %v92
  %v344 = vunpack.c.l.b16 %v93
  %v345 = vunpack.c.l.b16 %v94
  %v346 = vunpack.c.l.b16 %v95
  %v347 = vunpack.c.l.b16 %v96
  %v348 = vunpack.c.l.b16 %v97
  %v349 = vunpack.c.l.b16 %v98
  %v350 = vunpack.c.l.b16 %v99
  %v351 = vunpack.c.l.b16 %v100
  %v352 = vunpack.c.l.b16 %v101
  %v353 = vunpack.c.l.b16 %v102
  %v354 = vunpack.c.l.b16 %v103
  %v355 = vunpack.c.l.b16 %v104
  %v356 = vunpack.c.l.b16 %v105
  %v357 = vunpack.c.l.b16 %v106
  %v358 = vunpack.c.l.b16 %v107
  %v359 = vunpack.c.l.b16 %v108
  %v360 = vunpack.c.l.b16 %v109
  %v361 = vunpack.c.l.b16 %v110
  %v362 = vpack.c.b16 %v291, %v290
  %v363 = vpack.c.b16 %v293, %v292
  %v364 = vpack.c.b16 %v295, %v294
  %v365 = vpack.c.b16 %v297, %v296
  %v366 = vpack.c.b16 %v299, %v298
  %v367 = vpack.c.b16 %v301, %v300
  %v368 = vpack.c.b16 %v303, %v302
  %v369 = vpack.c.b16 %v305, %v304
  %v370 = vpack.c.b16 %v307, %v306
  %v371 = vpack.c.b16 %v309, %v308
  %v372 = vpack.c.b16 %v311, %v310
  %v373 = vpack.c.b16 %v313, %v312
  %v374 = vpack.c.b16 %v315, %v314
  %v375 = vpack.c.b16 %v317, %v316
  %v376 = vpack.c.b16 %v319, %v318
  %v377 = vpack.c.b16 %v321, %v320
  %v378 = vpack.c.b16 %v323, %v322
  %v379 = vpack.c.b16 %v325, %v324
  %v380 = vpack.c.b16 %v327, %v326
  %v381 = vpack.c.b16 %v329, %v328
  %v382 = vpack.c.b16 %v331, %v330
  %v383 = vpack.c.b16 %v333, %v332
  %v384 = vpack.c.b16 %v335, %v334
  %v385 = vpack.c.b16 %v337, %v336
  %v386 = vpack.c.b16 %v339, %v338
  %v387 = vpack.c.b16 %v341, %v340
  %v388 = vpack.c.b16 %v343, %v342
  %v389 = vpack.c.b16 %v345, %v344
  %v390 = vpack.c.b16 %v347, %v346
  %v391 = vpack.c.b16 %v349, %v348
  %v392 = vpack.c.b16 %v351, %v350
  %v393 = vpack.c.b16 %v353, %v352
  %v394 = vpack.c.b16 %v355, %v354
  %v395 = vpack.c.b16 %v357, %v356
  %v396 = vpack.c.b16 %v359, %v358
  %v397 = vpack.c.b16 %v361, %v360
  %vm434 = vcmask 523264
  %v436 = vsel %vm434, %v186, 0
  %v439 = vsel %vm434, %v191, 0
  %v442 = vsel %vm434, %v196, 0
  %v445 = vsel %vm434, %v201, 0
  %447 = vmatprep.subr.bf16.mxu0 0
  %448 = vmatpush1.bf16.msra.mxu0 %v362
  %449 = vmatprep.subr.bf16.mxu0 0
  %450 = vmatpush1.bf16.msra.mxu0 %v363
  %451 = vmatprep.subr.bf16.mxu0 0
  %452 = vmatpush1.bf16.msra.mxu0 %v364
  %453 = vmatprep.subr.bf16.mxu0 0
  %454 = vmatpush1.bf16.msra.mxu0 %v365
  %455 = vmatprep.subr.bf16.mxu0 0
  %456 = vmatpush1.bf16.msra.mxu0 %v366
  %457 = vmatprep.subr.bf16.mxu0 0
  %458 = vmatpush1.bf16.msra.mxu0 %v367
  %459 = vmatprep.subr.bf16.mxu0 0
  %460 = vmatpush1.bf16.msra.mxu0 %v368
  %461 = vmatprep.subr.bf16.mxu0 0
  %462 = vmatpush1.bf16.msra.mxu0 %v369
  %463 = vmatprep.subr.bf16.mxu0 0
  %464 = vmatpush1.bf16.msra.mxu0 %v370
  %465 = vmatprep.subr.bf16.mxu0 0
  %466 = vmatpush1.bf16.msra.mxu0 %v371
  %467 = vmatprep.subr.bf16.mxu0 0
  %468 = vmatpush1.bf16.msra.mxu0 %v372
  %469 = vmatprep.subr.bf16.mxu0 0
  %470 = vmatpush1.bf16.msra.mxu0 %v373
  %471 = vmatprep.subr.bf16.mxu0 0
  %472 = vmatpush1.bf16.msra.mxu0 %v374
  %473 = vmatprep.subr.bf16.mxu0 0
  %474 = vmatpush1.bf16.msra.mxu0 %v375
  %475 = vmatprep.subr.bf16.mxu0 0
  %476 = vmatpush1.bf16.msra.mxu0 %v376
  %477 = vmatprep.subr.bf16.mxu0 0
  %478 = vmatpush1.bf16.msra.mxu0 %v377
  %479 = vmatprep.mubr.bf16.mxu0 %v183
  %480 = vmatmul.mubr.bf16.gmra.mrb[0].mxu0 %v182
  %v481 = vpop.f32.mrb[0].mxu0
  %v482 = vadd.f32 %v116, %v481
  %v483 = vpop.f32.mrb[0].mxu0
  %v484 = vpop.f32.mrb[0].mxu0
  %v485 = vadd.f32 %v116, %v484
  %v486 = vpop.f32.mrb[0].mxu0
  %487 = vmatprep.mubr.bf16.mxu0 %v188
  %488 = vmatmul.mubr.bf16.gmra.mrb[0].mxu0 %v187
  %v489 = vpop.f32.mrb[0].mxu0
  %v490 = vadd.f32 %v116, %v489
  %v491 = vpop.f32.mrb[0].mxu0
  %v492 = vpop.f32.mrb[0].mxu0
  %v493 = vadd.f32 %v116, %v492
  %v494 = vpop.f32.mrb[0].mxu0
  %495 = vmatprep.mubr.bf16.mxu0 %v193
  %496 = vmatmul.mubr.bf16.gmra.mrb[0].mxu0 %v192
  %v497 = vpop.f32.mrb[0].mxu0
  %v498 = vadd.f32 %v116, %v497
  %v499 = vpop.f32.mrb[0].mxu0
  %v500 = vpop.f32.mrb[0].mxu0
  %v501 = vadd.f32 %v116, %v500
  %v502 = vpop.f32.mrb[0].mxu0
  %503 = vmatprep.mubr.bf16.mxu0 %v198
  %504 = vmatmul.mubr.bf16.gmra.mrb[0].mxu0 %v197
  %v505 = vpop.f32.mrb[0].mxu0
  %v506 = vadd.f32 %v116, %v505
  %v507 = vpop.f32.mrb[0].mxu0
  %v508 = vpop.f32.mrb[0].mxu0
  %v509 = vadd.f32 %v116, %v508
  %v510 = vpop.f32.mrb[0].mxu0
  %511 = vdwg.mxu0
  %512 = vmatprep.subr.bf16.mxu0 0
  %513 = vmatpush1.bf16.msra.mxu0 %v378
  %514 = vmatprep.subr.bf16.mxu0 0
  %515 = vmatpush1.bf16.msra.mxu0 %v379
  %516 = vmatprep.subr.bf16.mxu0 0
  %517 = vmatpush1.bf16.msra.mxu0 %v380
  %518 = vmatprep.subr.bf16.mxu0 0
  %519 = vmatpush1.bf16.msra.mxu0 %v381
  %520 = vmatprep.subr.bf16.mxu0 0
  %521 = vmatpush1.bf16.msra.mxu0 %v382
  %522 = vmatprep.subr.bf16.mxu0 0
  %523 = vmatpush1.bf16.msra.mxu0 %v383
  %524 = vmatprep.subr.bf16.mxu0 0
  %525 = vmatpush1.bf16.msra.mxu0 %v384
  %526 = vmatprep.subr.bf16.mxu0 0
  %527 = vmatpush1.bf16.msra.mxu0 %v385
  %528 = vmatprep.subr.bf16.mxu0 0
  %529 = vmatpush1.bf16.msra.mxu0 %v386
  %530 = vmatprep.subr.bf16.mxu0 0
  %531 = vmatpush1.bf16.msra.mxu0 %v387
  %532 = vmatprep.subr.bf16.mxu0 0
  %533 = vmatpush1.bf16.msra.mxu0 %v388
  %534 = vmatprep.subr.bf16.mxu0 0
  %535 = vmatpush1.bf16.msra.mxu0 %v389
  %536 = vmatprep.subr.bf16.mxu0 0
  %537 = vmatpush1.bf16.msra.mxu0 %v390
  %538 = vmatprep.subr.bf16.mxu0 0
  %539 = vmatpush1.bf16.msra.mxu0 %v391
  %540 = vmatprep.subr.bf16.mxu0 0
  %541 = vmatpush1.bf16.msra.mxu0 %v392
  %542 = vmatprep.subr.bf16.mxu0 0
  %543 = vmatpush1.bf16.msra.mxu0 %v393
  %544 = vmatprep.mubr.bf16.mxu0 %v185
  %545 = vmatmul.mubr.bf16.gmra.mrb[0].mxu0 %v184
  %v546 = vpop.f32.mrb[0].mxu0
  %v547 = vadd.f32 %v482, %v546
  %v548 = vpop.f32.mrb[0].mxu0
  %v549 = vpop.f32.mrb[0].mxu0
  %v550 = vadd.f32 %v485, %v549
  %v551 = vpop.f32.mrb[0].mxu0
  %552 = vmatprep.mubr.bf16.mxu0 %v190
  %553 = vmatmul.mubr.bf16.gmra.mrb[0].mxu0 %v189
  %v554 = vpop.f32.mrb[0].mxu0
  %v555 = vadd.f32 %v490, %v554
  %v556 = vpop.f32.mrb[0].mxu0
  %v557 = vpop.f32.mrb[0].mxu0
  %v558 = vadd.f32 %v493, %v557
  %v559 = vpop.f32.mrb[0].mxu0
  %560 = vmatprep.mubr.bf16.mxu0 %v195
  %561 = vmatmul.mubr.bf16.gmra.mrb[0].mxu0 %v194
  %v562 = vpop.f32.mrb[0].mxu0
  %v563 = vadd.f32 %v498, %v562
  %v564 = vpop.f32.mrb[0].mxu0
  %v565 = vpop.f32.mrb[0].mxu0
  %v566 = vadd.f32 %v501, %v565
  %v567 = vpop.f32.mrb[0].mxu0
  %568 = vmatprep.mubr.bf16.mxu0 %v200
  %569 = vmatmul.mubr.bf16.gmra.mrb[0].mxu0 %v199
  %v570 = vpop.f32.mrb[0].mxu0
  %v571 = vadd.f32 %v506, %v570
  %v572 = vpop.f32.mrb[0].mxu0
  %v573 = vpop.f32.mrb[0].mxu0
  %v574 = vadd.f32 %v509, %v573
  %v575 = vpop.f32.mrb[0].mxu0
  %576 = vdwg.mxu0
  %577 = vmatprep.subr.bf16.mxu0 0
  %578 = vmatpush1.bf16.msra.mxu0 %v394
  %579 = vmatprep.subr.bf16.mxu0 0
  %580 = vmatpush1.bf16.msra.mxu0 %v395
  %581 = vmatprep.subr.bf16.mxu0 0
  %582 = vmatpush1.bf16.msra.mxu0 %v396
  %583 = vmatprep.subr.bf16.mxu0 0
  %584 = vmatpush1.bf16.msra.mxu0 %v397
  %585 = vmatprep.subr.bf16.mxu0 0
  %586 = vmatpush1.bf16.msra.mxu0 0
  %587 = vmatprep.subr.bf16.mxu0 0
  %588 = vmatpush1.bf16.msra.mxu0 0
  %589 = vmatprep.subr.bf16.mxu0 0
  %590 = vmatpush1.bf16.msra.mxu0 0
  %591 = vmatprep.subr.bf16.mxu0 0
  %592 = vmatpush1.bf16.msra.mxu0 0
  %593 = vmatprep.subr.bf16.mxu0 0
  %594 = vmatpush1.bf16.msra.mxu0 0
  %595 = vmatprep.subr.bf16.mxu0 0
  %596 = vmatpush1.bf16.msra.mxu0 0
  %597 = vmatprep.subr.bf16.mxu0 0
  %598 = vmatpush1.bf16.msra.mxu0 0
  %599 = vmatprep.subr.bf16.mxu0 0
  %600 = vmatpush1.bf16.msra.mxu0 0
  %601 = vmatprep.subr.bf16.mxu0 0
  %602 = vmatpush1.bf16.msra.mxu0 0
  %603 = vmatprep.subr.bf16.mxu0 0
  %604 = vmatpush1.bf16.msra.mxu0 0
  %605 = vmatprep.subr.bf16.mxu0 0
  %606 = vmatpush1.bf16.msra.mxu0 0
  %607 = vmatprep.subr.bf16.mxu0 0
  %608 = vmatpush1.bf16.msra.mxu0 0
  %609 = vmatprep.mubr.bf16.mxu0 0
  %610 = vmatmul.mubr.bf16.gmra.mrb[0].mxu0 %v436
  %v611 = vpop.f32.mrb[0].mxu0
  %v612 = vadd.f32 %v547, %v611
  %v613 = vpop.f32.mrb[0].mxu0
  %v614 = vpop.f32.mrb[0].mxu0
  %v615 = vadd.f32 %v550, %v614
  %v616 = vpop.f32.mrb[0].mxu0
  %617 = vmatprep.mubr.bf16.mxu0 0
  %618 = vmatmul.mubr.bf16.gmra.mrb[0].mxu0 %v439
  %v619 = vpop.f32.mrb[0].mxu0
  %v620 = vadd.f32 %v555, %v619
  %v621 = vpop.f32.mrb[0].mxu0
  %v622 = vpop.f32.mrb[0].mxu0
  %v623 = vadd.f32 %v558, %v622
  %v624 = vpop.f32.mrb[0].mxu0
  %625 = vmatprep.mubr.bf16.mxu0 0
  %626 = vmatmul.mubr.bf16.gmra.mrb[0].mxu0 %v442
  %v627 = vpop.f32.mrb[0].mxu0
  %v628 = vadd.f32 %v563, %v627
  %v629 = vpop.f32.mrb[0].mxu0
  %v630 = vpop.f32.mrb[0].mxu0
  %v631 = vadd.f32 %v566, %v630
  %v632 = vpop.f32.mrb[0].mxu0
  %633 = vmatprep.mubr.bf16.mxu0 0
  %634 = vmatmul.mubr.bf16.gmra.mrb[0].mxu0 %v445
  %v635 = vpop.f32.mrb[0].mxu0
  %v636 = vadd.f32 %v571, %v635
  %v637 = vpop.f32.mrb[0].mxu0
  %v638 = vpop.f32.mrb[0].mxu0
  %v639 = vadd.f32 %v574, %v638
  %v640 = vpop.f32.mrb[0].mxu0
  %641 = vdwg.mxu0
  %642 = vst [vmem:[%s3] sm:$0xff] %v612
  %643 = vst [vmem:[%s3 + $0x8] sm:$0xff] %v615
  %644 = vst [vmem:[%s3 + $0x10] sm:$0xff] %v620
  %645 = vst [vmem:[%s3 + $0x18] sm:$0xff] %v623
  %646 = vst [vmem:[%s3 + $0x20] sm:$0xff] %v628
  %647 = vst [vmem:[%s3 + $0x28] sm:$0xff] %v631
  %648 = vst [vmem:[%s3 + $0x30] sm:$0xff] %v636
  %649 = vst [vmem:[%s3 + $0x38] sm:$0xff] %v639
  // Predicated region
  $region14: #{conv2d_subsampling_forward.5} parent=0 // pred_check
    _
  $region15: #{conv2d_subsampling_forward.5} parent=0 // pred_check_branch
    %651 = sbr.rel (0) target = $region17
  $region16: #{conv2d_subsampling_forward.5} parent=0 // pred_region
    _
  $region17: #{conv2d_subsampling_forward.5} parent=0 // pred_fallthru
    _
  // Predicated region
  $region18: #{conv2d_subsampling_forward.5} parent=0 // pred_check
    _
  $region19: #{conv2d_subsampling_forward.5} parent=0 // pred_check_branch
    %653 = sbr.rel (0) target = $region21
  $region20: #{conv2d_subsampling_forward.5} parent=0 // pred_region
    _
  $region21: #{conv2d_subsampling_forward.5} parent=0 // pred_fallthru
    _

</llo_original>
